<compile_context>
chip_gen: v5e
topology: v5e:2x2
jax: 0.10.0
libtpu: 0.0.40
codegen_flags: <defaults>
</compile_context>

<pallas_src>
import numpy as np
import jax
import jax.numpy as jnp
from jax import lax
from jax.experimental import pallas as pl
from jax.experimental.pallas import tpu as pltpu

F_PAD = 128    # feature dim padded to lane width
E_PAD = 128    # embed dim padded to lane width
TILE_B = 128   # batch tile: full-height MXU pass


def make_encoder_kernel(*, tile_b, num_sample, f_pad, batch):
    def kernel(nodes_ref, nidx_ref, cnt_ref,       # scalar prefetch (SMEM)
               aggw_ref, feat_hbm, w_ref,          # tensor inputs
               out_ref,                            # output
               sbuf, nbuf, sem):                   # scratch (persists across grid steps)
        g = pl.program_id(0)            # "parallel": sharded across TensorCores (v7x)
        j = pl.program_id(1)            # "arbitrary": sequential sweep per core
        nj = pl.num_programs(1)
        cur = g * nj + j                # global batch-tile index
        slot = j % 2                    # double-buffer slot for this tile's gathers

        def rows_valid(t):
            # Number of real (un-padded) batch rows in tile t; 0 for fully padded tiles.
            return jnp.clip(batch - t * tile_b, 0, tile_b)

        def gather(t, s_slot, do_start):
            """Issue (do_start=True) or drain (False) all row gathers of tile t.

            Issue and wait share this single descriptor builder (indices re-read
            from SMEM), so semaphore counts always match by construction.
            """
            base = t * tile_b

            @pl.loop(0, rows_valid(t))
            def _row(r):
                node = nodes_ref[base + r]
                cp = pltpu.make_async_copy(feat_hbm.at[pl.ds(node, 1)],
                                           sbuf.at[s_slot, pl.ds(r, 1)],
                                           sem.at[s_slot])
                if do_start:
                    cp.start()
                else:
                    cp.wait()
                c = cnt_ref[base + r]
                for s in range(num_sample):          # static unroll (DMA-issue bound loop)
                    @pl.when(s < c)                  # skip empty sample slots entirely
                    def _maybe_neigh():
                        nb = nidx_ref[(base + r) * num_sample + s]
                        cpn = pltpu.make_async_copy(feat_hbm.at[pl.ds(nb, 1)],
                                                    nbuf.at[s_slot, s, pl.ds(r, 1)],
                                                    sem.at[s_slot])
                        if do_start:
                            cpn.start()
                        else:
                            cpn.wait()

        # ---- prime the pipeline at the start of this core's sweep
        @pl.when(j == 0)
        def _prime():
            gather(cur, slot, True)

        # ---- drain current tile's gathers (prefetched during the previous step)
        gather(cur, slot, False)

        # ---- prefetch next tile into the other slot; overlaps with compute below
        @pl.when(j + 1 < nj)
        def _prefetch():
            gather(cur + 1, 1 - slot, True)

        nv = rows_valid(cur)

        @pl.when(nv > 0)
        def _compute():
            # Weighted mean over sampled neighbours, f32 on the VPU (v5e-friendly).
            aggw = aggw_ref[...]                                   # [tile_b, 128] f32
            mean = jnp.zeros((tile_b, f_pad), jnp.float32)
            for s in range(num_sample):                            # small static unroll
                w_s = aggw[:, s:s + 1]
                # where(): never-gathered slots (w_s == 0) hold stale VMEM; keep
                # them from injecting NaN/Inf into valid rows.
                mean = mean + jnp.where(w_s > 0.0, w_s * nbuf[slot, s], 0.0)

            # Fused [self | neigh-mean] operand -> single K = 2*f_pad (=256) MXU pass.
            combined = jnp.concatenate([sbuf[slot], mean], axis=-1)
            acc = jnp.dot(combined.astype(jnp.bfloat16), w_ref[...],
                          preferred_element_type=jnp.float32)      # [tile_b, e_pad] f32
            row_ok = lax.broadcasted_iota(jnp.int32, (tile_b, 1), 0) < nv
            out_ref[...] = jnp.where(row_ok, jnp.maximum(acc, 0.0), 0.0)

        @pl.when(nv == 0)
        def _padded_tile():
            out_ref[...] = jnp.zeros_like(out_ref)

    return kernel


def encoder_forward(nodes_idx, neigh_flat, cnt, agg_w, feat_pad, w_t_bf16, *,
                    num_sample, tile_b, batch, embed_dim, groups, tiles_per_group):
    batch_pad = nodes_idx.shape[0]
    num_nodes, f_pad = feat_pad.shape
    k_pad, e_pad = w_t_bf16.shape
    assert k_pad == 2 * f_pad
    assert batch_pad == groups * tiles_per_group * tile_b
    assert neigh_flat.shape[0] == batch_pad * num_sample

    kernel = make_encoder_kernel(tile_b=tile_b, num_sample=num_sample,
                                 f_pad=f_pad, batch=batch)
    nj = tiles_per_group

    grid_spec = pltpu.PrefetchScalarGridSpec(
        num_scalar_prefetch=3,
        grid=(groups, tiles_per_group),
        in_specs=[
            pl.BlockSpec((tile_b, agg_w.shape[1]), lambda g, j, *_: (g * nj + j, 0)),
            pl.BlockSpec(memory_space=pl.ANY),                      # feature table in HBM
            pl.BlockSpec((k_pad, e_pad), lambda g, j, *_: (0, 0)),  # resident fused weight
        ],
        out_specs=pl.BlockSpec((tile_b, e_pad), lambda g, j, *_: (g * nj + j, 0)),
        scratch_shapes=[
            pltpu.VMEM((2, tile_b, f_pad), jnp.float32),              # self rows, 2 slots
            pltpu.VMEM((2, num_sample, tile_b, f_pad), jnp.float32),  # neighbour rows, 2 slots
            pltpu.SemaphoreType.DMA((2,)),
        ],
    )

    out_pad = pl.pallas_call(
        kernel,
        grid_spec=grid_spec,
        out_shape=jax.ShapeDtypeStruct((batch_pad, e_pad), jnp.float32),
        compiler_params=pltpu.CompilerParams(
            dimension_semantics=("parallel", "arbitrary"),
            vmem_limit_bytes=32 * 1024 * 1024,
        ),
    )(nodes_idx, neigh_flat, cnt, agg_w, feat_pad, w_t_bf16)

    # PyTorch Encoder returns [embed_dim, batch]; keep the in-kernel store lane-dense
    # and transpose once in the wrapper.
    return out_pad[:batch, :embed_dim].T


def build_gather_inputs(nodes, adj_lists, num_sample, tile_b, lane_pad=128):
    """Sampled neighbour indices, per-slot 1/deg weights and per-row sample counts
    (MeanAggregator semantics), padded to the tile / megacore plan."""
    batch = len(nodes)
    n_tiles = max(1, (batch + tile_b - 1) // tile_b)
    if n_tiles >= 2:
        if n_tiles % 2:
            n_tiles += 1          # even tile count so both v7x TensorCores get work
        groups, tiles_per_group = 2, n_tiles // 2
    else:
        groups, tiles_per_group = 1, 1
    batch_pad = groups * tiles_per_group * tile_b

    nodes_idx = np.zeros((batch_pad,), np.int32)
    neigh_idx = np.zeros((batch_pad, num_sample), np.int32)
    cnt = np.zeros((batch_pad,), np.int32)
    agg_w = np.zeros((batch_pad, lane_pad), np.float32)
    for i, n in enumerate(nodes):
        nodes_idx[i] = int(n)
        neighs = sorted(adj_lists[int(n)])
        # TODO(synk): PyTorch MeanAggregator uses random.sample; we take the first
        # num_sample neighbours deterministically for reproducibility.
        sampled = neighs[:num_sample]
        c = len(sampled)
        cnt[i] = c
        for s, v in enumerate(sampled):
            neigh_idx[i, s] = v
            agg_w[i, s] = 1.0 / max(c, 1)
    return (jnp.asarray(nodes_idx), jnp.asarray(neigh_idx.reshape(-1)),
            jnp.asarray(cnt), jnp.asarray(agg_w), groups, tiles_per_group, batch_pad)


def xavier_uniform(key, shape):
    fan_out, fan_in = shape
    bound = float(np.sqrt(6.0 / (fan_in + fan_out)))
    return jax.random.uniform(key, shape, jnp.float32, -bound, bound)


if __name__ == "__main__":
    # Sizes chosen so the grid exercises: 2 core groups x 2 tiles, a full tile,
    # a partial tile and a fully-padded (skipped) tile.  gcn=False -> weight is
    # [embed_dim, 2*feat_dim].
    num_nodes = 512
    feat_dim = 16
    embed_dim = 32
    num_sample = 10
    batch = 300

    key = jax.random.PRNGKey(0)
    k_feat, k_w = jax.random.split(key)

    features = jax.random.normal(k_feat, (num_nodes, feat_dim), jnp.float32)
    weight = xavier_uniform(k_w, (embed_dim, 2 * feat_dim))

    # Pad features; pad + pre-transpose the fused weight to [2*F_PAD, E_PAD].
    feat_pad = jnp.zeros((num_nodes, F_PAD), jnp.float32).at[:, :feat_dim].set(features)
    w_pad = jnp.zeros((E_PAD, 2 * F_PAD), jnp.float32)
    w_pad = w_pad.at[:embed_dim, :feat_dim].set(weight[:, :feat_dim])                 # self half
    w_pad = w_pad.at[:embed_dim, F_PAD:F_PAD + feat_dim].set(weight[:, feat_dim:])    # neigh half
    w_t_f32 = w_pad.T                                   # [2*F_PAD, E_PAD]
    w_t_bf16 = w_t_f32.astype(jnp.bfloat16)

    # Deterministic adjacency lists: ring graph with +/-1, +/-2 neighbours.
    adj_lists = {
        i: {(i - 2) % num_nodes, (i - 1) % num_nodes,
            (i + 1) % num_nodes, (i + 2) % num_nodes}
        for i in range(num_nodes)
    }
    nodes = list(range(batch))

    (nodes_idx, neigh_flat, cnt, agg_w,
     groups, tiles_per_group, batch_pad) = build_gather_inputs(
        nodes, adj_lists, num_sample, TILE_B, lane_pad=128)

    out = encoder_forward(nodes_idx, neigh_flat, cnt, agg_w, feat_pad, w_t_bf16,
                          num_sample=num_sample, tile_b=TILE_B, batch=batch,
                          embed_dim=embed_dim, groups=groups,
                          tiles_per_group=tiles_per_group)
    out = jax.block_until_ready(out)

    # ---- reference (same math as PyTorch forward, mirroring the bf16 MXU inputs) ----
    nidx2d = np.asarray(neigh_flat).reshape(batch_pad, num_sample)[:batch]
    w_valid = np.asarray(agg_w)[:batch, :num_sample]
    feats_np = np.asarray(feat_pad)
    self_ref = feats_np[np.asarray(nodes_idx)[:batch]]                     # [batch, F_PAD]
    neigh_ref = np.einsum('bs,bsf->bf', w_valid, feats_np[nidx2d])         # [batch, F_PAD]
    combined = np.concatenate([self_ref, neigh_ref], axis=1)               # [batch, 2*F_PAD]

    def bf(x):
        return np.asarray(jnp.asarray(x).astype(jnp.bfloat16).astype(jnp.float32))

    ref_be = np.maximum(bf(combined) @ bf(np.asarray(w_t_f32)), 0.0)       # [batch, E_PAD]
    ref = ref_be[:, :embed_dim].T                                          # [embed_dim, batch]

    assert out.shape == (embed_dim, batch)
    np.testing.assert_allclose(np.asarray(out), ref, rtol=2e-2, atol=2e-2)

    print("KERNEL_OK")
</pallas_src>

<mosaic_0001>
module attributes {stable_mosaic.version = 11 : i64} {
  func.func @kernel(%arg0: i32, %arg1: i32, %arg2: memref<512xi32, #tpu.memory_space<smem>>, %arg3: memref<5120xi32, #tpu.memory_space<smem>>, %arg4: memref<512xi32, #tpu.memory_space<smem>>, %arg5: memref<128x128xf32, #tpu.memory_space<vmem>>, %arg6: memref<512x128xf32, #tpu.memory_space<any>>, %arg7: memref<256x128xbf16, #tpu.memory_space<vmem>>, %arg8: memref<128x128xf32, #tpu.memory_space<vmem>>, %arg9: memref<2x128x128xf32, #tpu.memory_space<vmem>>, %arg10: memref<2x10x128x128xf32, #tpu.memory_space<vmem>>, %arg11: memref<2x!tpu.dma_semaphore, #tpu.memory_space<semaphore_mem>>) attributes {dimension_semantics = [#tpu.dimension_semantics<parallel>, #tpu.dimension_semantics<arbitrary>], iteration_bounds = array<i64: 2, 2>, scalar_prefetch = 3 : i64, scratch_operands = 3 : i64, tpu.core_type = #tpu.core_type<tc>, window_params = [{transform_indices = @transform_0, window_bounds = array<i64: 128, 128>}, {}, {pipeline_mode = #tpu.pipeline_mode<synchronous>, transform_indices = @transform_2, window_bounds = array<i64: 256, 128>}, {transform_indices = @transform_3, window_bounds = array<i64: 128, 128>}]} {
    %c2_i32 = arith.constant 2 : i32
    %0 = arith.muli %arg0, %c2_i32 : i32
    %1 = arith.addi %0, %arg1 : i32
    %c2_i32_0 = arith.constant 2 : i32
    %c0_i32 = arith.constant 0 : i32
    %2 = arith.cmpi eq, %c2_i32_0, %c0_i32 : i32
    %c1_i32 = arith.constant 1 : i32
    %3 = arith.select %2, %c1_i32, %c2_i32_0 : i32
    %4 = arith.remsi %arg1, %3 : i32
    %c0_i32_1 = arith.constant 0 : i32
    %5 = arith.cmpi ne, %4, %c0_i32_1 : i32
    %c0_i32_2 = arith.constant 0 : i32
    %6 = arith.cmpi slt, %4, %c0_i32_2 : i32
    %c0_i32_3 = arith.constant 0 : i32
    %7 = arith.cmpi slt, %3, %c0_i32_3 : i32
    %8 = arith.xori %6, %7 : i1
    %9 = arith.andi %8, %5 : i1
    %10 = arith.addi %4, %3 : i32
    %11 = arith.select %9, %10, %4 : i32
    %c0_i32_4 = arith.constant 0 : i32
    %12 = arith.cmpi eq, %arg1, %c0_i32_4 : i32
    %13 = arith.extui %12 : i1 to i32
    %c0_i32_5 = arith.constant 0 : i32
    %14 = arith.cmpi ne, %13, %c0_i32_5 : i32
    scf.if %14 {
      %c128_i32_28 = arith.constant 128 : i32
      %40 = arith.muli %1, %c128_i32_28 : i32
      %c128_i32_29 = arith.constant 128 : i32
      %41 = arith.muli %1, %c128_i32_29 : i32
      %c300_i32_30 = arith.constant 300 : i32
      %42 = arith.subi %c300_i32_30, %41 : i32
      %c0_i32_31 = arith.constant 0 : i32
      %c128_i32_32 = arith.constant 128 : i32
      %43 = arith.maxsi %c0_i32_31, %42 : i32
      %44 = arith.minsi %c128_i32_32, %43 : i32
      %c0_i32_33 = arith.constant 0 : i32
      %45 = arith.subi %44, %c0_i32_33 : i32
      %c1_i32_34 = arith.constant 1 : i32
      %c1_i32_35 = arith.constant 1 : i32
      %46 = arith.subi %c1_i32_34, %c1_i32_35 : i32
      %47 = arith.addi %45, %46 : i32
      %c1_i32_36 = arith.constant 1 : i32
      %48 = arith.divsi %47, %c1_i32_36 : i32
      %c1_i32_37 = arith.constant 1 : i32
      %c0_i32_38 = arith.constant 0 : i32
      %c0_i32_39 = arith.constant 0 : i32
      %49 = arith.subi %48, %c0_i32_39 : i32
      %50 = arith.addi %c0_i32_39, %49 : i32
      %c1_i32_40 = arith.constant 1 : i32
      scf.for %arg12 = %c0_i32_39 to %50 step %c1_i32_40  : i32 {
        %51 = arith.muli %arg12, %c1_i32_37 : i32
        %52 = arith.addi %c0_i32_38, %51 : i32
        %53 = arith.addi %40, %52 : i32
        %54 = arith.index_cast %53 : i32 to index
        %55 = memref.load %arg2[%54] : memref<512xi32, #tpu.memory_space<smem>>
        %c0_i32_41 = arith.constant 0 : i32
        %56 = tpu.memref_slice %arg6[%55, %c0_i32_41] : memref<512x128xf32, #tpu.memory_space<any>> -> memref<1x128xf32, #tpu.memory_space<any>>
        %c0_i32_42 = arith.constant 0 : i32
        %57 = tpu.memref_slice %arg9[%11, %52, %c0_i32_42] : memref<2x128x128xf32, #tpu.memory_space<vmem>> -> memref<1x1x128xf32, #tpu.memory_space<vmem>>
        %58 = tpu.memref_squeeze %57 : memref<1x1x128xf32, #tpu.memory_space<vmem>> -> memref<1x128xf32, #tpu.memory_space<vmem>>
        %59 = tpu.memref_slice %arg11[%11] : memref<2x!tpu.dma_semaphore, #tpu.memory_space<semaphore_mem>> -> memref<1x!tpu.dma_semaphore, #tpu.memory_space<semaphore_mem>>
        %60 = tpu.memref_squeeze %59 : memref<1x!tpu.dma_semaphore, #tpu.memory_space<semaphore_mem>> -> memref<!tpu.dma_semaphore, #tpu.memory_space<semaphore_mem>>
        tpu.enqueue_dma source(%56 : memref<1x128xf32, #tpu.memory_space<any>>) target(%58 : memref<1x128xf32, #tpu.memory_space<vmem>>) target_semaphore(%60 : memref<!tpu.dma_semaphore, #tpu.memory_space<semaphore_mem>>)
        %61 = arith.addi %40, %52 : i32
        %62 = arith.index_cast %61 : i32 to index
        %63 = memref.load %arg4[%62] : memref<512xi32, #tpu.memory_space<smem>>
        %c0_i32_43 = arith.constant 0 : i32
        %64 = arith.cmpi sgt, %63, %c0_i32_43 : i32
        %65 = arith.extui %64 : i1 to i32
        %c0_i32_44 = arith.constant 0 : i32
        %66 = arith.cmpi ne, %65, %c0_i32_44 : i32
        scf.if %66 {
          %94 = arith.addi %40, %52 : i32
          %c10_i32 = arith.constant 10 : i32
          %95 = arith.muli %94, %c10_i32 : i32
          %c0_i32_56 = arith.constant 0 : i32
          %96 = arith.addi %95, %c0_i32_56 : i32
          %97 = arith.index_cast %96 : i32 to index
          %98 = memref.load %arg3[%97] : memref<5120xi32, #tpu.memory_space<smem>>
          %c0_i32_57 = arith.constant 0 : i32
          %c0_i32_58 = arith.constant 0 : i32
          %99 = tpu.memref_slice %arg6[%98, %c0_i32_58] : memref<512x128xf32, #tpu.memory_space<any>> -> memref<1x128xf32, #tpu.memory_space<any>>
          %c0_i32_59 = arith.constant 0 : i32
          %100 = tpu.memref_slice %arg10[%11, %c0_i32_57, %52, %c0_i32_59] : memref<2x10x128x128xf32, #tpu.memory_space<vmem>> -> memref<1x1x1x128xf32, #tpu.memory_space<vmem>>
          %101 = tpu.memref_squeeze %100 : memref<1x1x1x128xf32, #tpu.memory_space<vmem>> -> memref<1x128xf32, #tpu.memory_space<vmem>>
          %102 = tpu.memref_slice %arg11[%11] : memref<2x!tpu.dma_semaphore, #tpu.memory_space<semaphore_mem>> -> memref<1x!tpu.dma_semaphore, #tpu.memory_space<semaphore_mem>>
          %103 = tpu.memref_squeeze %102 : memref<1x!tpu.dma_semaphore, #tpu.memory_space<semaphore_mem>> -> memref<!tpu.dma_semaphore, #tpu.memory_space<semaphore_mem>>
          tpu.enqueue_dma source(%99 : memref<1x128xf32, #tpu.memory_space<any>>) target(%101 : memref<1x128xf32, #tpu.memory_space<vmem>>) target_semaphore(%103 : memref<!tpu.dma_semaphore, #tpu.memory_space<semaphore_mem>>)
        } else {
        }
        %c1_i32_45 = arith.constant 1 : i32
        %67 = arith.cmpi sgt, %63, %c1_i32_45 : i32
        %68 = arith.extui %67 : i1 to i32
        %c0_i32_46 = arith.constant 0 : i32
        %69 = arith.cmpi ne, %68, %c0_i32_46 : i32
        scf.if %69 {
          %94 = arith.addi %40, %52 : i32
          %c10_i32 = arith.constant 10 : i32
          %95 = arith.muli %94, %c10_i32 : i32
          %c1_i32_56 = arith.constant 1 : i32
          %96 = arith.addi %95, %c1_i32_56 : i32
          %97 = arith.index_cast %96 : i32 to index
          %98 = memref.load %arg3[%97] : memref<5120xi32, #tpu.memory_space<smem>>
          %c1_i32_57 = arith.constant 1 : i32
          %c0_i32_58 = arith.constant 0 : i32
          %99 = tpu.memref_slice %arg6[%98, %c0_i32_58] : memref<512x128xf32, #tpu.memory_space<any>> -> memref<1x128xf32, #tpu.memory_space<any>>
          %c0_i32_59 = arith.constant 0 : i32
          %100 = tpu.memref_slice %arg10[%11, %c1_i32_57, %52, %c0_i32_59] : memref<2x10x128x128xf32, #tpu.memory_space<vmem>> -> memref<1x1x1x128xf32, #tpu.memory_space<vmem>>
          %101 = tpu.memref_squeeze %100 : memref<1x1x1x128xf32, #tpu.memory_space<vmem>> -> memref<1x128xf32, #tpu.memory_space<vmem>>
          %102 = tpu.memref_slice %arg11[%11] : memref<2x!tpu.dma_semaphore, #tpu.memory_space<semaphore_mem>> -> memref<1x!tpu.dma_semaphore, #tpu.memory_space<semaphore_mem>>
          %103 = tpu.memref_squeeze %102 : memref<1x!tpu.dma_semaphore, #tpu.memory_space<semaphore_mem>> -> memref<!tpu.dma_semaphore, #tpu.memory_space<semaphore_mem>>
          tpu.enqueue_dma source(%99 : memref<1x128xf32, #tpu.memory_space<any>>) target(%101 : memref<1x128xf32, #tpu.memory_space<vmem>>) target_semaphore(%103 : memref<!tpu.dma_semaphore, #tpu.memory_space<semaphore_mem>>)
        } else {
        }
        %c2_i32_47 = arith.constant 2 : i32
        %70 = arith.cmpi sgt, %63, %c2_i32_47 : i32
        %71 = arith.extui %70 : i1 to i32
        %c0_i32_48 = arith.constant 0 : i32
        %72 = arith.cmpi ne, %71, %c0_i32_48 : i32
        scf.if %72 {
          %94 = arith.addi %40, %52 : i32
          %c10_i32 = arith.constant 10 : i32
          %95 = arith.muli %94, %c10_i32 : i32
          %c2_i32_56 = arith.constant 2 : i32
          %96 = arith.addi %95, %c2_i32_56 : i32
          %97 = arith.index_cast %96 : i32 to index
          %98 = memref.load %arg3[%97] : memref<5120xi32, #tpu.memory_space<smem>>
          %c2_i32_57 = arith.constant 2 : i32
          %c0_i32_58 = arith.constant 0 : i32
          %99 = tpu.memref_slice %arg6[%98, %c0_i32_58] : memref<512x128xf32, #tpu.memory_space<any>> -> memref<1x128xf32, #tpu.memory_space<any>>
          %c0_i32_59 = arith.constant 0 : i32
          %100 = tpu.memref_slice %arg10[%11, %c2_i32_57, %52, %c0_i32_59] : memref<2x10x128x128xf32, #tpu.memory_space<vmem>> -> memref<1x1x1x128xf32, #tpu.memory_space<vmem>>
          %101 = tpu.memref_squeeze %100 : memref<1x1x1x128xf32, #tpu.memory_space<vmem>> -> memref<1x128xf32, #tpu.memory_space<vmem>>
          %102 = tpu.memref_slice %arg11[%11] : memref<2x!tpu.dma_semaphore, #tpu.memory_space<semaphore_mem>> -> memref<1x!tpu.dma_semaphore, #tpu.memory_space<semaphore_mem>>
          %103 = tpu.memref_squeeze %102 : memref<1x!tpu.dma_semaphore, #tpu.memory_space<semaphore_mem>> -> memref<!tpu.dma_semaphore, #tpu.memory_space<semaphore_mem>>
          tpu.enqueue_dma source(%99 : memref<1x128xf32, #tpu.memory_space<any>>) target(%101 : memref<1x128xf32, #tpu.memory_space<vmem>>) target_semaphore(%103 : memref<!tpu.dma_semaphore, #tpu.memory_space<semaphore_mem>>)
        } else {
        }
        %c3_i32 = arith.constant 3 : i32
        %73 = arith.cmpi sgt, %63, %c3_i32 : i32
        %74 = arith.extui %73 : i1 to i32
        %c0_i32_49 = arith.constant 0 : i32
        %75 = arith.cmpi ne, %74, %c0_i32_49 : i32
        scf.if %75 {
          %94 = arith.addi %40, %52 : i32
          %c10_i32 = arith.constant 10 : i32
          %95 = arith.muli %94, %c10_i32 : i32
          %c3_i32_56 = arith.constant 3 : i32
          %96 = arith.addi %95, %c3_i32_56 : i32
          %97 = arith.index_cast %96 : i32 to index
          %98 = memref.load %arg3[%97] : memref<5120xi32, #tpu.memory_space<smem>>
          %c3_i32_57 = arith.constant 3 : i32
          %c0_i32_58 = arith.constant 0 : i32
          %99 = tpu.memref_slice %arg6[%98, %c0_i32_58] : memref<512x128xf32, #tpu.memory_space<any>> -> memref<1x128xf32, #tpu.memory_space<any>>
          %c0_i32_59 = arith.constant 0 : i32
          %100 = tpu.memref_slice %arg10[%11, %c3_i32_57, %52, %c0_i32_59] : memref<2x10x128x128xf32, #tpu.memory_space<vmem>> -> memref<1x1x1x128xf32, #tpu.memory_space<vmem>>
          %101 = tpu.memref_squeeze %100 : memref<1x1x1x128xf32, #tpu.memory_space<vmem>> -> memref<1x128xf32, #tpu.memory_space<vmem>>
          %102 = tpu.memref_slice %arg11[%11] : memref<2x!tpu.dma_semaphore, #tpu.memory_space<semaphore_mem>> -> memref<1x!tpu.dma_semaphore, #tpu.memory_space<semaphore_mem>>
          %103 = tpu.memref_squeeze %102 : memref<1x!tpu.dma_semaphore, #tpu.memory_space<semaphore_mem>> -> memref<!tpu.dma_semaphore, #tpu.memory_space<semaphore_mem>>
          tpu.enqueue_dma source(%99 : memref<1x128xf32, #tpu.memory_space<any>>) target(%101 : memref<1x128xf32, #tpu.memory_space<vmem>>) target_semaphore(%103 : memref<!tpu.dma_semaphore, #tpu.memory_space<semaphore_mem>>)
        } else {
        }
        %c4_i32 = arith.constant 4 : i32
        %76 = arith.cmpi sgt, %63, %c4_i32 : i32
        %77 = arith.extui %76 : i1 to i32
        %c0_i32_50 = arith.constant 0 : i32
        %78 = arith.cmpi ne, %77, %c0_i32_50 : i32
        scf.if %78 {
          %94 = arith.addi %40, %52 : i32
          %c10_i32 = arith.constant 10 : i32
          %95 = arith.muli %94, %c10_i32 : i32
          %c4_i32_56 = arith.constant 4 : i32
          %96 = arith.addi %95, %c4_i32_56 : i32
          %97 = arith.index_cast %96 : i32 to index
          %98 = memref.load %arg3[%97] : memref<5120xi32, #tpu.memory_space<smem>>
          %c4_i32_57 = arith.constant 4 : i32
          %c0_i32_58 = arith.constant 0 : i32
          %99 = tpu.memref_slice %arg6[%98, %c0_i32_58] : memref<512x128xf32, #tpu.memory_space<any>> -> memref<1x128xf32, #tpu.memory_space<any>>
          %c0_i32_59 = arith.constant 0 : i32
          %100 = tpu.memref_slice %arg10[%11, %c4_i32_57, %52, %c0_i32_59] : memref<2x10x128x128xf32, #tpu.memory_space<vmem>> -> memref<1x1x1x128xf32, #tpu.memory_space<vmem>>
          %101 = tpu.memref_squeeze %100 : memref<1x1x1x128xf32, #tpu.memory_space<vmem>> -> memref<1x128xf32, #tpu.memory_space<vmem>>
          %102 = tpu.memref_slice %arg11[%11] : memref<2x!tpu.dma_semaphore, #tpu.memory_space<semaphore_mem>> -> memref<1x!tpu.dma_semaphore, #tpu.memory_space<semaphore_mem>>
          %103 = tpu.memref_squeeze %102 : memref<1x!tpu.dma_semaphore, #tpu.memory_space<semaphore_mem>> -> memref<!tpu.dma_semaphore, #tpu.memory_space<semaphore_mem>>
          tpu.enqueue_dma source(%99 : memref<1x128xf32, #tpu.memory_space<any>>) target(%101 : memref<1x128xf32, #tpu.memory_space<vmem>>) target_semaphore(%103 : memref<!tpu.dma_semaphore, #tpu.memory_space<semaphore_mem>>)
        } else {
        }
        %c5_i32 = arith.constant 5 : i32
        %79 = arith.cmpi sgt, %63, %c5_i32 : i32
        %80 = arith.extui %79 : i1 to i32
        %c0_i32_51 = arith.constant 0 : i32
        %81 = arith.cmpi ne, %80, %c0_i32_51 : i32
        scf.if %81 {
          %94 = arith.addi %40, %52 : i32
          %c10_i32 = arith.constant 10 : i32
          %95 = arith.muli %94, %c10_i32 : i32
          %c5_i32_56 = arith.constant 5 : i32
          %96 = arith.addi %95, %c5_i32_56 : i32
          %97 = arith.index_cast %96 : i32 to index
          %98 = memref.load %arg3[%97] : memref<5120xi32, #tpu.memory_space<smem>>
          %c5_i32_57 = arith.constant 5 : i32
          %c0_i32_58 = arith.constant 0 : i32
          %99 = tpu.memref_slice %arg6[%98, %c0_i32_58] : memref<512x128xf32, #tpu.memory_space<any>> -> memref<1x128xf32, #tpu.memory_space<any>>
          %c0_i32_59 = arith.constant 0 : i32
          %100 = tpu.memref_slice %arg10[%11, %c5_i32_57, %52, %c0_i32_59] : memref<2x10x128x128xf32, #tpu.memory_space<vmem>> -> memref<1x1x1x128xf32, #tpu.memory_space<vmem>>
          %101 = tpu.memref_squeeze %100 : memref<1x1x1x128xf32, #tpu.memory_space<vmem>> -> memref<1x128xf32, #tpu.memory_space<vmem>>
          %102 = tpu.memref_slice %arg11[%11] : memref<2x!tpu.dma_semaphore, #tpu.memory_space<semaphore_mem>> -> memref<1x!tpu.dma_semaphore, #tpu.memory_space<semaphore_mem>>
          %103 = tpu.memref_squeeze %102 : memref<1x!tpu.dma_semaphore, #tpu.memory_space<semaphore_mem>> -> memref<!tpu.dma_semaphore, #tpu.memory_space<semaphore_mem>>
          tpu.enqueue_dma source(%99 : memref<1x128xf32, #tpu.memory_space<any>>) target(%101 : memref<1x128xf32, #tpu.memory_space<vmem>>) target_semaphore(%103 : memref<!tpu.dma_semaphore, #tpu.memory_space<semaphore_mem>>)
        } else {
        }
        %c6_i32 = arith.constant 6 : i32
        %82 = arith.cmpi sgt, %63, %c6_i32 : i32
        %83 = arith.extui %82 : i1 to i32
        %c0_i32_52 = arith.constant 0 : i32
        %84 = arith.cmpi ne, %83, %c0_i32_52 : i32
        scf.if %84 {
          %94 = arith.addi %40, %52 : i32
          %c10_i32 = arith.constant 10 : i32
          %95 = arith.muli %94, %c10_i32 : i32
          %c6_i32_56 = arith.constant 6 : i32
          %96 = arith.addi %95, %c6_i32_56 : i32
          %97 = arith.index_cast %96 : i32 to index
          %98 = memref.load %arg3[%97] : memref<5120xi32, #tpu.memory_space<smem>>
          %c6_i32_57 = arith.constant 6 : i32
          %c0_i32_58 = arith.constant 0 : i32
          %99 = tpu.memref_slice %arg6[%98, %c0_i32_58] : memref<512x128xf32, #tpu.memory_space<any>> -> memref<1x128xf32, #tpu.memory_space<any>>
          %c0_i32_59 = arith.constant 0 : i32
          %100 = tpu.memref_slice %arg10[%11, %c6_i32_57, %52, %c0_i32_59] : memref<2x10x128x128xf32, #tpu.memory_space<vmem>> -> memref<1x1x1x128xf32, #tpu.memory_space<vmem>>
          %101 = tpu.memref_squeeze %100 : memref<1x1x1x128xf32, #tpu.memory_space<vmem>> -> memref<1x128xf32, #tpu.memory_space<vmem>>
          %102 = tpu.memref_slice %arg11[%11] : memref<2x!tpu.dma_semaphore, #tpu.memory_space<semaphore_mem>> -> memref<1x!tpu.dma_semaphore, #tpu.memory_space<semaphore_mem>>
          %103 = tpu.memref_squeeze %102 : memref<1x!tpu.dma_semaphore, #tpu.memory_space<semaphore_mem>> -> memref<!tpu.dma_semaphore, #tpu.memory_space<semaphore_mem>>
          tpu.enqueue_dma source(%99 : memref<1x128xf32, #tpu.memory_space<any>>) target(%101 : memref<1x128xf32, #tpu.memory_space<vmem>>) target_semaphore(%103 : memref<!tpu.dma_semaphore, #tpu.memory_space<semaphore_mem>>)
        } else {
        }
        %c7_i32 = arith.constant 7 : i32
        %85 = arith.cmpi sgt, %63, %c7_i32 : i32
        %86 = arith.extui %85 : i1 to i32
        %c0_i32_53 = arith.constant 0 : i32
        %87 = arith.cmpi ne, %86, %c0_i32_53 : i32
        scf.if %87 {
          %94 = arith.addi %40, %52 : i32
          %c10_i32 = arith.constant 10 : i32
          %95 = arith.muli %94, %c10_i32 : i32
          %c7_i32_56 = arith.constant 7 : i32
          %96 = arith.addi %95, %c7_i32_56 : i32
          %97 = arith.index_cast %96 : i32 to index
          %98 = memref.load %arg3[%97] : memref<5120xi32, #tpu.memory_space<smem>>
          %c7_i32_57 = arith.constant 7 : i32
          %c0_i32_58 = arith.constant 0 : i32
          %99 = tpu.memref_slice %arg6[%98, %c0_i32_58] : memref<512x128xf32, #tpu.memory_space<any>> -> memref<1x128xf32, #tpu.memory_space<any>>
          %c0_i32_59 = arith.constant 0 : i32
          %100 = tpu.memref_slice %arg10[%11, %c7_i32_57, %52, %c0_i32_59] : memref<2x10x128x128xf32, #tpu.memory_space<vmem>> -> memref<1x1x1x128xf32, #tpu.memory_space<vmem>>
          %101 = tpu.memref_squeeze %100 : memref<1x1x1x128xf32, #tpu.memory_space<vmem>> -> memref<1x128xf32, #tpu.memory_space<vmem>>
          %102 = tpu.memref_slice %arg11[%11] : memref<2x!tpu.dma_semaphore, #tpu.memory_space<semaphore_mem>> -> memref<1x!tpu.dma_semaphore, #tpu.memory_space<semaphore_mem>>
          %103 = tpu.memref_squeeze %102 : memref<1x!tpu.dma_semaphore, #tpu.memory_space<semaphore_mem>> -> memref<!tpu.dma_semaphore, #tpu.memory_space<semaphore_mem>>
          tpu.enqueue_dma source(%99 : memref<1x128xf32, #tpu.memory_space<any>>) target(%101 : memref<1x128xf32, #tpu.memory_space<vmem>>) target_semaphore(%103 : memref<!tpu.dma_semaphore, #tpu.memory_space<semaphore_mem>>)
        } else {
        }
        %c8_i32 = arith.constant 8 : i32
        %88 = arith.cmpi sgt, %63, %c8_i32 : i32
        %89 = arith.extui %88 : i1 to i32
        %c0_i32_54 = arith.constant 0 : i32
        %90 = arith.cmpi ne, %89, %c0_i32_54 : i32
        scf.if %90 {
          %94 = arith.addi %40, %52 : i32
          %c10_i32 = arith.constant 10 : i32
          %95 = arith.muli %94, %c10_i32 : i32
          %c8_i32_56 = arith.constant 8 : i32
          %96 = arith.addi %95, %c8_i32_56 : i32
          %97 = arith.index_cast %96 : i32 to index
          %98 = memref.load %arg3[%97] : memref<5120xi32, #tpu.memory_space<smem>>
          %c8_i32_57 = arith.constant 8 : i32
          %c0_i32_58 = arith.constant 0 : i32
          %99 = tpu.memref_slice %arg6[%98, %c0_i32_58] : memref<512x128xf32, #tpu.memory_space<any>> -> memref<1x128xf32, #tpu.memory_space<any>>
          %c0_i32_59 = arith.constant 0 : i32
          %100 = tpu.memref_slice %arg10[%11, %c8_i32_57, %52, %c0_i32_59] : memref<2x10x128x128xf32, #tpu.memory_space<vmem>> -> memref<1x1x1x128xf32, #tpu.memory_space<vmem>>
          %101 = tpu.memref_squeeze %100 : memref<1x1x1x128xf32, #tpu.memory_space<vmem>> -> memref<1x128xf32, #tpu.memory_space<vmem>>
          %102 = tpu.memref_slice %arg11[%11] : memref<2x!tpu.dma_semaphore, #tpu.memory_space<semaphore_mem>> -> memref<1x!tpu.dma_semaphore, #tpu.memory_space<semaphore_mem>>
          %103 = tpu.memref_squeeze %102 : memref<1x!tpu.dma_semaphore, #tpu.memory_space<semaphore_mem>> -> memref<!tpu.dma_semaphore, #tpu.memory_space<semaphore_mem>>
          tpu.enqueue_dma source(%99 : memref<1x128xf32, #tpu.memory_space<any>>) target(%101 : memref<1x128xf32, #tpu.memory_space<vmem>>) target_semaphore(%103 : memref<!tpu.dma_semaphore, #tpu.memory_space<semaphore_mem>>)
        } else {
        }
        %c9_i32 = arith.constant 9 : i32
        %91 = arith.cmpi sgt, %63, %c9_i32 : i32
        %92 = arith.extui %91 : i1 to i32
        %c0_i32_55 = arith.constant 0 : i32
        %93 = arith.cmpi ne, %92, %c0_i32_55 : i32
        scf.if %93 {
          %94 = arith.addi %40, %52 : i32
          %c10_i32 = arith.constant 10 : i32
          %95 = arith.muli %94, %c10_i32 : i32
          %c9_i32_56 = arith.constant 9 : i32
          %96 = arith.addi %95, %c9_i32_56 : i32
          %97 = arith.index_cast %96 : i32 to index
          %98 = memref.load %arg3[%97] : memref<5120xi32, #tpu.memory_space<smem>>
          %c9_i32_57 = arith.constant 9 : i32
          %c0_i32_58 = arith.constant 0 : i32
          %99 = tpu.memref_slice %arg6[%98, %c0_i32_58] : memref<512x128xf32, #tpu.memory_space<any>> -> memref<1x128xf32, #tpu.memory_space<any>>
          %c0_i32_59 = arith.constant 0 : i32
          %100 = tpu.memref_slice %arg10[%11, %c9_i32_57, %52, %c0_i32_59] : memref<2x10x128x128xf32, #tpu.memory_space<vmem>> -> memref<1x1x1x128xf32, #tpu.memory_space<vmem>>
          %101 = tpu.memref_squeeze %100 : memref<1x1x1x128xf32, #tpu.memory_space<vmem>> -> memref<1x128xf32, #tpu.memory_space<vmem>>
          %102 = tpu.memref_slice %arg11[%11] : memref<2x!tpu.dma_semaphore, #tpu.memory_space<semaphore_mem>> -> memref<1x!tpu.dma_semaphore, #tpu.memory_space<semaphore_mem>>
          %103 = tpu.memref_squeeze %102 : memref<1x!tpu.dma_semaphore, #tpu.memory_space<semaphore_mem>> -> memref<!tpu.dma_semaphore, #tpu.memory_space<semaphore_mem>>
          tpu.enqueue_dma source(%99 : memref<1x128xf32, #tpu.memory_space<any>>) target(%101 : memref<1x128xf32, #tpu.memory_space<vmem>>) target_semaphore(%103 : memref<!tpu.dma_semaphore, #tpu.memory_space<semaphore_mem>>)
        } else {
        }
      }
    } else {
    }
    %c128_i32 = arith.constant 128 : i32
    %15 = arith.muli %1, %c128_i32 : i32
    %c128_i32_6 = arith.constant 128 : i32
    %16 = arith.muli %1, %c128_i32_6 : i32
    %c300_i32 = arith.constant 300 : i32
    %17 = arith.subi %c300_i32, %16 : i32
    %c0_i32_7 = arith.constant 0 : i32
    %c128_i32_8 = arith.constant 128 : i32
    %18 = arith.maxsi %c0_i32_7, %17 : i32
    %19 = arith.minsi %c128_i32_8, %18 : i32
    %c0_i32_9 = arith.constant 0 : i32
    %20 = arith.subi %19, %c0_i32_9 : i32
    %c1_i32_10 = arith.constant 1 : i32
    %c1_i32_11 = arith.constant 1 : i32
    %21 = arith.subi %c1_i32_10, %c1_i32_11 : i32
    %22 = arith.addi %20, %21 : i32
    %c1_i32_12 = arith.constant 1 : i32
    %23 = arith.divsi %22, %c1_i32_12 : i32
    %c1_i32_13 = arith.constant 1 : i32
    %c0_i32_14 = arith.constant 0 : i32
    %c0_i32_15 = arith.constant 0 : i32
    %24 = arith.subi %23, %c0_i32_15 : i32
    %25 = arith.addi %c0_i32_15, %24 : i32
    %c1_i32_16 = arith.constant 1 : i32
    scf.for %arg12 = %c0_i32_15 to %25 step %c1_i32_16  : i32 {
      %40 = arith.muli %arg12, %c1_i32_13 : i32
      %41 = arith.addi %c0_i32_14, %40 : i32
      %42 = arith.addi %15, %41 : i32
      %43 = arith.index_cast %42 : i32 to index
      %44 = memref.load %arg2[%43] : memref<512xi32, #tpu.memory_space<smem>>
      %c0_i32_28 = arith.constant 0 : i32
      %45 = tpu.memref_slice %arg6[%44, %c0_i32_28] : memref<512x128xf32, #tpu.memory_space<any>> -> memref<1x128xf32, #tpu.memory_space<any>>
      %c0_i32_29 = arith.constant 0 : i32
      %46 = tpu.memref_slice %arg9[%11, %41, %c0_i32_29] : memref<2x128x128xf32, #tpu.memory_space<vmem>> -> memref<1x1x128xf32, #tpu.memory_space<vmem>>
      %47 = tpu.memref_squeeze %46 : memref<1x1x128xf32, #tpu.memory_space<vmem>> -> memref<1x128xf32, #tpu.memory_space<vmem>>
      %48 = tpu.memref_slice %arg11[%11] : memref<2x!tpu.dma_semaphore, #tpu.memory_space<semaphore_mem>> -> memref<1x!tpu.dma_semaphore, #tpu.memory_space<semaphore_mem>>
      %49 = tpu.memref_squeeze %48 : memref<1x!tpu.dma_semaphore, #tpu.memory_space<semaphore_mem>> -> memref<!tpu.dma_semaphore, #tpu.memory_space<semaphore_mem>>
      tpu.wait_dma2 semaphore(%49 : memref<!tpu.dma_semaphore, #tpu.memory_space<semaphore_mem>>) src(%45 : memref<1x128xf32, #tpu.memory_space<any>>) dst(%47 : memref<1x128xf32, #tpu.memory_space<vmem>>)
      %50 = arith.addi %15, %41 : i32
      %51 = arith.index_cast %50 : i32 to index
      %52 = memref.load %arg4[%51] : memref<512xi32, #tpu.memory_space<smem>>
      %c0_i32_30 = arith.constant 0 : i32
      %53 = arith.cmpi sgt, %52, %c0_i32_30 : i32
      %54 = arith.extui %53 : i1 to i32
      %c0_i32_31 = arith.constant 0 : i32
      %55 = arith.cmpi ne, %54, %c0_i32_31 : i32
      scf.if %55 {
        %83 = arith.addi %15, %41 : i32
        %c10_i32 = arith.constant 10 : i32
        %84 = arith.muli %83, %c10_i32 : i32
        %c0_i32_43 = arith.constant 0 : i32
        %85 = arith.addi %84, %c0_i32_43 : i32
        %86 = arith.index_cast %85 : i32 to index
        %87 = memref.load %arg3[%86] : memref<5120xi32, #tpu.memory_space<smem>>
        %c0_i32_44 = arith.constant 0 : i32
        %c0_i32_45 = arith.constant 0 : i32
        %88 = tpu.memref_slice %arg6[%87, %c0_i32_45] : memref<512x128xf32, #tpu.memory_space<any>> -> memref<1x128xf32, #tpu.memory_space<any>>
        %c0_i32_46 = arith.constant 0 : i32
        %89 = tpu.memref_slice %arg10[%11, %c0_i32_44, %41, %c0_i32_46] : memref<2x10x128x128xf32, #tpu.memory_space<vmem>> -> memref<1x1x1x128xf32, #tpu.memory_space<vmem>>
        %90 = tpu.memref_squeeze %89 : memref<1x1x1x128xf32, #tpu.memory_space<vmem>> -> memref<1x128xf32, #tpu.memory_space<vmem>>
        %91 = tpu.memref_slice %arg11[%11] : memref<2x!tpu.dma_semaphore, #tpu.memory_space<semaphore_mem>> -> memref<1x!tpu.dma_semaphore, #tpu.memory_space<semaphore_mem>>
        %92 = tpu.memref_squeeze %91 : memref<1x!tpu.dma_semaphore, #tpu.memory_space<semaphore_mem>> -> memref<!tpu.dma_semaphore, #tpu.memory_space<semaphore_mem>>
        tpu.wait_dma2 semaphore(%92 : memref<!tpu.dma_semaphore, #tpu.memory_space<semaphore_mem>>) src(%88 : memref<1x128xf32, #tpu.memory_space<any>>) dst(%90 : memref<1x128xf32, #tpu.memory_space<vmem>>)
      } else {
      }
      %c1_i32_32 = arith.constant 1 : i32
      %56 = arith.cmpi sgt, %52, %c1_i32_32 : i32
      %57 = arith.extui %56 : i1 to i32
      %c0_i32_33 = arith.constant 0 : i32
      %58 = arith.cmpi ne, %57, %c0_i32_33 : i32
      scf.if %58 {
        %83 = arith.addi %15, %41 : i32
        %c10_i32 = arith.constant 10 : i32
        %84 = arith.muli %83, %c10_i32 : i32
        %c1_i32_43 = arith.constant 1 : i32
        %85 = arith.addi %84, %c1_i32_43 : i32
        %86 = arith.index_cast %85 : i32 to index
        %87 = memref.load %arg3[%86] : memref<5120xi32, #tpu.memory_space<smem>>
        %c1_i32_44 = arith.constant 1 : i32
        %c0_i32_45 = arith.constant 0 : i32
        %88 = tpu.memref_slice %arg6[%87, %c0_i32_45] : memref<512x128xf32, #tpu.memory_space<any>> -> memref<1x128xf32, #tpu.memory_space<any>>
        %c0_i32_46 = arith.constant 0 : i32
        %89 = tpu.memref_slice %arg10[%11, %c1_i32_44, %41, %c0_i32_46] : memref<2x10x128x128xf32, #tpu.memory_space<vmem>> -> memref<1x1x1x128xf32, #tpu.memory_space<vmem>>
        %90 = tpu.memref_squeeze %89 : memref<1x1x1x128xf32, #tpu.memory_space<vmem>> -> memref<1x128xf32, #tpu.memory_space<vmem>>
        %91 = tpu.memref_slice %arg11[%11] : memref<2x!tpu.dma_semaphore, #tpu.memory_space<semaphore_mem>> -> memref<1x!tpu.dma_semaphore, #tpu.memory_space<semaphore_mem>>
        %92 = tpu.memref_squeeze %91 : memref<1x!tpu.dma_semaphore, #tpu.memory_space<semaphore_mem>> -> memref<!tpu.dma_semaphore, #tpu.memory_space<semaphore_mem>>
        tpu.wait_dma2 semaphore(%92 : memref<!tpu.dma_semaphore, #tpu.memory_space<semaphore_mem>>) src(%88 : memref<1x128xf32, #tpu.memory_space<any>>) dst(%90 : memref<1x128xf32, #tpu.memory_space<vmem>>)
      } else {
      }
      %c2_i32_34 = arith.constant 2 : i32
      %59 = arith.cmpi sgt, %52, %c2_i32_34 : i32
      %60 = arith.extui %59 : i1 to i32
      %c0_i32_35 = arith.constant 0 : i32
      %61 = arith.cmpi ne, %60, %c0_i32_35 : i32
      scf.if %61 {
        %83 = arith.addi %15, %41 : i32
        %c10_i32 = arith.constant 10 : i32
        %84 = arith.muli %83, %c10_i32 : i32
        %c2_i32_43 = arith.constant 2 : i32
        %85 = arith.addi %84, %c2_i32_43 : i32
        %86 = arith.index_cast %85 : i32 to index
        %87 = memref.load %arg3[%86] : memref<5120xi32, #tpu.memory_space<smem>>
        %c2_i32_44 = arith.constant 2 : i32
        %c0_i32_45 = arith.constant 0 : i32
        %88 = tpu.memref_slice %arg6[%87, %c0_i32_45] : memref<512x128xf32, #tpu.memory_space<any>> -> memref<1x128xf32, #tpu.memory_space<any>>
        %c0_i32_46 = arith.constant 0 : i32
        %89 = tpu.memref_slice %arg10[%11, %c2_i32_44, %41, %c0_i32_46] : memref<2x10x128x128xf32, #tpu.memory_space<vmem>> -> memref<1x1x1x128xf32, #tpu.memory_space<vmem>>
        %90 = tpu.memref_squeeze %89 : memref<1x1x1x128xf32, #tpu.memory_space<vmem>> -> memref<1x128xf32, #tpu.memory_space<vmem>>
        %91 = tpu.memref_slice %arg11[%11] : memref<2x!tpu.dma_semaphore, #tpu.memory_space<semaphore_mem>> -> memref<1x!tpu.dma_semaphore, #tpu.memory_space<semaphore_mem>>
        %92 = tpu.memref_squeeze %91 : memref<1x!tpu.dma_semaphore, #tpu.memory_space<semaphore_mem>> -> memref<!tpu.dma_semaphore, #tpu.memory_space<semaphore_mem>>
        tpu.wait_dma2 semaphore(%92 : memref<!tpu.dma_semaphore, #tpu.memory_space<semaphore_mem>>) src(%88 : memref<1x128xf32, #tpu.memory_space<any>>) dst(%90 : memref<1x128xf32, #tpu.memory_space<vmem>>)
      } else {
      }
      %c3_i32 = arith.constant 3 : i32
      %62 = arith.cmpi sgt, %52, %c3_i32 : i32
      %63 = arith.extui %62 : i1 to i32
      %c0_i32_36 = arith.constant 0 : i32
      %64 = arith.cmpi ne, %63, %c0_i32_36 : i32
      scf.if %64 {
        %83 = arith.addi %15, %41 : i32
        %c10_i32 = arith.constant 10 : i32
        %84 = arith.muli %83, %c10_i32 : i32
        %c3_i32_43 = arith.constant 3 : i32
        %85 = arith.addi %84, %c3_i32_43 : i32
        %86 = arith.index_cast %85 : i32 to index
        %87 = memref.load %arg3[%86] : memref<5120xi32, #tpu.memory_space<smem>>
        %c3_i32_44 = arith.constant 3 : i32
        %c0_i32_45 = arith.constant 0 : i32
        %88 = tpu.memref_slice %arg6[%87, %c0_i32_45] : memref<512x128xf32, #tpu.memory_space<any>> -> memref<1x128xf32, #tpu.memory_space<any>>
        %c0_i32_46 = arith.constant 0 : i32
        %89 = tpu.memref_slice %arg10[%11, %c3_i32_44, %41, %c0_i32_46] : memref<2x10x128x128xf32, #tpu.memory_space<vmem>> -> memref<1x1x1x128xf32, #tpu.memory_space<vmem>>
        %90 = tpu.memref_squeeze %89 : memref<1x1x1x128xf32, #tpu.memory_space<vmem>> -> memref<1x128xf32, #tpu.memory_space<vmem>>
        %91 = tpu.memref_slice %arg11[%11] : memref<2x!tpu.dma_semaphore, #tpu.memory_space<semaphore_mem>> -> memref<1x!tpu.dma_semaphore, #tpu.memory_space<semaphore_mem>>
        %92 = tpu.memref_squeeze %91 : memref<1x!tpu.dma_semaphore, #tpu.memory_space<semaphore_mem>> -> memref<!tpu.dma_semaphore, #tpu.memory_space<semaphore_mem>>
        tpu.wait_dma2 semaphore(%92 : memref<!tpu.dma_semaphore, #tpu.memory_space<semaphore_mem>>) src(%88 : memref<1x128xf32, #tpu.memory_space<any>>) dst(%90 : memref<1x128xf32, #tpu.memory_space<vmem>>)
      } else {
      }
      %c4_i32 = arith.constant 4 : i32
      %65 = arith.cmpi sgt, %52, %c4_i32 : i32
      %66 = arith.extui %65 : i1 to i32
      %c0_i32_37 = arith.constant 0 : i32
      %67 = arith.cmpi ne, %66, %c0_i32_37 : i32
      scf.if %67 {
        %83 = arith.addi %15, %41 : i32
        %c10_i32 = arith.constant 10 : i32
        %84 = arith.muli %83, %c10_i32 : i32
        %c4_i32_43 = arith.constant 4 : i32
        %85 = arith.addi %84, %c4_i32_43 : i32
        %86 = arith.index_cast %85 : i32 to index
        %87 = memref.load %arg3[%86] : memref<5120xi32, #tpu.memory_space<smem>>
        %c4_i32_44 = arith.constant 4 : i32
        %c0_i32_45 = arith.constant 0 : i32
        %88 = tpu.memref_slice %arg6[%87, %c0_i32_45] : memref<512x128xf32, #tpu.memory_space<any>> -> memref<1x128xf32, #tpu.memory_space<any>>
        %c0_i32_46 = arith.constant 0 : i32
        %89 = tpu.memref_slice %arg10[%11, %c4_i32_44, %41, %c0_i32_46] : memref<2x10x128x128xf32, #tpu.memory_space<vmem>> -> memref<1x1x1x128xf32, #tpu.memory_space<vmem>>
        %90 = tpu.memref_squeeze %89 : memref<1x1x1x128xf32, #tpu.memory_space<vmem>> -> memref<1x128xf32, #tpu.memory_space<vmem>>
        %91 = tpu.memref_slice %arg11[%11] : memref<2x!tpu.dma_semaphore, #tpu.memory_space<semaphore_mem>> -> memref<1x!tpu.dma_semaphore, #tpu.memory_space<semaphore_mem>>
        %92 = tpu.memref_squeeze %91 : memref<1x!tpu.dma_semaphore, #tpu.memory_space<semaphore_mem>> -> memref<!tpu.dma_semaphore, #tpu.memory_space<semaphore_mem>>
        tpu.wait_dma2 semaphore(%92 : memref<!tpu.dma_semaphore, #tpu.memory_space<semaphore_mem>>) src(%88 : memref<1x128xf32, #tpu.memory_space<any>>) dst(%90 : memref<1x128xf32, #tpu.memory_space<vmem>>)
      } else {
      }
      %c5_i32 = arith.constant 5 : i32
      %68 = arith.cmpi sgt, %52, %c5_i32 : i32
      %69 = arith.extui %68 : i1 to i32
      %c0_i32_38 = arith.constant 0 : i32
      %70 = arith.cmpi ne, %69, %c0_i32_38 : i32
      scf.if %70 {
        %83 = arith.addi %15, %41 : i32
        %c10_i32 = arith.constant 10 : i32
        %84 = arith.muli %83, %c10_i32 : i32
        %c5_i32_43 = arith.constant 5 : i32
        %85 = arith.addi %84, %c5_i32_43 : i32
        %86 = arith.index_cast %85 : i32 to index
        %87 = memref.load %arg3[%86] : memref<5120xi32, #tpu.memory_space<smem>>
        %c5_i32_44 = arith.constant 5 : i32
        %c0_i32_45 = arith.constant 0 : i32
        %88 = tpu.memref_slice %arg6[%87, %c0_i32_45] : memref<512x128xf32, #tpu.memory_space<any>> -> memref<1x128xf32, #tpu.memory_space<any>>
        %c0_i32_46 = arith.constant 0 : i32
        %89 = tpu.memref_slice %arg10[%11, %c5_i32_44, %41, %c0_i32_46] : memref<2x10x128x128xf32, #tpu.memory_space<vmem>> -> memref<1x1x1x128xf32, #tpu.memory_space<vmem>>
        %90 = tpu.memref_squeeze %89 : memref<1x1x1x128xf32, #tpu.memory_space<vmem>> -> memref<1x128xf32, #tpu.memory_space<vmem>>
        %91 = tpu.memref_slice %arg11[%11] : memref<2x!tpu.dma_semaphore, #tpu.memory_space<semaphore_mem>> -> memref<1x!tpu.dma_semaphore, #tpu.memory_space<semaphore_mem>>
        %92 = tpu.memref_squeeze %91 : memref<1x!tpu.dma_semaphore, #tpu.memory_space<semaphore_mem>> -> memref<!tpu.dma_semaphore, #tpu.memory_space<semaphore_mem>>
        tpu.wait_dma2 semaphore(%92 : memref<!tpu.dma_semaphore, #tpu.memory_space<semaphore_mem>>) src(%88 : memref<1x128xf32, #tpu.memory_space<any>>) dst(%90 : memref<1x128xf32, #tpu.memory_space<vmem>>)
      } else {
      }
      %c6_i32 = arith.constant 6 : i32
      %71 = arith.cmpi sgt, %52, %c6_i32 : i32
      %72 = arith.extui %71 : i1 to i32
      %c0_i32_39 = arith.constant 0 : i32
      %73 = arith.cmpi ne, %72, %c0_i32_39 : i32
      scf.if %73 {
        %83 = arith.addi %15, %41 : i32
        %c10_i32 = arith.constant 10 : i32
        %84 = arith.muli %83, %c10_i32 : i32
        %c6_i32_43 = arith.constant 6 : i32
        %85 = arith.addi %84, %c6_i32_43 : i32
        %86 = arith.index_cast %85 : i32 to index
        %87 = memref.load %arg3[%86] : memref<5120xi32, #tpu.memory_space<smem>>
        %c6_i32_44 = arith.constant 6 : i32
        %c0_i32_45 = arith.constant 0 : i32
        %88 = tpu.memref_slice %arg6[%87, %c0_i32_45] : memref<512x128xf32, #tpu.memory_space<any>> -> memref<1x128xf32, #tpu.memory_space<any>>
        %c0_i32_46 = arith.constant 0 : i32
        %89 = tpu.memref_slice %arg10[%11, %c6_i32_44, %41, %c0_i32_46] : memref<2x10x128x128xf32, #tpu.memory_space<vmem>> -> memref<1x1x1x128xf32, #tpu.memory_space<vmem>>
        %90 = tpu.memref_squeeze %89 : memref<1x1x1x128xf32, #tpu.memory_space<vmem>> -> memref<1x128xf32, #tpu.memory_space<vmem>>
        %91 = tpu.memref_slice %arg11[%11] : memref<2x!tpu.dma_semaphore, #tpu.memory_space<semaphore_mem>> -> memref<1x!tpu.dma_semaphore, #tpu.memory_space<semaphore_mem>>
        %92 = tpu.memref_squeeze %91 : memref<1x!tpu.dma_semaphore, #tpu.memory_space<semaphore_mem>> -> memref<!tpu.dma_semaphore, #tpu.memory_space<semaphore_mem>>
        tpu.wait_dma2 semaphore(%92 : memref<!tpu.dma_semaphore, #tpu.memory_space<semaphore_mem>>) src(%88 : memref<1x128xf32, #tpu.memory_space<any>>) dst(%90 : memref<1x128xf32, #tpu.memory_space<vmem>>)
      } else {
      }
      %c7_i32 = arith.constant 7 : i32
      %74 = arith.cmpi sgt, %52, %c7_i32 : i32
      %75 = arith.extui %74 : i1 to i32
      %c0_i32_40 = arith.constant 0 : i32
      %76 = arith.cmpi ne, %75, %c0_i32_40 : i32
      scf.if %76 {
        %83 = arith.addi %15, %41 : i32
        %c10_i32 = arith.constant 10 : i32
        %84 = arith.muli %83, %c10_i32 : i32
        %c7_i32_43 = arith.constant 7 : i32
        %85 = arith.addi %84, %c7_i32_43 : i32
        %86 = arith.index_cast %85 : i32 to index
        %87 = memref.load %arg3[%86] : memref<5120xi32, #tpu.memory_space<smem>>
        %c7_i32_44 = arith.constant 7 : i32
        %c0_i32_45 = arith.constant 0 : i32
        %88 = tpu.memref_slice %arg6[%87, %c0_i32_45] : memref<512x128xf32, #tpu.memory_space<any>> -> memref<1x128xf32, #tpu.memory_space<any>>
        %c0_i32_46 = arith.constant 0 : i32
        %89 = tpu.memref_slice %arg10[%11, %c7_i32_44, %41, %c0_i32_46] : memref<2x10x128x128xf32, #tpu.memory_space<vmem>> -> memref<1x1x1x128xf32, #tpu.memory_space<vmem>>
        %90 = tpu.memref_squeeze %89 : memref<1x1x1x128xf32, #tpu.memory_space<vmem>> -> memref<1x128xf32, #tpu.memory_space<vmem>>
        %91 = tpu.memref_slice %arg11[%11] : memref<2x!tpu.dma_semaphore, #tpu.memory_space<semaphore_mem>> -> memref<1x!tpu.dma_semaphore, #tpu.memory_space<semaphore_mem>>
        %92 = tpu.memref_squeeze %91 : memref<1x!tpu.dma_semaphore, #tpu.memory_space<semaphore_mem>> -> memref<!tpu.dma_semaphore, #tpu.memory_space<semaphore_mem>>
        tpu.wait_dma2 semaphore(%92 : memref<!tpu.dma_semaphore, #tpu.memory_space<semaphore_mem>>) src(%88 : memref<1x128xf32, #tpu.memory_space<any>>) dst(%90 : memref<1x128xf32, #tpu.memory_space<vmem>>)
      } else {
      }
      %c8_i32 = arith.constant 8 : i32
      %77 = arith.cmpi sgt, %52, %c8_i32 : i32
      %78 = arith.extui %77 : i1 to i32
      %c0_i32_41 = arith.constant 0 : i32
      %79 = arith.cmpi ne, %78, %c0_i32_41 : i32
      scf.if %79 {
        %83 = arith.addi %15, %41 : i32
        %c10_i32 = arith.constant 10 : i32
        %84 = arith.muli %83, %c10_i32 : i32
        %c8_i32_43 = arith.constant 8 : i32
        %85 = arith.addi %84, %c8_i32_43 : i32
        %86 = arith.index_cast %85 : i32 to index
        %87 = memref.load %arg3[%86] : memref<5120xi32, #tpu.memory_space<smem>>
        %c8_i32_44 = arith.constant 8 : i32
        %c0_i32_45 = arith.constant 0 : i32
        %88 = tpu.memref_slice %arg6[%87, %c0_i32_45] : memref<512x128xf32, #tpu.memory_space<any>> -> memref<1x128xf32, #tpu.memory_space<any>>
        %c0_i32_46 = arith.constant 0 : i32
        %89 = tpu.memref_slice %arg10[%11, %c8_i32_44, %41, %c0_i32_46] : memref<2x10x128x128xf32, #tpu.memory_space<vmem>> -> memref<1x1x1x128xf32, #tpu.memory_space<vmem>>
        %90 = tpu.memref_squeeze %89 : memref<1x1x1x128xf32, #tpu.memory_space<vmem>> -> memref<1x128xf32, #tpu.memory_space<vmem>>
        %91 = tpu.memref_slice %arg11[%11] : memref<2x!tpu.dma_semaphore, #tpu.memory_space<semaphore_mem>> -> memref<1x!tpu.dma_semaphore, #tpu.memory_space<semaphore_mem>>
        %92 = tpu.memref_squeeze %91 : memref<1x!tpu.dma_semaphore, #tpu.memory_space<semaphore_mem>> -> memref<!tpu.dma_semaphore, #tpu.memory_space<semaphore_mem>>
        tpu.wait_dma2 semaphore(%92 : memref<!tpu.dma_semaphore, #tpu.memory_space<semaphore_mem>>) src(%88 : memref<1x128xf32, #tpu.memory_space<any>>) dst(%90 : memref<1x128xf32, #tpu.memory_space<vmem>>)
      } else {
      }
      %c9_i32 = arith.constant 9 : i32
      %80 = arith.cmpi sgt, %52, %c9_i32 : i32
      %81 = arith.extui %80 : i1 to i32
      %c0_i32_42 = arith.constant 0 : i32
      %82 = arith.cmpi ne, %81, %c0_i32_42 : i32
      scf.if %82 {
        %83 = arith.addi %15, %41 : i32
        %c10_i32 = arith.constant 10 : i32
        %84 = arith.muli %83, %c10_i32 : i32
        %c9_i32_43 = arith.constant 9 : i32
        %85 = arith.addi %84, %c9_i32_43 : i32
        %86 = arith.index_cast %85 : i32 to index
        %87 = memref.load %arg3[%86] : memref<5120xi32, #tpu.memory_space<smem>>
        %c9_i32_44 = arith.constant 9 : i32
        %c0_i32_45 = arith.constant 0 : i32
        %88 = tpu.memref_slice %arg6[%87, %c0_i32_45] : memref<512x128xf32, #tpu.memory_space<any>> -> memref<1x128xf32, #tpu.memory_space<any>>
        %c0_i32_46 = arith.constant 0 : i32
        %89 = tpu.memref_slice %arg10[%11, %c9_i32_44, %41, %c0_i32_46] : memref<2x10x128x128xf32, #tpu.memory_space<vmem>> -> memref<1x1x1x128xf32, #tpu.memory_space<vmem>>
        %90 = tpu.memref_squeeze %89 : memref<1x1x1x128xf32, #tpu.memory_space<vmem>> -> memref<1x128xf32, #tpu.memory_space<vmem>>
        %91 = tpu.memref_slice %arg11[%11] : memref<2x!tpu.dma_semaphore, #tpu.memory_space<semaphore_mem>> -> memref<1x!tpu.dma_semaphore, #tpu.memory_space<semaphore_mem>>
        %92 = tpu.memref_squeeze %91 : memref<1x!tpu.dma_semaphore, #tpu.memory_space<semaphore_mem>> -> memref<!tpu.dma_semaphore, #tpu.memory_space<semaphore_mem>>
        tpu.wait_dma2 semaphore(%92 : memref<!tpu.dma_semaphore, #tpu.memory_space<semaphore_mem>>) src(%88 : memref<1x128xf32, #tpu.memory_space<any>>) dst(%90 : memref<1x128xf32, #tpu.memory_space<vmem>>)
      } else {
      }
    }
    %c1_i32_17 = arith.constant 1 : i32
    %26 = arith.addi %arg1, %c1_i32_17 : i32
    %c2_i32_18 = arith.constant 2 : i32
    %27 = arith.cmpi slt, %26, %c2_i32_18 : i32
    %28 = arith.extui %27 : i1 to i32
    %c0_i32_19 = arith.constant 0 : i32
    %29 = arith.cmpi ne, %28, %c0_i32_19 : i32
    scf.if %29 {
      %c1_i32_28 = arith.constant 1 : i32
      %40 = arith.addi %1, %c1_i32_28 : i32
      %c1_i32_29 = arith.constant 1 : i32
      %41 = arith.subi %c1_i32_29, %11 : i32
      %c128_i32_30 = arith.constant 128 : i32
      %42 = arith.muli %40, %c128_i32_30 : i32
      %c128_i32_31 = arith.constant 128 : i32
      %43 = arith.muli %40, %c128_i32_31 : i32
      %c300_i32_32 = arith.constant 300 : i32
      %44 = arith.subi %c300_i32_32, %43 : i32
      %c0_i32_33 = arith.constant 0 : i32
      %c128_i32_34 = arith.constant 128 : i32
      %45 = arith.maxsi %c0_i32_33, %44 : i32
      %46 = arith.minsi %c128_i32_34, %45 : i32
      %c0_i32_35 = arith.constant 0 : i32
      %47 = arith.subi %46, %c0_i32_35 : i32
      %c1_i32_36 = arith.constant 1 : i32
      %c1_i32_37 = arith.constant 1 : i32
      %48 = arith.subi %c1_i32_36, %c1_i32_37 : i32
      %49 = arith.addi %47, %48 : i32
      %c1_i32_38 = arith.constant 1 : i32
      %50 = arith.divsi %49, %c1_i32_38 : i32
      %c1_i32_39 = arith.constant 1 : i32
      %c0_i32_40 = arith.constant 0 : i32
      %c0_i32_41 = arith.constant 0 : i32
      %51 = arith.subi %50, %c0_i32_41 : i32
      %52 = arith.addi %c0_i32_41, %51 : i32
      %c1_i32_42 = arith.constant 1 : i32
      scf.for %arg12 = %c0_i32_41 to %52 step %c1_i32_42  : i32 {
        %53 = arith.muli %arg12, %c1_i32_39 : i32
        %54 = arith.addi %c0_i32_40, %53 : i32
        %55 = arith.addi %42, %54 : i32
        %56 = arith.index_cast %55 : i32 to index
        %57 = memref.load %arg2[%56] : memref<512xi32, #tpu.memory_space<smem>>
        %c0_i32_43 = arith.constant 0 : i32
        %58 = tpu.memref_slice %arg6[%57, %c0_i32_43] : memref<512x128xf32, #tpu.memory_space<any>> -> memref<1x128xf32, #tpu.memory_space<any>>
        %c0_i32_44 = arith.constant 0 : i32
        %59 = tpu.memref_slice %arg9[%41, %54, %c0_i32_44] : memref<2x128x128xf32, #tpu.memory_space<vmem>> -> memref<1x1x128xf32, #tpu.memory_space<vmem>>
        %60 = tpu.memref_squeeze %59 : memref<1x1x128xf32, #tpu.memory_space<vmem>> -> memref<1x128xf32, #tpu.memory_space<vmem>>
        %61 = tpu.memref_slice %arg11[%41] : memref<2x!tpu.dma_semaphore, #tpu.memory_space<semaphore_mem>> -> memref<1x!tpu.dma_semaphore, #tpu.memory_space<semaphore_mem>>
        %62 = tpu.memref_squeeze %61 : memref<1x!tpu.dma_semaphore, #tpu.memory_space<semaphore_mem>> -> memref<!tpu.dma_semaphore, #tpu.memory_space<semaphore_mem>>
        tpu.enqueue_dma source(%58 : memref<1x128xf32, #tpu.memory_space<any>>) target(%60 : memref<1x128xf32, #tpu.memory_space<vmem>>) target_semaphore(%62 : memref<!tpu.dma_semaphore, #tpu.memory_space<semaphore_mem>>)
        %63 = arith.addi %42, %54 : i32
        %64 = arith.index_cast %63 : i32 to index
        %65 = memref.load %arg4[%64] : memref<512xi32, #tpu.memory_space<smem>>
        %c0_i32_45 = arith.constant 0 : i32
        %66 = arith.cmpi sgt, %65, %c0_i32_45 : i32
        %67 = arith.extui %66 : i1 to i32
        %c0_i32_46 = arith.constant 0 : i32
        %68 = arith.cmpi ne, %67, %c0_i32_46 : i32
        scf.if %68 {
          %96 = arith.addi %42, %54 : i32
          %c10_i32 = arith.constant 10 : i32
          %97 = arith.muli %96, %c10_i32 : i32
          %c0_i32_58 = arith.constant 0 : i32
          %98 = arith.addi %97, %c0_i32_58 : i32
          %99 = arith.index_cast %98 : i32 to index
          %100 = memref.load %arg3[%99] : memref<5120xi32, #tpu.memory_space<smem>>
          %c0_i32_59 = arith.constant 0 : i32
          %c0_i32_60 = arith.constant 0 : i32
          %101 = tpu.memref_slice %arg6[%100, %c0_i32_60] : memref<512x128xf32, #tpu.memory_space<any>> -> memref<1x128xf32, #tpu.memory_space<any>>
          %c0_i32_61 = arith.constant 0 : i32
          %102 = tpu.memref_slice %arg10[%41, %c0_i32_59, %54, %c0_i32_61] : memref<2x10x128x128xf32, #tpu.memory_space<vmem>> -> memref<1x1x1x128xf32, #tpu.memory_space<vmem>>
          %103 = tpu.memref_squeeze %102 : memref<1x1x1x128xf32, #tpu.memory_space<vmem>> -> memref<1x128xf32, #tpu.memory_space<vmem>>
          %104 = tpu.memref_slice %arg11[%41] : memref<2x!tpu.dma_semaphore, #tpu.memory_space<semaphore_mem>> -> memref<1x!tpu.dma_semaphore, #tpu.memory_space<semaphore_mem>>
          %105 = tpu.memref_squeeze %104 : memref<1x!tpu.dma_semaphore, #tpu.memory_space<semaphore_mem>> -> memref<!tpu.dma_semaphore, #tpu.memory_space<semaphore_mem>>
          tpu.enqueue_dma source(%101 : memref<1x128xf32, #tpu.memory_space<any>>) target(%103 : memref<1x128xf32, #tpu.memory_space<vmem>>) target_semaphore(%105 : memref<!tpu.dma_semaphore, #tpu.memory_space<semaphore_mem>>)
        } else {
        }
        %c1_i32_47 = arith.constant 1 : i32
        %69 = arith.cmpi sgt, %65, %c1_i32_47 : i32
        %70 = arith.extui %69 : i1 to i32
        %c0_i32_48 = arith.constant 0 : i32
        %71 = arith.cmpi ne, %70, %c0_i32_48 : i32
        scf.if %71 {
          %96 = arith.addi %42, %54 : i32
          %c10_i32 = arith.constant 10 : i32
          %97 = arith.muli %96, %c10_i32 : i32
          %c1_i32_58 = arith.constant 1 : i32
          %98 = arith.addi %97, %c1_i32_58 : i32
          %99 = arith.index_cast %98 : i32 to index
          %100 = memref.load %arg3[%99] : memref<5120xi32, #tpu.memory_space<smem>>
          %c1_i32_59 = arith.constant 1 : i32
          %c0_i32_60 = arith.constant 0 : i32
          %101 = tpu.memref_slice %arg6[%100, %c0_i32_60] : memref<512x128xf32, #tpu.memory_space<any>> -> memref<1x128xf32, #tpu.memory_space<any>>
          %c0_i32_61 = arith.constant 0 : i32
          %102 = tpu.memref_slice %arg10[%41, %c1_i32_59, %54, %c0_i32_61] : memref<2x10x128x128xf32, #tpu.memory_space<vmem>> -> memref<1x1x1x128xf32, #tpu.memory_space<vmem>>
          %103 = tpu.memref_squeeze %102 : memref<1x1x1x128xf32, #tpu.memory_space<vmem>> -> memref<1x128xf32, #tpu.memory_space<vmem>>
          %104 = tpu.memref_slice %arg11[%41] : memref<2x!tpu.dma_semaphore, #tpu.memory_space<semaphore_mem>> -> memref<1x!tpu.dma_semaphore, #tpu.memory_space<semaphore_mem>>
          %105 = tpu.memref_squeeze %104 : memref<1x!tpu.dma_semaphore, #tpu.memory_space<semaphore_mem>> -> memref<!tpu.dma_semaphore, #tpu.memory_space<semaphore_mem>>
          tpu.enqueue_dma source(%101 : memref<1x128xf32, #tpu.memory_space<any>>) target(%103 : memref<1x128xf32, #tpu.memory_space<vmem>>) target_semaphore(%105 : memref<!tpu.dma_semaphore, #tpu.memory_space<semaphore_mem>>)
        } else {
        }
        %c2_i32_49 = arith.constant 2 : i32
        %72 = arith.cmpi sgt, %65, %c2_i32_49 : i32
        %73 = arith.extui %72 : i1 to i32
        %c0_i32_50 = arith.constant 0 : i32
        %74 = arith.cmpi ne, %73, %c0_i32_50 : i32
        scf.if %74 {
          %96 = arith.addi %42, %54 : i32
          %c10_i32 = arith.constant 10 : i32
          %97 = arith.muli %96, %c10_i32 : i32
          %c2_i32_58 = arith.constant 2 : i32
          %98 = arith.addi %97, %c2_i32_58 : i32
          %99 = arith.index_cast %98 : i32 to index
          %100 = memref.load %arg3[%99] : memref<5120xi32, #tpu.memory_space<smem>>
          %c2_i32_59 = arith.constant 2 : i32
          %c0_i32_60 = arith.constant 0 : i32
          %101 = tpu.memref_slice %arg6[%100, %c0_i32_60] : memref<512x128xf32, #tpu.memory_space<any>> -> memref<1x128xf32, #tpu.memory_space<any>>
          %c0_i32_61 = arith.constant 0 : i32
          %102 = tpu.memref_slice %arg10[%41, %c2_i32_59, %54, %c0_i32_61] : memref<2x10x128x128xf32, #tpu.memory_space<vmem>> -> memref<1x1x1x128xf32, #tpu.memory_space<vmem>>
          %103 = tpu.memref_squeeze %102 : memref<1x1x1x128xf32, #tpu.memory_space<vmem>> -> memref<1x128xf32, #tpu.memory_space<vmem>>
          %104 = tpu.memref_slice %arg11[%41] : memref<2x!tpu.dma_semaphore, #tpu.memory_space<semaphore_mem>> -> memref<1x!tpu.dma_semaphore, #tpu.memory_space<semaphore_mem>>
          %105 = tpu.memref_squeeze %104 : memref<1x!tpu.dma_semaphore, #tpu.memory_space<semaphore_mem>> -> memref<!tpu.dma_semaphore, #tpu.memory_space<semaphore_mem>>
          tpu.enqueue_dma source(%101 : memref<1x128xf32, #tpu.memory_space<any>>) target(%103 : memref<1x128xf32, #tpu.memory_space<vmem>>) target_semaphore(%105 : memref<!tpu.dma_semaphore, #tpu.memory_space<semaphore_mem>>)
        } else {
        }
        %c3_i32 = arith.constant 3 : i32
        %75 = arith.cmpi sgt, %65, %c3_i32 : i32
        %76 = arith.extui %75 : i1 to i32
        %c0_i32_51 = arith.constant 0 : i32
        %77 = arith.cmpi ne, %76, %c0_i32_51 : i32
        scf.if %77 {
          %96 = arith.addi %42, %54 : i32
          %c10_i32 = arith.constant 10 : i32
          %97 = arith.muli %96, %c10_i32 : i32
          %c3_i32_58 = arith.constant 3 : i32
          %98 = arith.addi %97, %c3_i32_58 : i32
          %99 = arith.index_cast %98 : i32 to index
          %100 = memref.load %arg3[%99] : memref<5120xi32, #tpu.memory_space<smem>>
          %c3_i32_59 = arith.constant 3 : i32
          %c0_i32_60 = arith.constant 0 : i32
          %101 = tpu.memref_slice %arg6[%100, %c0_i32_60] : memref<512x128xf32, #tpu.memory_space<any>> -> memref<1x128xf32, #tpu.memory_space<any>>
          %c0_i32_61 = arith.constant 0 : i32
          %102 = tpu.memref_slice %arg10[%41, %c3_i32_59, %54, %c0_i32_61] : memref<2x10x128x128xf32, #tpu.memory_space<vmem>> -> memref<1x1x1x128xf32, #tpu.memory_space<vmem>>
          %103 = tpu.memref_squeeze %102 : memref<1x1x1x128xf32, #tpu.memory_space<vmem>> -> memref<1x128xf32, #tpu.memory_space<vmem>>
          %104 = tpu.memref_slice %arg11[%41] : memref<2x!tpu.dma_semaphore, #tpu.memory_space<semaphore_mem>> -> memref<1x!tpu.dma_semaphore, #tpu.memory_space<semaphore_mem>>
          %105 = tpu.memref_squeeze %104 : memref<1x!tpu.dma_semaphore, #tpu.memory_space<semaphore_mem>> -> memref<!tpu.dma_semaphore, #tpu.memory_space<semaphore_mem>>
          tpu.enqueue_dma source(%101 : memref<1x128xf32, #tpu.memory_space<any>>) target(%103 : memref<1x128xf32, #tpu.memory_space<vmem>>) target_semaphore(%105 : memref<!tpu.dma_semaphore, #tpu.memory_space<semaphore_mem>>)
        } else {
        }
        %c4_i32 = arith.constant 4 : i32
        %78 = arith.cmpi sgt, %65, %c4_i32 : i32
        %79 = arith.extui %78 : i1 to i32
        %c0_i32_52 = arith.constant 0 : i32
        %80 = arith.cmpi ne, %79, %c0_i32_52 : i32
        scf.if %80 {
          %96 = arith.addi %42, %54 : i32
          %c10_i32 = arith.constant 10 : i32
          %97 = arith.muli %96, %c10_i32 : i32
          %c4_i32_58 = arith.constant 4 : i32
          %98 = arith.addi %97, %c4_i32_58 : i32
          %99 = arith.index_cast %98 : i32 to index
          %100 = memref.load %arg3[%99] : memref<5120xi32, #tpu.memory_space<smem>>
          %c4_i32_59 = arith.constant 4 : i32
          %c0_i32_60 = arith.constant 0 : i32
          %101 = tpu.memref_slice %arg6[%100, %c0_i32_60] : memref<512x128xf32, #tpu.memory_space<any>> -> memref<1x128xf32, #tpu.memory_space<any>>
          %c0_i32_61 = arith.constant 0 : i32
          %102 = tpu.memref_slice %arg10[%41, %c4_i32_59, %54, %c0_i32_61] : memref<2x10x128x128xf32, #tpu.memory_space<vmem>> -> memref<1x1x1x128xf32, #tpu.memory_space<vmem>>
          %103 = tpu.memref_squeeze %102 : memref<1x1x1x128xf32, #tpu.memory_space<vmem>> -> memref<1x128xf32, #tpu.memory_space<vmem>>
          %104 = tpu.memref_slice %arg11[%41] : memref<2x!tpu.dma_semaphore, #tpu.memory_space<semaphore_mem>> -> memref<1x!tpu.dma_semaphore, #tpu.memory_space<semaphore_mem>>
          %105 = tpu.memref_squeeze %104 : memref<1x!tpu.dma_semaphore, #tpu.memory_space<semaphore_mem>> -> memref<!tpu.dma_semaphore, #tpu.memory_space<semaphore_mem>>
          tpu.enqueue_dma source(%101 : memref<1x128xf32, #tpu.memory_space<any>>) target(%103 : memref<1x128xf32, #tpu.memory_space<vmem>>) target_semaphore(%105 : memref<!tpu.dma_semaphore, #tpu.memory_space<semaphore_mem>>)
        } else {
        }
        %c5_i32 = arith.constant 5 : i32
        %81 = arith.cmpi sgt, %65, %c5_i32 : i32
        %82 = arith.extui %81 : i1 to i32
        %c0_i32_53 = arith.constant 0 : i32
        %83 = arith.cmpi ne, %82, %c0_i32_53 : i32
        scf.if %83 {
          %96 = arith.addi %42, %54 : i32
          %c10_i32 = arith.constant 10 : i32
          %97 = arith.muli %96, %c10_i32 : i32
          %c5_i32_58 = arith.constant 5 : i32
          %98 = arith.addi %97, %c5_i32_58 : i32
          %99 = arith.index_cast %98 : i32 to index
          %100 = memref.load %arg3[%99] : memref<5120xi32, #tpu.memory_space<smem>>
          %c5_i32_59 = arith.constant 5 : i32
          %c0_i32_60 = arith.constant 0 : i32
          %101 = tpu.memref_slice %arg6[%100, %c0_i32_60] : memref<512x128xf32, #tpu.memory_space<any>> -> memref<1x128xf32, #tpu.memory_space<any>>
          %c0_i32_61 = arith.constant 0 : i32
          %102 = tpu.memref_slice %arg10[%41, %c5_i32_59, %54, %c0_i32_61] : memref<2x10x128x128xf32, #tpu.memory_space<vmem>> -> memref<1x1x1x128xf32, #tpu.memory_space<vmem>>
          %103 = tpu.memref_squeeze %102 : memref<1x1x1x128xf32, #tpu.memory_space<vmem>> -> memref<1x128xf32, #tpu.memory_space<vmem>>
          %104 = tpu.memref_slice %arg11[%41] : memref<2x!tpu.dma_semaphore, #tpu.memory_space<semaphore_mem>> -> memref<1x!tpu.dma_semaphore, #tpu.memory_space<semaphore_mem>>
          %105 = tpu.memref_squeeze %104 : memref<1x!tpu.dma_semaphore, #tpu.memory_space<semaphore_mem>> -> memref<!tpu.dma_semaphore, #tpu.memory_space<semaphore_mem>>
          tpu.enqueue_dma source(%101 : memref<1x128xf32, #tpu.memory_space<any>>) target(%103 : memref<1x128xf32, #tpu.memory_space<vmem>>) target_semaphore(%105 : memref<!tpu.dma_semaphore, #tpu.memory_space<semaphore_mem>>)
        } else {
        }
        %c6_i32 = arith.constant 6 : i32
        %84 = arith.cmpi sgt, %65, %c6_i32 : i32
        %85 = arith.extui %84 : i1 to i32
        %c0_i32_54 = arith.constant 0 : i32
        %86 = arith.cmpi ne, %85, %c0_i32_54 : i32
        scf.if %86 {
          %96 = arith.addi %42, %54 : i32
          %c10_i32 = arith.constant 10 : i32
          %97 = arith.muli %96, %c10_i32 : i32
          %c6_i32_58 = arith.constant 6 : i32
          %98 = arith.addi %97, %c6_i32_58 : i32
          %99 = arith.index_cast %98 : i32 to index
          %100 = memref.load %arg3[%99] : memref<5120xi32, #tpu.memory_space<smem>>
          %c6_i32_59 = arith.constant 6 : i32
          %c0_i32_60 = arith.constant 0 : i32
          %101 = tpu.memref_slice %arg6[%100, %c0_i32_60] : memref<512x128xf32, #tpu.memory_space<any>> -> memref<1x128xf32, #tpu.memory_space<any>>
          %c0_i32_61 = arith.constant 0 : i32
          %102 = tpu.memref_slice %arg10[%41, %c6_i32_59, %54, %c0_i32_61] : memref<2x10x128x128xf32, #tpu.memory_space<vmem>> -> memref<1x1x1x128xf32, #tpu.memory_space<vmem>>
          %103 = tpu.memref_squeeze %102 : memref<1x1x1x128xf32, #tpu.memory_space<vmem>> -> memref<1x128xf32, #tpu.memory_space<vmem>>
          %104 = tpu.memref_slice %arg11[%41] : memref<2x!tpu.dma_semaphore, #tpu.memory_space<semaphore_mem>> -> memref<1x!tpu.dma_semaphore, #tpu.memory_space<semaphore_mem>>
          %105 = tpu.memref_squeeze %104 : memref<1x!tpu.dma_semaphore, #tpu.memory_space<semaphore_mem>> -> memref<!tpu.dma_semaphore, #tpu.memory_space<semaphore_mem>>
          tpu.enqueue_dma source(%101 : memref<1x128xf32, #tpu.memory_space<any>>) target(%103 : memref<1x128xf32, #tpu.memory_space<vmem>>) target_semaphore(%105 : memref<!tpu.dma_semaphore, #tpu.memory_space<semaphore_mem>>)
        } else {
        }
        %c7_i32 = arith.constant 7 : i32
        %87 = arith.cmpi sgt, %65, %c7_i32 : i32
        %88 = arith.extui %87 : i1 to i32
        %c0_i32_55 = arith.constant 0 : i32
        %89 = arith.cmpi ne, %88, %c0_i32_55 : i32
        scf.if %89 {
          %96 = arith.addi %42, %54 : i32
          %c10_i32 = arith.constant 10 : i32
          %97 = arith.muli %96, %c10_i32 : i32
          %c7_i32_58 = arith.constant 7 : i32
          %98 = arith.addi %97, %c7_i32_58 : i32
          %99 = arith.index_cast %98 : i32 to index
          %100 = memref.load %arg3[%99] : memref<5120xi32, #tpu.memory_space<smem>>
          %c7_i32_59 = arith.constant 7 : i32
          %c0_i32_60 = arith.constant 0 : i32
          %101 = tpu.memref_slice %arg6[%100, %c0_i32_60] : memref<512x128xf32, #tpu.memory_space<any>> -> memref<1x128xf32, #tpu.memory_space<any>>
          %c0_i32_61 = arith.constant 0 : i32
          %102 = tpu.memref_slice %arg10[%41, %c7_i32_59, %54, %c0_i32_61] : memref<2x10x128x128xf32, #tpu.memory_space<vmem>> -> memref<1x1x1x128xf32, #tpu.memory_space<vmem>>
          %103 = tpu.memref_squeeze %102 : memref<1x1x1x128xf32, #tpu.memory_space<vmem>> -> memref<1x128xf32, #tpu.memory_space<vmem>>
          %104 = tpu.memref_slice %arg11[%41] : memref<2x!tpu.dma_semaphore, #tpu.memory_space<semaphore_mem>> -> memref<1x!tpu.dma_semaphore, #tpu.memory_space<semaphore_mem>>
          %105 = tpu.memref_squeeze %104 : memref<1x!tpu.dma_semaphore, #tpu.memory_space<semaphore_mem>> -> memref<!tpu.dma_semaphore, #tpu.memory_space<semaphore_mem>>
          tpu.enqueue_dma source(%101 : memref<1x128xf32, #tpu.memory_space<any>>) target(%103 : memref<1x128xf32, #tpu.memory_space<vmem>>) target_semaphore(%105 : memref<!tpu.dma_semaphore, #tpu.memory_space<semaphore_mem>>)
        } else {
        }
        %c8_i32 = arith.constant 8 : i32
        %90 = arith.cmpi sgt, %65, %c8_i32 : i32
        %91 = arith.extui %90 : i1 to i32
        %c0_i32_56 = arith.constant 0 : i32
        %92 = arith.cmpi ne, %91, %c0_i32_56 : i32
        scf.if %92 {
          %96 = arith.addi %42, %54 : i32
          %c10_i32 = arith.constant 10 : i32
          %97 = arith.muli %96, %c10_i32 : i32
          %c8_i32_58 = arith.constant 8 : i32
          %98 = arith.addi %97, %c8_i32_58 : i32
          %99 = arith.index_cast %98 : i32 to index
          %100 = memref.load %arg3[%99] : memref<5120xi32, #tpu.memory_space<smem>>
          %c8_i32_59 = arith.constant 8 : i32
          %c0_i32_60 = arith.constant 0 : i32
          %101 = tpu.memref_slice %arg6[%100, %c0_i32_60] : memref<512x128xf32, #tpu.memory_space<any>> -> memref<1x128xf32, #tpu.memory_space<any>>
          %c0_i32_61 = arith.constant 0 : i32
          %102 = tpu.memref_slice %arg10[%41, %c8_i32_59, %54, %c0_i32_61] : memref<2x10x128x128xf32, #tpu.memory_space<vmem>> -> memref<1x1x1x128xf32, #tpu.memory_space<vmem>>
          %103 = tpu.memref_squeeze %102 : memref<1x1x1x128xf32, #tpu.memory_space<vmem>> -> memref<1x128xf32, #tpu.memory_space<vmem>>
          %104 = tpu.memref_slice %arg11[%41] : memref<2x!tpu.dma_semaphore, #tpu.memory_space<semaphore_mem>> -> memref<1x!tpu.dma_semaphore, #tpu.memory_space<semaphore_mem>>
          %105 = tpu.memref_squeeze %104 : memref<1x!tpu.dma_semaphore, #tpu.memory_space<semaphore_mem>> -> memref<!tpu.dma_semaphore, #tpu.memory_space<semaphore_mem>>
          tpu.enqueue_dma source(%101 : memref<1x128xf32, #tpu.memory_space<any>>) target(%103 : memref<1x128xf32, #tpu.memory_space<vmem>>) target_semaphore(%105 : memref<!tpu.dma_semaphore, #tpu.memory_space<semaphore_mem>>)
        } else {
        }
        %c9_i32 = arith.constant 9 : i32
        %93 = arith.cmpi sgt, %65, %c9_i32 : i32
        %94 = arith.extui %93 : i1 to i32
        %c0_i32_57 = arith.constant 0 : i32
        %95 = arith.cmpi ne, %94, %c0_i32_57 : i32
        scf.if %95 {
          %96 = arith.addi %42, %54 : i32
          %c10_i32 = arith.constant 10 : i32
          %97 = arith.muli %96, %c10_i32 : i32
          %c9_i32_58 = arith.constant 9 : i32
          %98 = arith.addi %97, %c9_i32_58 : i32
          %99 = arith.index_cast %98 : i32 to index
          %100 = memref.load %arg3[%99] : memref<5120xi32, #tpu.memory_space<smem>>
          %c9_i32_59 = arith.constant 9 : i32
          %c0_i32_60 = arith.constant 0 : i32
          %101 = tpu.memref_slice %arg6[%100, %c0_i32_60] : memref<512x128xf32, #tpu.memory_space<any>> -> memref<1x128xf32, #tpu.memory_space<any>>
          %c0_i32_61 = arith.constant 0 : i32
          %102 = tpu.memref_slice %arg10[%41, %c9_i32_59, %54, %c0_i32_61] : memref<2x10x128x128xf32, #tpu.memory_space<vmem>> -> memref<1x1x1x128xf32, #tpu.memory_space<vmem>>
          %103 = tpu.memref_squeeze %102 : memref<1x1x1x128xf32, #tpu.memory_space<vmem>> -> memref<1x128xf32, #tpu.memory_space<vmem>>
          %104 = tpu.memref_slice %arg11[%41] : memref<2x!tpu.dma_semaphore, #tpu.memory_space<semaphore_mem>> -> memref<1x!tpu.dma_semaphore, #tpu.memory_space<semaphore_mem>>
          %105 = tpu.memref_squeeze %104 : memref<1x!tpu.dma_semaphore, #tpu.memory_space<semaphore_mem>> -> memref<!tpu.dma_semaphore, #tpu.memory_space<semaphore_mem>>
          tpu.enqueue_dma source(%101 : memref<1x128xf32, #tpu.memory_space<any>>) target(%103 : memref<1x128xf32, #tpu.memory_space<vmem>>) target_semaphore(%105 : memref<!tpu.dma_semaphore, #tpu.memory_space<semaphore_mem>>)
        } else {
        }
      }
    } else {
    }
    %c128_i32_20 = arith.constant 128 : i32
    %30 = arith.muli %1, %c128_i32_20 : i32
    %c300_i32_21 = arith.constant 300 : i32
    %31 = arith.subi %c300_i32_21, %30 : i32
    %c0_i32_22 = arith.constant 0 : i32
    %c128_i32_23 = arith.constant 128 : i32
    %32 = arith.maxsi %c0_i32_22, %31 : i32
    %33 = arith.minsi %c128_i32_23, %32 : i32
    %c0_i32_24 = arith.constant 0 : i32
    %34 = arith.cmpi sgt, %33, %c0_i32_24 : i32
    %35 = arith.extui %34 : i1 to i32
    %c0_i32_25 = arith.constant 0 : i32
    %36 = arith.cmpi ne, %35, %c0_i32_25 : i32
    scf.if %36 {
      %c0 = arith.constant 0 : index
      %c0_28 = arith.constant 0 : index
      %40 = vector.load %arg5[%c0, %c0_28] : memref<128x128xf32, #tpu.memory_space<vmem>>, vector<128x128xf32>
      %cst = arith.constant 0.000000e+00 : f32
      %41 = vector.broadcast %cst : f32 to vector<128x128xf32>
      %42 = vector.extract_strided_slice %40 {offsets = [0, 0], sizes = [128, 1], strides = [1, 1]} : vector<128x128xf32> to vector<128x1xf32>
      %cst_29 = arith.constant 0.000000e+00 : f32
      %43 = vector.broadcast %cst_29 : f32 to vector<128x1xf32>
      %44 = arith.cmpf ogt, %42, %43 : vector<128x1xf32>
      %45 = arith.index_cast %11 : i32 to index
      %c0_30 = arith.constant 0 : index
      %c0_31 = arith.constant 0 : index
      %c0_32 = arith.constant 0 : index
      %46 = vector.load %arg10[%45, %c0_30, %c0_31, %c0_32] : memref<2x10x128x128xf32, #tpu.memory_space<vmem>>, vector<1x1x128x128xf32>
      %47 = vector.shape_cast %46 : vector<1x1x128x128xf32> to vector<128x128xf32>
      %48 = vector.broadcast %42 : vector<128x1xf32> to vector<128x128xf32>
      %49 = arith.mulf %48, %47 : vector<128x128xf32>
      %cst_33 = arith.constant 0.000000e+00 : f32
      %50 = vector.shape_cast %44 : vector<128x1xi1> to vector<128x1xi1>
      %51 = vector.broadcast %50 : vector<128x1xi1> to vector<128x128xi1>
      %52 = vector.broadcast %cst_33 : f32 to vector<128x128xf32>
      %53 = arith.select %51, %49, %52 : vector<128x128xi1>, vector<128x128xf32>
      %54 = arith.addf %41, %53 : vector<128x128xf32>
      %55 = vector.extract_strided_slice %40 {offsets = [0, 1], sizes = [128, 1], strides = [1, 1]} : vector<128x128xf32> to vector<128x1xf32>
      %cst_34 = arith.constant 0.000000e+00 : f32
      %56 = vector.broadcast %cst_34 : f32 to vector<128x1xf32>
      %57 = arith.cmpf ogt, %55, %56 : vector<128x1xf32>
      %58 = arith.index_cast %11 : i32 to index
      %c1 = arith.constant 1 : index
      %c0_35 = arith.constant 0 : index
      %c0_36 = arith.constant 0 : index
      %59 = vector.load %arg10[%58, %c1, %c0_35, %c0_36] : memref<2x10x128x128xf32, #tpu.memory_space<vmem>>, vector<1x1x128x128xf32>
      %60 = vector.shape_cast %59 : vector<1x1x128x128xf32> to vector<128x128xf32>
      %61 = vector.broadcast %55 : vector<128x1xf32> to vector<128x128xf32>
      %62 = arith.mulf %61, %60 : vector<128x128xf32>
      %cst_37 = arith.constant 0.000000e+00 : f32
      %63 = vector.shape_cast %57 : vector<128x1xi1> to vector<128x1xi1>
      %64 = vector.broadcast %63 : vector<128x1xi1> to vector<128x128xi1>
      %65 = vector.broadcast %cst_37 : f32 to vector<128x128xf32>
      %66 = arith.select %64, %62, %65 : vector<128x128xi1>, vector<128x128xf32>
      %67 = arith.addf %54, %66 : vector<128x128xf32>
      %68 = vector.extract_strided_slice %40 {offsets = [0, 2], sizes = [128, 1], strides = [1, 1]} : vector<128x128xf32> to vector<128x1xf32>
      %cst_38 = arith.constant 0.000000e+00 : f32
      %69 = vector.broadcast %cst_38 : f32 to vector<128x1xf32>
      %70 = arith.cmpf ogt, %68, %69 : vector<128x1xf32>
      %71 = arith.index_cast %11 : i32 to index
      %c2 = arith.constant 2 : index
      %c0_39 = arith.constant 0 : index
      %c0_40 = arith.constant 0 : index
      %72 = vector.load %arg10[%71, %c2, %c0_39, %c0_40] : memref<2x10x128x128xf32, #tpu.memory_space<vmem>>, vector<1x1x128x128xf32>
      %73 = vector.shape_cast %72 : vector<1x1x128x128xf32> to vector<128x128xf32>
      %74 = vector.broadcast %68 : vector<128x1xf32> to vector<128x128xf32>
      %75 = arith.mulf %74, %73 : vector<128x128xf32>
      %cst_41 = arith.constant 0.000000e+00 : f32
      %76 = vector.shape_cast %70 : vector<128x1xi1> to vector<128x1xi1>
      %77 = vector.broadcast %76 : vector<128x1xi1> to vector<128x128xi1>
      %78 = vector.broadcast %cst_41 : f32 to vector<128x128xf32>
      %79 = arith.select %77, %75, %78 : vector<128x128xi1>, vector<128x128xf32>
      %80 = arith.addf %67, %79 : vector<128x128xf32>
      %81 = vector.extract_strided_slice %40 {offsets = [0, 3], sizes = [128, 1], strides = [1, 1]} : vector<128x128xf32> to vector<128x1xf32>
      %cst_42 = arith.constant 0.000000e+00 : f32
      %82 = vector.broadcast %cst_42 : f32 to vector<128x1xf32>
      %83 = arith.cmpf ogt, %81, %82 : vector<128x1xf32>
      %84 = arith.index_cast %11 : i32 to index
      %c3 = arith.constant 3 : index
      %c0_43 = arith.constant 0 : index
      %c0_44 = arith.constant 0 : index
      %85 = vector.load %arg10[%84, %c3, %c0_43, %c0_44] : memref<2x10x128x128xf32, #tpu.memory_space<vmem>>, vector<1x1x128x128xf32>
      %86 = vector.shape_cast %85 : vector<1x1x128x128xf32> to vector<128x128xf32>
      %87 = vector.broadcast %81 : vector<128x1xf32> to vector<128x128xf32>
      %88 = arith.mulf %87, %86 : vector<128x128xf32>
      %cst_45 = arith.constant 0.000000e+00 : f32
      %89 = vector.shape_cast %83 : vector<128x1xi1> to vector<128x1xi1>
      %90 = vector.broadcast %89 : vector<128x1xi1> to vector<128x128xi1>
      %91 = vector.broadcast %cst_45 : f32 to vector<128x128xf32>
      %92 = arith.select %90, %88, %91 : vector<128x128xi1>, vector<128x128xf32>
      %93 = arith.addf %80, %92 : vector<128x128xf32>
      %94 = vector.extract_strided_slice %40 {offsets = [0, 4], sizes = [128, 1], strides = [1, 1]} : vector<128x128xf32> to vector<128x1xf32>
      %cst_46 = arith.constant 0.000000e+00 : f32
      %95 = vector.broadcast %cst_46 : f32 to vector<128x1xf32>
      %96 = arith.cmpf ogt, %94, %95 : vector<128x1xf32>
      %97 = arith.index_cast %11 : i32 to index
      %c4 = arith.constant 4 : index
      %c0_47 = arith.constant 0 : index
      %c0_48 = arith.constant 0 : index
      %98 = vector.load %arg10[%97, %c4, %c0_47, %c0_48] : memref<2x10x128x128xf32, #tpu.memory_space<vmem>>, vector<1x1x128x128xf32>
      %99 = vector.shape_cast %98 : vector<1x1x128x128xf32> to vector<128x128xf32>
      %100 = vector.broadcast %94 : vector<128x1xf32> to vector<128x128xf32>
      %101 = arith.mulf %100, %99 : vector<128x128xf32>
      %cst_49 = arith.constant 0.000000e+00 : f32
      %102 = vector.shape_cast %96 : vector<128x1xi1> to vector<128x1xi1>
      %103 = vector.broadcast %102 : vector<128x1xi1> to vector<128x128xi1>
      %104 = vector.broadcast %cst_49 : f32 to vector<128x128xf32>
      %105 = arith.select %103, %101, %104 : vector<128x128xi1>, vector<128x128xf32>
      %106 = arith.addf %93, %105 : vector<128x128xf32>
      %107 = vector.extract_strided_slice %40 {offsets = [0, 5], sizes = [128, 1], strides = [1, 1]} : vector<128x128xf32> to vector<128x1xf32>
      %cst_50 = arith.constant 0.000000e+00 : f32
      %108 = vector.broadcast %cst_50 : f32 to vector<128x1xf32>
      %109 = arith.cmpf ogt, %107, %108 : vector<128x1xf32>
      %110 = arith.index_cast %11 : i32 to index
      %c5 = arith.constant 5 : index
      %c0_51 = arith.constant 0 : index
      %c0_52 = arith.constant 0 : index
      %111 = vector.load %arg10[%110, %c5, %c0_51, %c0_52] : memref<2x10x128x128xf32, #tpu.memory_space<vmem>>, vector<1x1x128x128xf32>
      %112 = vector.shape_cast %111 : vector<1x1x128x128xf32> to vector<128x128xf32>
      %113 = vector.broadcast %107 : vector<128x1xf32> to vector<128x128xf32>
      %114 = arith.mulf %113, %112 : vector<128x128xf32>
      %cst_53 = arith.constant 0.000000e+00 : f32
      %115 = vector.shape_cast %109 : vector<128x1xi1> to vector<128x1xi1>
      %116 = vector.broadcast %115 : vector<128x1xi1> to vector<128x128xi1>
      %117 = vector.broadcast %cst_53 : f32 to vector<128x128xf32>
      %118 = arith.select %116, %114, %117 : vector<128x128xi1>, vector<128x128xf32>
      %119 = arith.addf %106, %118 : vector<128x128xf32>
      %120 = vector.extract_strided_slice %40 {offsets = [0, 6], sizes = [128, 1], strides = [1, 1]} : vector<128x128xf32> to vector<128x1xf32>
      %cst_54 = arith.constant 0.000000e+00 : f32
      %121 = vector.broadcast %cst_54 : f32 to vector<128x1xf32>
      %122 = arith.cmpf ogt, %120, %121 : vector<128x1xf32>
      %123 = arith.index_cast %11 : i32 to index
      %c6 = arith.constant 6 : index
      %c0_55 = arith.constant 0 : index
      %c0_56 = arith.constant 0 : index
      %124 = vector.load %arg10[%123, %c6, %c0_55, %c0_56] : memref<2x10x128x128xf32, #tpu.memory_space<vmem>>, vector<1x1x128x128xf32>
      %125 = vector.shape_cast %124 : vector<1x1x128x128xf32> to vector<128x128xf32>
      %126 = vector.broadcast %120 : vector<128x1xf32> to vector<128x128xf32>
      %127 = arith.mulf %126, %125 : vector<128x128xf32>
      %cst_57 = arith.constant 0.000000e+00 : f32
      %128 = vector.shape_cast %122 : vector<128x1xi1> to vector<128x1xi1>
      %129 = vector.broadcast %128 : vector<128x1xi1> to vector<128x128xi1>
      %130 = vector.broadcast %cst_57 : f32 to vector<128x128xf32>
      %131 = arith.select %129, %127, %130 : vector<128x128xi1>, vector<128x128xf32>
      %132 = arith.addf %119, %131 : vector<128x128xf32>
      %133 = vector.extract_strided_slice %40 {offsets = [0, 7], sizes = [128, 1], strides = [1, 1]} : vector<128x128xf32> to vector<128x1xf32>
      %cst_58 = arith.constant 0.000000e+00 : f32
      %134 = vector.broadcast %cst_58 : f32 to vector<128x1xf32>
      %135 = arith.cmpf ogt, %133, %134 : vector<128x1xf32>
      %136 = arith.index_cast %11 : i32 to index
      %c7 = arith.constant 7 : index
      %c0_59 = arith.constant 0 : index
      %c0_60 = arith.constant 0 : index
      %137 = vector.load %arg10[%136, %c7, %c0_59, %c0_60] : memref<2x10x128x128xf32, #tpu.memory_space<vmem>>, vector<1x1x128x128xf32>
      %138 = vector.shape_cast %137 : vector<1x1x128x128xf32> to vector<128x128xf32>
      %139 = vector.broadcast %133 : vector<128x1xf32> to vector<128x128xf32>
      %140 = arith.mulf %139, %138 : vector<128x128xf32>
      %cst_61 = arith.constant 0.000000e+00 : f32
      %141 = vector.shape_cast %135 : vector<128x1xi1> to vector<128x1xi1>
      %142 = vector.broadcast %141 : vector<128x1xi1> to vector<128x128xi1>
      %143 = vector.broadcast %cst_61 : f32 to vector<128x128xf32>
      %144 = arith.select %142, %140, %143 : vector<128x128xi1>, vector<128x128xf32>
      %145 = arith.addf %132, %144 : vector<128x128xf32>
      %146 = vector.extract_strided_slice %40 {offsets = [0, 8], sizes = [128, 1], strides = [1, 1]} : vector<128x128xf32> to vector<128x1xf32>
      %cst_62 = arith.constant 0.000000e+00 : f32
      %147 = vector.broadcast %cst_62 : f32 to vector<128x1xf32>
      %148 = arith.cmpf ogt, %146, %147 : vector<128x1xf32>
      %149 = arith.index_cast %11 : i32 to index
      %c8 = arith.constant 8 : index
      %c0_63 = arith.constant 0 : index
      %c0_64 = arith.constant 0 : index
      %150 = vector.load %arg10[%149, %c8, %c0_63, %c0_64] : memref<2x10x128x128xf32, #tpu.memory_space<vmem>>, vector<1x1x128x128xf32>
      %151 = vector.shape_cast %150 : vector<1x1x128x128xf32> to vector<128x128xf32>
      %152 = vector.broadcast %146 : vector<128x1xf32> to vector<128x128xf32>
      %153 = arith.mulf %152, %151 : vector<128x128xf32>
      %cst_65 = arith.constant 0.000000e+00 : f32
      %154 = vector.shape_cast %148 : vector<128x1xi1> to vector<128x1xi1>
      %155 = vector.broadcast %154 : vector<128x1xi1> to vector<128x128xi1>
      %156 = vector.broadcast %cst_65 : f32 to vector<128x128xf32>
      %157 = arith.select %155, %153, %156 : vector<128x128xi1>, vector<128x128xf32>
      %158 = arith.addf %145, %157 : vector<128x128xf32>
      %159 = vector.extract_strided_slice %40 {offsets = [0, 9], sizes = [128, 1], strides = [1, 1]} : vector<128x128xf32> to vector<128x1xf32>
      %cst_66 = arith.constant 0.000000e+00 : f32
      %160 = vector.broadcast %cst_66 : f32 to vector<128x1xf32>
      %161 = arith.cmpf ogt, %159, %160 : vector<128x1xf32>
      %162 = arith.index_cast %11 : i32 to index
      %c9 = arith.constant 9 : index
      %c0_67 = arith.constant 0 : index
      %c0_68 = arith.constant 0 : index
      %163 = vector.load %arg10[%162, %c9, %c0_67, %c0_68] : memref<2x10x128x128xf32, #tpu.memory_space<vmem>>, vector<1x1x128x128xf32>
      %164 = vector.shape_cast %163 : vector<1x1x128x128xf32> to vector<128x128xf32>
      %165 = vector.broadcast %159 : vector<128x1xf32> to vector<128x128xf32>
      %166 = arith.mulf %165, %164 : vector<128x128xf32>
      %cst_69 = arith.constant 0.000000e+00 : f32
      %167 = vector.shape_cast %161 : vector<128x1xi1> to vector<128x1xi1>
      %168 = vector.broadcast %167 : vector<128x1xi1> to vector<128x128xi1>
      %169 = vector.broadcast %cst_69 : f32 to vector<128x128xf32>
      %170 = arith.select %168, %166, %169 : vector<128x128xi1>, vector<128x128xf32>
      %171 = arith.addf %158, %170 : vector<128x128xf32>
      %172 = arith.index_cast %11 : i32 to index
      %c0_70 = arith.constant 0 : index
      %c0_71 = arith.constant 0 : index
      %173 = vector.load %arg9[%172, %c0_70, %c0_71] : memref<2x128x128xf32, #tpu.memory_space<vmem>>, vector<1x128x128xf32>
      %174 = vector.shape_cast %173 : vector<1x128x128xf32> to vector<128x128xf32>
      %175 = tpu.concatenate %174, %171 in 1 : vector<128x128xf32>, vector<128x128xf32> -> vector<128x256xf32>
      %176 = arith.truncf %175 : vector<128x256xf32> to vector<128x256xbf16>
      %c0_72 = arith.constant 0 : index
      %c0_73 = arith.constant 0 : index
      %177 = vector.load %arg7[%c0_72, %c0_73] : memref<256x128xbf16, #tpu.memory_space<vmem>>, vector<256x128xbf16>
      %cst_74 = arith.constant dense<0.000000e+00> : vector<128x128xf32>
      %178 = tpu.matmul %176, %177, %cst_74 {dimension_numbers = #tpu.dot_dimension_numbers<[1], [0], [0], [1], [0, 0, 1, 1], [], []>} : vector<128x256xbf16>, vector<256x128xbf16>, vector<128x128xf32> -> vector<128x128xf32>
      %179 = tpu.iota {dimensions = array<i32: 0>} : vector<128x1xi32>
      %180 = vector.broadcast %33 : i32 to vector<128x1xi32>
      %181 = arith.cmpi slt, %179, %180 : vector<128x1xi32>
      %cst_75 = arith.constant 0.000000e+00 : f32
      %182 = vector.broadcast %cst_75 : f32 to vector<128x128xf32>
      %183 = arith.maximumf %178, %182 : vector<128x128xf32>
      %cst_76 = arith.constant 0.000000e+00 : f32
      %184 = vector.shape_cast %181 : vector<128x1xi1> to vector<128x1xi1>
      %185 = vector.broadcast %184 : vector<128x1xi1> to vector<128x128xi1>
      %186 = vector.broadcast %cst_76 : f32 to vector<128x128xf32>
      %187 = arith.select %185, %183, %186 : vector<128x128xi1>, vector<128x128xf32>
      %c0_77 = arith.constant 0 : index
      %c0_78 = arith.constant 0 : index
      %188 = vector.load %arg8[%c0_77, %c0_78] : memref<128x128xf32, #tpu.memory_space<vmem>>, vector<128x128xf32>
      tpu.vector_store %arg8[%c0_77, %c0_78], %187 {strides = array<i32>} : memref<128x128xf32, #tpu.memory_space<vmem>>, vector<128x128xf32>,
    } else {
    }
    %c0_i32_26 = arith.constant 0 : i32
    %37 = arith.cmpi eq, %33, %c0_i32_26 : i32
    %38 = arith.extui %37 : i1 to i32
    %c0_i32_27 = arith.constant 0 : i32
    %39 = arith.cmpi ne, %38, %c0_i32_27 : i32
    scf.if %39 {
      %cst = arith.constant 0.000000e+00 : f32
      %40 = vector.broadcast %cst : f32 to vector<128x128xf32>
      %c0 = arith.constant 0 : index
      %c0_28 = arith.constant 0 : index
      %41 = vector.load %arg8[%c0, %c0_28] : memref<128x128xf32, #tpu.memory_space<vmem>>, vector<128x128xf32>
      tpu.vector_store %arg8[%c0, %c0_28], %40 {strides = array<i32>} : memref<128x128xf32, #tpu.memory_space<vmem>>, vector<128x128xf32>,
    } else {
    }
    return
  }
  func.func @transform_0(%arg0: i32, %arg1: i32, %arg2: memref<512xi32, #tpu.memory_space<smem>>, %arg3: memref<5120xi32, #tpu.memory_space<smem>>, %arg4: memref<512xi32, #tpu.memory_space<smem>>) -> (i32, i32) {
    %c2_i32 = arith.constant 2 : i32
    %0 = arith.muli %arg0, %c2_i32 : i32
    %1 = arith.addi %0, %arg1 : i32
    %c0_i32 = arith.constant 0 : i32
    %c0_i32_0 = arith.constant 0 : i32
    return %1, %c0_i32 : i32, i32
  }
  func.func @transform_2(%arg0: i32, %arg1: i32, %arg2: memref<512xi32, #tpu.memory_space<smem>>, %arg3: memref<5120xi32, #tpu.memory_space<smem>>, %arg4: memref<512xi32, #tpu.memory_space<smem>>) -> (i32, i32) {
    %c0_i32 = arith.constant 0 : i32
    %c0_i32_0 = arith.constant 0 : i32
    %c0_i32_1 = arith.constant 0 : i32
    return %c0_i32, %c0_i32_0 : i32, i32
  }
  func.func @transform_3(%arg0: i32, %arg1: i32, %arg2: memref<512xi32, #tpu.memory_space<smem>>, %arg3: memref<5120xi32, #tpu.memory_space<smem>>, %arg4: memref<512xi32, #tpu.memory_space<smem>>) -> (i32, i32) {
    %c2_i32 = arith.constant 2 : i32
    %0 = arith.muli %arg0, %c2_i32 : i32
    %1 = arith.addi %0, %arg1 : i32
    %c0_i32 = arith.constant 0 : i32
    %c0_i32_0 = arith.constant 0 : i32
    return %1, %c0_i32 : i32, i32
  }
}

</mosaic_0001>

<llo_original>
// kernel: tpu_custom_call.1
$region0: #{tpu_custom_call.1}
  #allocation0 [shape = 'u32[]', space=smem, size = 0x4, offset = 0x4, fixed_abs, tag = 'smem constant byte address 0x4 - core index']
  #allocation1 [shape = 'u32[72,128]{1,0:T(1,128)}', space=vmem, size = 0x9000, scoped, tag = 'internal scratch']
  #allocation2 [shape = 'f32[2,128,128]{2,1,0:T(8,128)}', space=vmem, size = 0x20000, scoped, tag = 'scratch operand']
  #allocation3 [shape = 'f32[2,10,128,128]{3,2,1,0:T(8,128)}', space=vmem, size = 0x140000, scoped, tag = 'scratch operand']
  #allocation4 [shape = 's32[2]{0}', space=sflag, size = 0x8, scoped, tag = 'scratch operand']
  #allocation5 [shape = 's32[1]{0}', space=sflag, size = 0x4, scoped, tag = 'scoped memory for tpu_custom_call.1']
  #allocation6 [shape = 'u8[2048]{0}', space=smem, size = 0x800, scoped, tag = 'prefetched SMEM operand 0']
  #allocation7 [shape = 'u8[20480]{0}', space=smem, size = 0x5000, scoped, tag = 'prefetched SMEM operand 1']
  #allocation8 [shape = 'u8[2048]{0}', space=smem, size = 0x800, scoped, tag = 'prefetched SMEM operand 2']
  #allocation15 [shape = 's32[]', space=sflag, size = 0x4, offset = 0, fixed_abs, tag = 'sflag constant byte address 0x0 - dummy sync flag']
  #allocation16 [shape = 's32[]', space=sflag, size = 0x4, offset = 0, fixed_abs, tag = 'sflag constant byte address 0x0 - dummy sync flag']
  #allocation17 [shape = 'u32[]', space=smem, size = 0x4, offset = 0x44, fixed_abs, tag = 'smem constant byte address 0x44 - assertion arg 0']
  #allocation18 [shape = 'u32[]', space=smem, size = 0x4, offset = 0x48, fixed_abs, tag = 'smem constant byte address 0x48 - assertion arg 1']
  #allocation19 [shape = 's32[]', space=sflag, size = 0x4, offset = 0, fixed_abs, tag = 'sflag constant byte address 0x0 - dummy sync flag']
  #allocation20 [shape = 's32[]', space=sflag, size = 0x4, offset = 0, fixed_abs, tag = 'sflag constant byte address 0x0 - dummy sync flag']
  #allocation21 [shape = 's32[]', space=sflag, size = 0x4, offset = 0, fixed_abs, tag = 'sflag constant byte address 0x0 - dummy sync flag']
  #allocation22 [shape = 's32[]', space=sflag, size = 0x4, offset = 0, fixed_abs, tag = 'sflag constant byte address 0x0 - dummy sync flag']
  #allocation23 [shape = 's32[]', space=sflag, size = 0x4, offset = 0, fixed_abs, tag = 'sflag constant byte address 0x0 - dummy sync flag']
  #allocation24 [shape = 's32[]', space=sflag, size = 0x4, offset = 0, fixed_abs, tag = 'sflag constant byte address 0x0 - dummy sync flag']
  #allocation25 [shape = 's32[]', space=sflag, size = 0x4, offset = 0, fixed_abs, tag = 'sflag constant byte address 0x0 - dummy sync flag']
  #allocation26 [shape = 's32[]', space=sflag, size = 0x4, offset = 0, fixed_abs, tag = 'sflag constant byte address 0x0 - dummy sync flag']
  #allocation27 [shape = 's32[]', space=sflag, size = 0x4, offset = 0, fixed_abs, tag = 'sflag constant byte address 0x0 - dummy sync flag']
  #allocation28 [shape = 's32[]', space=sflag, size = 0x4, offset = 0, fixed_abs, tag = 'sflag constant byte address 0x0 - dummy sync flag']
  #allocation29 [shape = 's32[]', space=sflag, size = 0x4, offset = 0, fixed_abs, tag = 'sflag constant byte address 0x0 - dummy sync flag']
  #allocation30 [shape = 's32[]', space=sflag, size = 0x4, offset = 0, fixed_abs, tag = 'sflag constant byte address 0x0 - dummy sync flag']
  #allocation31 [shape = 's32[]', space=sflag, size = 0x4, offset = 0, fixed_abs, tag = 'sflag constant byte address 0x0 - dummy sync flag']
  #allocation32 [shape = 's32[]', space=sflag, size = 0x4, offset = 0, fixed_abs, tag = 'sflag constant byte address 0x0 - dummy sync flag']
  #allocation33 [shape = 's32[]', space=sflag, size = 0x4, offset = 0, fixed_abs, tag = 'sflag constant byte address 0x0 - dummy sync flag']
  #allocation34 [shape = 's32[]', space=sflag, size = 0x4, offset = 0, fixed_abs, tag = 'sflag constant byte address 0x0 - dummy sync flag']
  #allocation35 [shape = 's32[]', space=sflag, size = 0x4, offset = 0, fixed_abs, tag = 'sflag constant byte address 0x0 - dummy sync flag']
  #allocation36 [shape = 's32[]', space=sflag, size = 0x4, offset = 0, fixed_abs, tag = 'sflag constant byte address 0x0 - dummy sync flag']
  #allocation37 [shape = 's32[]', space=sflag, size = 0x4, offset = 0, fixed_abs, tag = 'sflag constant byte address 0x0 - dummy sync flag']
  #allocation38 [shape = 's32[]', space=sflag, size = 0x4, offset = 0, fixed_abs, tag = 'sflag constant byte address 0x0 - dummy sync flag']
  #allocation39 [shape = 's32[]', space=sflag, size = 0x4, offset = 0, fixed_abs, tag = 'sflag constant byte address 0x0 - dummy sync flag']
  #allocation40 [shape = 's32[]', space=sflag, size = 0x4, offset = 0, fixed_abs, tag = 'sflag constant byte address 0x0 - dummy sync flag']
  #allocation41 [shape = 's32[]', space=sflag, size = 0x4, offset = 0, fixed_abs, tag = 'sflag constant byte address 0x0 - dummy sync flag']
  #allocation42 [shape = 's32[]', space=sflag, size = 0x4, offset = 0, fixed_abs, tag = 'sflag constant byte address 0x0 - dummy sync flag']
  #allocation43 [shape = 's32[]', space=sflag, size = 0x4, offset = 0, fixed_abs, tag = 'sflag constant byte address 0x0 - dummy sync flag']
  #allocation44 [shape = 's32[]', space=sflag, size = 0x4, offset = 0, fixed_abs, tag = 'sflag constant byte address 0x0 - dummy sync flag']
  #allocation45 [shape = 's32[]', space=sflag, size = 0x4, offset = 0, fixed_abs, tag = 'sflag constant byte address 0x0 - dummy sync flag']
  #allocation46 [shape = 's32[]', space=sflag, size = 0x4, offset = 0, fixed_abs, tag = 'sflag constant byte address 0x0 - dummy sync flag']
  #allocation47 [shape = 's32[]', space=sflag, size = 0x4, offset = 0, fixed_abs, tag = 'sflag constant byte address 0x0 - dummy sync flag']
  #allocation48 [shape = 's32[]', space=sflag, size = 0x4, offset = 0, fixed_abs, tag = 'sflag constant byte address 0x0 - dummy sync flag']
  #allocation49 [shape = 's32[]', space=sflag, size = 0x4, offset = 0, fixed_abs, tag = 'sflag constant byte address 0x0 - dummy sync flag']
  #allocation50 [shape = 's32[]', space=sflag, size = 0x4, offset = 0, fixed_abs, tag = 'sflag constant byte address 0x0 - dummy sync flag']
  #allocation51 [shape = 's32[]', space=sflag, size = 0x4, offset = 0, fixed_abs, tag = 'sflag constant byte address 0x0 - dummy sync flag']
  #allocation52 [shape = 's32[]', space=sflag, size = 0x4, offset = 0, fixed_abs, tag = 'sflag constant byte address 0x0 - dummy sync flag']
  #allocation53 [shape = 's32[]', space=sflag, size = 0x4, offset = 0, fixed_abs, tag = 'sflag constant byte address 0x0 - dummy sync flag']
  #allocation54 [shape = 's32[]', space=sflag, size = 0x4, offset = 0, fixed_abs, tag = 'sflag constant byte address 0x0 - dummy sync flag']
  #allocation55 [shape = 's32[]', space=sflag, size = 0x4, offset = 0, fixed_abs, tag = 'sflag constant byte address 0x0 - dummy sync flag']
  #allocation56 [shape = 's32[]', space=sflag, size = 0x4, offset = 0, fixed_abs, tag = 'sflag constant byte address 0x0 - dummy sync flag']
  #allocation57 [shape = 's32[]', space=sflag, size = 0x4, offset = 0, fixed_abs, tag = 'sflag constant byte address 0x0 - dummy sync flag']
  #allocation58 [shape = 's32[]', space=sflag, size = 0x4, offset = 0, fixed_abs, tag = 'sflag constant byte address 0x0 - dummy sync flag']
  #allocation59 [shape = 's32[]', space=sflag, size = 0x4, offset = 0, fixed_abs, tag = 'sflag constant byte address 0x0 - dummy sync flag']
  #allocation60 [shape = 's32[]', space=sflag, size = 0x4, offset = 0, fixed_abs, tag = 'sflag constant byte address 0x0 - dummy sync flag']
  %s0 = inlined_call_operand.hbm [shape: s32[512], index: 0, kind: input, shape index: {}]
  %s1 = inlined_call_operand.hbm [shape: s32[5120], index: 1, kind: input, shape index: {}]
  %s2 = inlined_call_operand.hbm [shape: s32[512], index: 2, kind: input, shape index: {}]
  %s3 = inlined_call_operand.hbm [shape: f32[512,128], index: 3, kind: input, shape index: {}]
  %s4 = inlined_call_operand.hbm [shape: f32[512,128], index: 4, kind: input, shape index: {}]
  %s5 = inlined_call_operand.hbm [shape: bf16[256,128], index: 5, kind: input, shape index: {}]
  %s6 = inlined_call_operand.hbm [shape: f32[512,128], index: 6, kind: output, shape index: {}]
  %s7 = sld [smem:[#allocation0]]
  $region294: #{tpu_custom_call.1} parent=0
    _
  %s9 = ssub.s32 1, %s7
  %s10 = scalar_select 0, %s9, %s7
  %s12 = sshll.u32 %s0, 4
  %s13 = int_to_ptr.hbm [resolvable:$true] %s12
  %15 = dma.hbm_to_smem %s13, 64, [#allocation6], [#allocation5]
  %s17 = sshll.u32 %s1, 4
  %s18 = int_to_ptr.hbm [resolvable:$true] %s17
  %20 = dma.hbm_to_smem %s18, 640, [#allocation7], [#allocation5]
  %s22 = sshll.u32 %s2, 4
  %s23 = int_to_ptr.hbm [resolvable:$true] %s22
  %25 = dma.hbm_to_smem %s23, 64, [#allocation8], [#allocation5]
  %27 = dma.done [#allocation5], 768
  %28 = sfence
  $region1: #{tpu_custom_call.1} parent=0
    #allocation9 [shape = 'u8[131072]{0}', space=vmem, size = 0x20000, scoped, tag = 'input window, operand 3']
    #allocation10 [shape = 's32[2]{0}', space=sflag, size = 0x8, scoped, tag = 'scoped memory for tpu_custom_call.1']
    #allocation11 [shape = 's32[2]{0}', space=sflag, size = 0x8, scoped, tag = 'scoped memory for tpu_custom_call.1']
    #allocation12 [shape = 'u8[65536]{0}', space=vmem, size = 0x10000, scoped, tag = 'input window, operand 5, single buffered']
    #allocation13 [shape = 's32[1]{0}', space=sflag, size = 0x4, scoped, tag = 'scoped memory for tpu_custom_call.1']
    #allocation14 [shape = 'u8[131072]{0}', space=vmem, size = 0x20000, scoped, tag = 'output window, operand 0']
    %29 = vsyncpa [#allocation10], 0
    %s30 = scalar_lea.sflag [#allocation10], 1
    %31 = vsyncpa %s30, 0
    %32 = vsyncpa [#allocation13], 0
    %33 = vsyncpa [#allocation11], 0
    %s34 = scalar_lea.sflag [#allocation11], 1
    %35 = vsyncpa %s34, 0
    loop: start=0, step=1, limit=6
    $region2: #{tpu_custom_call.1} parent=1 // loop_pre_header
      _
    $region3: #{tpu_custom_call.1} parent=1 // loop_header
      %s37 = sphi 0, %s41
      %p38 = scmp.ge.s32.totalorder %s37, 6
      %s44 = sphi 0, %s56
      %s45 = sphi 0, %s52
      %s46 = sphi 0, %s44
      %s47 = sphi 0, %s45
      %s48 = sphi 0, %s46
      %s49 = sphi 0, %s47
      %s63 = sphi 0, %s65
      %s66 = sphi 0, %s63
      %s67 = sphi 0, %s66
      %s83 = sphi 0, %s67
      %s87 = sphi 0, %s87
      %s89 = sphi 0, %s87
      %s90 = sphi 0, %s89
      %s104 = sphi 0, %s90
      %s114 = sphi 0, %s116
      %s117 = sphi 0, %s114
      %s118 = sphi 0, %s117
      %s134 = sphi 0, %s118
    $region4: #{tpu_custom_call.1} parent=1 // loop_header_branch
      %40 = sbr.rel (%p38) target = $region8
    $region5: #{tpu_custom_call.1} parent=1 // loop_body
      %s42 = ssub.s32 %s37, 1
      %s43 = ssub.s32 %s37, 2
      %s50 = sadd.s32 1, %s45
      %p51 = scmp.ge.s32.totalorder %s50, 2
      %s52 = scalar_select %p51, 0, %s50
      %s53 = sadd.s32 1, %s44
      %s54 = scalar_select %p51, %s53, %s44
      %p55 = scmp.ge.s32.totalorder %s54, 2
      %s56 = scalar_select %p55, 0, %s54
      %s57 = smul.u32 %s44, 2
      %s58 = sadd.s32 %s57, %s45
      %s59 = smul.u32 %s56, 2
      %s60 = sadd.s32 %s59, %s52
      %s61 = ssub.s32 %s58, %s60
      %p62 = scmp.eq.s32.totalorder %s61, 0
      %s64 = sadd.s32 %s63, 1
      %s65 = scalar_select %p62, %s63, %s64
      %p68 = pneg %p62
      %p69 = scmp.eq.s32.totalorder %s37, 3
      %p70 = por %p68, %p69
      %p71 = scmp.ne.s32.totalorder %s63, %s66
      %p72 = scmp.eq.s32.totalorder %s37, 0
      %p73 = por %p71, %p72
      %p74 = scmp.ne.s32.totalorder %s63, %s66
      %p75 = scmp.eq.s32.totalorder %s42, 3
      %p76 = por %p74, %p75
      %p77 = scmp.ne.s32.totalorder %s66, %s67
      %p78 = scmp.eq.s32.totalorder %s42, 0
      %p79 = por %p77, %p78
      %p80 = scmp.ne.s32.totalorder %s66, %s67
      %p81 = scmp.eq.s32.totalorder %s43, 3
      %p82 = por %p80, %p81
      %p84 = scmp.ne.s32.totalorder %s67, %s83
      %p85 = scmp.eq.s32.totalorder %s43, 0
      %p86 = por %p84, %p85
      %s88 = sadd.s32 %s87, 1
      %p91 = scmp.eq.s32.totalorder %s37, 3
      %p92 = scmp.ne.s32.totalorder %s87, %s89
      %p93 = scmp.eq.s32.totalorder %s37, 0
      %p94 = por %p92, %p93
      %p95 = scmp.ne.s32.totalorder %s87, %s89
      %p96 = scmp.eq.s32.totalorder %s42, 3
      %p97 = por %p95, %p96
      %p98 = scmp.ne.s32.totalorder %s89, %s90
      %p99 = scmp.eq.s32.totalorder %s42, 0
      %p100 = por %p98, %p99
      %p101 = scmp.ne.s32.totalorder %s89, %s90
      %p102 = scmp.eq.s32.totalorder %s43, 3
      %p103 = por %p101, %p102
      %p105 = scmp.ne.s32.totalorder %s90, %s104
      %p106 = scmp.eq.s32.totalorder %s43, 0
      %p107 = por %p105, %p106
      %s108 = smul.u32 %s44, 2
      %s109 = sadd.s32 %s108, %s45
      %s110 = smul.u32 %s56, 2
      %s111 = sadd.s32 %s110, %s52
      %s112 = ssub.s32 %s109, %s111
      %p113 = scmp.eq.s32.totalorder %s112, 0
      %s115 = sadd.s32 %s114, 1
      %s116 = scalar_select %p113, %s114, %s115
      %p119 = pneg %p113
      %p120 = scmp.eq.s32.totalorder %s37, 3
      %p121 = por %p119, %p120
      %p122 = scmp.ne.s32.totalorder %s114, %s117
      %p123 = scmp.eq.s32.totalorder %s37, 0
      %p124 = por %p122, %p123
      %p125 = scmp.ne.s32.totalorder %s114, %s117
      %p126 = scmp.eq.s32.totalorder %s42, 3
      %p127 = por %p125, %p126
      %p128 = scmp.ne.s32.totalorder %s117, %s118
      %p129 = scmp.eq.s32.totalorder %s42, 0
      %p130 = por %p128, %p129
      %p131 = scmp.ne.s32.totalorder %s117, %s118
      %p132 = scmp.eq.s32.totalorder %s43, 3
      %p133 = por %p131, %p132
      %p135 = scmp.ne.s32.totalorder %s118, %s134
      %p136 = scmp.eq.s32.totalorder %s43, 0
      %p137 = por %p135, %p136
      %p138 = scmp.le.s32.totalorder 1, %s37
      %p139 = scmp.lt.s32.totalorder %s37, 5
      %p140 = pnand %p138, %p139
      %p141 = pneg %p140
      // Predicated region
      $region9: #{tpu_custom_call.1} parent=5 // pred_check
        _
      $region10: #{tpu_custom_call.1} parent=5 // pred_check_branch
        %143 = sbr.rel (%p140) target = $region12
      $region11: #{tpu_custom_call.1} parent=5 // pred_region
        %s144 = ssub.s32 %s37, 1
        // Predicated region
        $region13: #{tpu_custom_call.1} parent=11 // pred_check
          %p145 = pneg %p100
        $region14: #{tpu_custom_call.1} parent=11 // pred_check_branch
          %147 = sbr.rel (%p145) target = $region16
        $region15: #{tpu_custom_call.1} parent=11 // pred_region
          %149 = vsyncadd [#allocation13], 0
          %s150 = sshll.u32 %s5, 4
          %s151 = int_to_ptr.hbm [resolvable:$true] %s150
          %s152 = sshll.u32 [#allocation12], 4
          %s153 = int_to_ptr.vmem [resolvable:$true] %s152
          %158 = dma.hbm_to_vmem [thread:$0]  %s151, 2048, %s153, [#allocation13], 64, 64, 4
        $region16: #{tpu_custom_call.1} parent=11 // pred_fallthru
          _
      $region12: #{tpu_custom_call.1} parent=5 // pred_fallthru
        _
      %p159 = scmp.lt.s32.totalorder %s37, 4
      // Predicated region
      $region17: #{tpu_custom_call.1} parent=5 // pred_check
        %p160 = pneg %p159
      $region18: #{tpu_custom_call.1} parent=5 // pred_check_branch
        %162 = sbr.rel (%p160) target = $region20
      $region19: #{tpu_custom_call.1} parent=5 // pred_region
        // Predicated region
        $region21: #{tpu_custom_call.1} parent=19 // pred_check
          %p163 = pneg %p73
        $region22: #{tpu_custom_call.1} parent=19 // pred_check_branch
          %165 = sbr.rel (%p163) target = $region24
        $region23: #{tpu_custom_call.1} parent=19 // pred_region
          %s166 = sand.u32 %s63, 1
          %s167 = scalar_lea.sflag [#allocation10], %s166
          %s168 = sand.u32 %s63, 1
          %s169 = smul.addr %s168, 128
          %s170 = scalar_lea.vmem [#allocation9], %s169
          %s171 = smul.u32 %s44, 2
          %s172 = sadd.s32 %s171, %s45
          %s173 = smul.u32 16, %s172
          %175 = vsyncadd %s167, 0
          %s176 = smul.addr %s173, 8
          %s177 = scalar_lea.hbm %s3, %s176
          %s178 = sshll.u32 %s177, 4
          %s179 = int_to_ptr.hbm [resolvable:$true] %s178
          %s180 = sshll.u32 %s170, 4
          %s181 = int_to_ptr.vmem [resolvable:$true] %s180
          %186 = dma.hbm_to_vmem [thread:$0]  %s179, 2048, %s181, %s167, 128, 128, 8
        $region24: #{tpu_custom_call.1} parent=19 // pred_fallthru
          _
      $region20: #{tpu_custom_call.1} parent=5 // pred_fallthru
        _
      %p187 = scmp.le.s32.totalorder 1, %s37
      %p188 = scmp.lt.s32.totalorder %s37, 5
      %p189 = pnand %p187, %p188
      %p190 = pneg %p189
      // Predicated region
      $region25: #{tpu_custom_call.1} parent=5 // pred_check
        _
      $region26: #{tpu_custom_call.1} parent=5 // pred_check_branch
        %192 = sbr.rel (%p189) target = $region28
      $region27: #{tpu_custom_call.1} parent=5 // pred_region
        %s193 = ssub.s32 %s37, 1
        %s194 = sand.u32 %s66, 1
        %s195 = scalar_lea.sflag [#allocation10], %s194
        %s196 = sand.u32 %s66, 1
        %s197 = smul.addr %s196, 128
        %s198 = scalar_lea.vmem [#allocation9], %s197
        // Predicated region
        $region29: #{tpu_custom_call.1} parent=27 // pred_check
          %p199 = pneg %p79
        $region30: #{tpu_custom_call.1} parent=27 // pred_check_branch
          %201 = sbr.rel (%p199) target = $region32
        $region31: #{tpu_custom_call.1} parent=27 // pred_region
          %203 = dma.done %s195, 2048
        $region32: #{tpu_custom_call.1} parent=27 // pred_fallthru
          _
        // Predicated region
        $region33: #{tpu_custom_call.1} parent=27 // pred_check
          %p204 = pneg %p100
        $region34: #{tpu_custom_call.1} parent=27 // pred_check_branch
          %206 = sbr.rel (%p204) target = $region36
        $region35: #{tpu_custom_call.1} parent=27 // pred_region
          %208 = dma.done [#allocation13], 2048
        $region36: #{tpu_custom_call.1} parent=27 // pred_fallthru
          _
        %s209 = sand.u32 %s66, 1
        %s210 = scalar_lea.sflag [#allocation10], %s209
        %s211 = sand.u32 %s66, 1
        %s212 = smul.addr %s211, 128
        %s213 = scalar_lea.vmem [#allocation9], %s212
        %p214 = pneg %p79
        %p215 = pneg %p76
        %p216 = pneg %p100
        %p217 = pneg %p97
        %p218 = pneg %p130
        %p219 = pneg %p127
        %s220 = sand.u32 %s117, 1
        %s221 = scalar_lea.sflag [#allocation11], %s220
        %s222 = sand.u32 %s117, 1
        %s223 = smul.addr %s222, 128
        %s224 = scalar_lea.vmem [#allocation14], %s223
        %s225 = smul.u32 %s46, 2
        %s226 = sadd.s32 %s225, %s47
        %s227 = smul.u32 16, %s226
        %s228 = smul.u32 %s46, 2
        %s229 = sadd.s32 %s228, %s47
        %s230 = smul.u32 16, %s229
        %s231 = smul.u32 %s46, 2
        %s232 = sadd.s32 %s231, %s47
        %p233 = scmp.lt.s32.totalorder %s47, 0
        %s234 = ssub.s32 0, %s47
        %s235 = scalar_select %p233, %s234, %s47
        %s236 = sand.u32 %s235, 1
        %s237 = ssub.s32 0, %s236
        %s238 = scalar_select %p233, %s237, %s236
        %p239 = scmp.ne.s32.totalorder %s238, 0
        %p240 = scmp.lt.s32.totalorder %s238, 0
        %p241 = pnand %p240, %p239
        %p242 = pneg %p241
        %s243 = sadd.s32 %s238, 2
        %s244 = scalar_select %p242, %s243, %s238
        %p245 = scmp.eq.s32.totalorder %s47, 0
        // Predicated region
        $region37: #{tpu_custom_call.1} parent=27 // pred_check
          %p246 = pneg %p245
        $region38: #{tpu_custom_call.1} parent=27 // pred_check_branch
          %248 = sbr.rel (%p246) target = $region40
        $region39: #{tpu_custom_call.1} parent=27 // pred_region
          %s249 = smul.u32 %s232, 128
          %s250 = ssub.s32 300, %s249
          %p251 = scmp.gt.s32.totalorder %s250, 0
          %s252 = scalar_select %p251, %s250, 0
          %p253 = scmp.lt.s32.totalorder %s252, 128
          %s254 = scalar_select %p253, %s252, 128
          // While loop
          $region41: #{tpu_custom_call.1} parent=39 // loop_pre_header
            _
          $region42: #{tpu_custom_call.1} parent=39 // loop_header
            %s256 = sphi 0, %s258
            %p257 = scmp.ge.s32.totalorder %s256, %s254
          $region43: #{tpu_custom_call.1} parent=39 // loop_header_branch
            %260 = sbr.rel (%p257) target = $region47
          $region44: #{tpu_custom_call.1} parent=39 // loop_body
            %s261 = sadd.s32 %s249, %s256
            %s262 = sld [smem:[#allocation6 + %s261]]
            %s263 = scalar_lea.hbm %s4, %s262
            %s264 = smul.u32 %s244, 128
            %s265 = sadd.s32 %s256, %s264
            %s266 = scalar_lea.vmem [#allocation2], %s265
            %s267 = scalar_lea.sflag [#allocation4], %s244
            // Predicated region
            $region48: #{tpu_custom_call.1} parent=44 // pred_check
              _
            $region49: #{tpu_custom_call.1} parent=44 // pred_check_branch
              %269 = sbr.rel target = $region51
            $region50: #{tpu_custom_call.1} parent=44 // pred_region
              %270 = sst [smem:[#allocation17]] [#allocation16]
              %271 = sst [smem:[#allocation18]] [#allocation15]
            $region51: #{tpu_custom_call.1} parent=44 // pred_fallthru
              _
            %273 = shalt.err (0)
            %s275 = sshll.u32 %s263, 4
            %s276 = int_to_ptr.hbm [resolvable:$true] %s275
            %s277 = sshll.u32 %s266, 4
            %s278 = int_to_ptr.vmem [resolvable:$true] %s277
            %280 = dma.hbm_to_vmem [thread:$0]  %s276, 16, %s278, %s267
            %s281 = sld [smem:[#allocation8 + %s261]]
            %p282 = scmp.gt.s32.totalorder %s281, 0
            // Predicated region
            $region52: #{tpu_custom_call.1} parent=44 // pred_check
              %p283 = pneg %p282
            $region53: #{tpu_custom_call.1} parent=44 // pred_check_branch
              %285 = sbr.rel (%p283) target = $region55
            $region54: #{tpu_custom_call.1} parent=44 // pred_region
              %s286 = smul.u32 %s261, 10
              %s287 = sld [smem:[#allocation7 + %s286]]
              %s288 = scalar_lea.hbm %s4, %s287
              %s289 = smul.u32 %s244, 1280
              %s290 = sadd.s32 %s256, %s289
              %s291 = scalar_lea.vmem [#allocation3], %s290
              // Predicated region
              $region56: #{tpu_custom_call.1} parent=54 // pred_check
                _
              $region57: #{tpu_custom_call.1} parent=54 // pred_check_branch
                %293 = sbr.rel target = $region59
              $region58: #{tpu_custom_call.1} parent=54 // pred_region
                %294 = sst [smem:[#allocation17]] [#allocation20]
                %295 = sst [smem:[#allocation18]] [#allocation19]
              $region59: #{tpu_custom_call.1} parent=54 // pred_fallthru
                _
              %297 = shalt.err (0)
              %s299 = sshll.u32 %s288, 4
              %s300 = int_to_ptr.hbm [resolvable:$true] %s299
              %s301 = sshll.u32 %s291, 4
              %s302 = int_to_ptr.vmem [resolvable:$true] %s301
              %304 = dma.hbm_to_vmem [thread:$0]  %s300, 16, %s302, %s267
            $region55: #{tpu_custom_call.1} parent=44 // pred_fallthru
              _
            %p305 = scmp.gt.s32.totalorder %s281, 1
            // Predicated region
            $region60: #{tpu_custom_call.1} parent=44 // pred_check
              %p306 = pneg %p305
            $region61: #{tpu_custom_call.1} parent=44 // pred_check_branch
              %308 = sbr.rel (%p306) target = $region63
            $region62: #{tpu_custom_call.1} parent=44 // pred_region
              %s309 = smul.u32 %s261, 10
              %s310 = sadd.s32 %s309, 1
              %s311 = sld [smem:[#allocation7 + %s310]]
              %s312 = scalar_lea.hbm %s4, %s311
              %s313 = sadd.s32 %s256, 128
              %s314 = smul.u32 %s244, 1280
              %s315 = sadd.s32 %s313, %s314
              %s316 = scalar_lea.vmem [#allocation3], %s315
              // Predicated region
              $region64: #{tpu_custom_call.1} parent=62 // pred_check
                _
              $region65: #{tpu_custom_call.1} parent=62 // pred_check_branch
                %318 = sbr.rel target = $region67
              $region66: #{tpu_custom_call.1} parent=62 // pred_region
                %319 = sst [smem:[#allocation17]] [#allocation22]
                %320 = sst [smem:[#allocation18]] [#allocation21]
              $region67: #{tpu_custom_call.1} parent=62 // pred_fallthru
                _
              %322 = shalt.err (0)
              %s324 = sshll.u32 %s312, 4
              %s325 = int_to_ptr.hbm [resolvable:$true] %s324
              %s326 = sshll.u32 %s316, 4
              %s327 = int_to_ptr.vmem [resolvable:$true] %s326
              %329 = dma.hbm_to_vmem [thread:$0]  %s325, 16, %s327, %s267
            $region63: #{tpu_custom_call.1} parent=44 // pred_fallthru
              _
            %p330 = scmp.gt.s32.totalorder %s281, 2
            // Predicated region
            $region68: #{tpu_custom_call.1} parent=44 // pred_check
              %p331 = pneg %p330
            $region69: #{tpu_custom_call.1} parent=44 // pred_check_branch
              %333 = sbr.rel (%p331) target = $region71
            $region70: #{tpu_custom_call.1} parent=44 // pred_region
              %s334 = smul.u32 %s261, 10
              %s335 = sadd.s32 %s334, 2
              %s336 = sld [smem:[#allocation7 + %s335]]
              %s337 = scalar_lea.hbm %s4, %s336
              %s338 = sadd.s32 %s256, 256
              %s339 = smul.u32 %s244, 1280
              %s340 = sadd.s32 %s338, %s339
              %s341 = scalar_lea.vmem [#allocation3], %s340
              // Predicated region
              $region72: #{tpu_custom_call.1} parent=70 // pred_check
                _
              $region73: #{tpu_custom_call.1} parent=70 // pred_check_branch
                %343 = sbr.rel target = $region75
              $region74: #{tpu_custom_call.1} parent=70 // pred_region
                %344 = sst [smem:[#allocation17]] [#allocation24]
                %345 = sst [smem:[#allocation18]] [#allocation23]
              $region75: #{tpu_custom_call.1} parent=70 // pred_fallthru
                _
              %347 = shalt.err (0)
              %s349 = sshll.u32 %s337, 4
              %s350 = int_to_ptr.hbm [resolvable:$true] %s349
              %s351 = sshll.u32 %s341, 4
              %s352 = int_to_ptr.vmem [resolvable:$true] %s351
              %354 = dma.hbm_to_vmem [thread:$0]  %s350, 16, %s352, %s267
            $region71: #{tpu_custom_call.1} parent=44 // pred_fallthru
              _
            %p355 = scmp.gt.s32.totalorder %s281, 3
            // Predicated region
            $region76: #{tpu_custom_call.1} parent=44 // pred_check
              %p356 = pneg %p355
            $region77: #{tpu_custom_call.1} parent=44 // pred_check_branch
              %358 = sbr.rel (%p356) target = $region79
            $region78: #{tpu_custom_call.1} parent=44 // pred_region
              %s359 = smul.u32 %s261, 10
              %s360 = sadd.s32 %s359, 3
              %s361 = sld [smem:[#allocation7 + %s360]]
              %s362 = scalar_lea.hbm %s4, %s361
              %s363 = sadd.s32 %s256, 384
              %s364 = smul.u32 %s244, 1280
              %s365 = sadd.s32 %s363, %s364
              %s366 = scalar_lea.vmem [#allocation3], %s365
              // Predicated region
              $region80: #{tpu_custom_call.1} parent=78 // pred_check
                _
              $region81: #{tpu_custom_call.1} parent=78 // pred_check_branch
                %368 = sbr.rel target = $region83
              $region82: #{tpu_custom_call.1} parent=78 // pred_region
                %369 = sst [smem:[#allocation17]] [#allocation26]
                %370 = sst [smem:[#allocation18]] [#allocation25]
              $region83: #{tpu_custom_call.1} parent=78 // pred_fallthru
                _
              %372 = shalt.err (0)
              %s374 = sshll.u32 %s362, 4
              %s375 = int_to_ptr.hbm [resolvable:$true] %s374
              %s376 = sshll.u32 %s366, 4
              %s377 = int_to_ptr.vmem [resolvable:$true] %s376
              %379 = dma.hbm_to_vmem [thread:$0]  %s375, 16, %s377, %s267
            $region79: #{tpu_custom_call.1} parent=44 // pred_fallthru
              _
            %p380 = scmp.gt.s32.totalorder %s281, 4
            // Predicated region
            $region84: #{tpu_custom_call.1} parent=44 // pred_check
              %p381 = pneg %p380
            $region85: #{tpu_custom_call.1} parent=44 // pred_check_branch
              %383 = sbr.rel (%p381) target = $region87
            $region86: #{tpu_custom_call.1} parent=44 // pred_region
              %s384 = smul.u32 %s261, 10
              %s385 = sadd.s32 %s384, 4
              %s386 = sld [smem:[#allocation7 + %s385]]
              %s387 = scalar_lea.hbm %s4, %s386
              %s388 = sadd.s32 %s256, 512
              %s389 = smul.u32 %s244, 1280
              %s390 = sadd.s32 %s388, %s389
              %s391 = scalar_lea.vmem [#allocation3], %s390
              // Predicated region
              $region88: #{tpu_custom_call.1} parent=86 // pred_check
                _
              $region89: #{tpu_custom_call.1} parent=86 // pred_check_branch
                %393 = sbr.rel target = $region91
              $region90: #{tpu_custom_call.1} parent=86 // pred_region
                %394 = sst [smem:[#allocation17]] [#allocation28]
                %395 = sst [smem:[#allocation18]] [#allocation27]
              $region91: #{tpu_custom_call.1} parent=86 // pred_fallthru
                _
              %397 = shalt.err (0)
              %s399 = sshll.u32 %s387, 4
              %s400 = int_to_ptr.hbm [resolvable:$true] %s399
              %s401 = sshll.u32 %s391, 4
              %s402 = int_to_ptr.vmem [resolvable:$true] %s401
              %404 = dma.hbm_to_vmem [thread:$0]  %s400, 16, %s402, %s267
            $region87: #{tpu_custom_call.1} parent=44 // pred_fallthru
              _
            %p405 = scmp.gt.s32.totalorder %s281, 5
            // Predicated region
            $region92: #{tpu_custom_call.1} parent=44 // pred_check
              %p406 = pneg %p405
            $region93: #{tpu_custom_call.1} parent=44 // pred_check_branch
              %408 = sbr.rel (%p406) target = $region95
            $region94: #{tpu_custom_call.1} parent=44 // pred_region
              %s409 = smul.u32 %s261, 10
              %s410 = sadd.s32 %s409, 5
              %s411 = sld [smem:[#allocation7 + %s410]]
              %s412 = scalar_lea.hbm %s4, %s411
              %s413 = sadd.s32 %s256, 640
              %s414 = smul.u32 %s244, 1280
              %s415 = sadd.s32 %s413, %s414
              %s416 = scalar_lea.vmem [#allocation3], %s415
              // Predicated region
              $region96: #{tpu_custom_call.1} parent=94 // pred_check
                _
              $region97: #{tpu_custom_call.1} parent=94 // pred_check_branch
                %418 = sbr.rel target = $region99
              $region98: #{tpu_custom_call.1} parent=94 // pred_region
                %419 = sst [smem:[#allocation17]] [#allocation30]
                %420 = sst [smem:[#allocation18]] [#allocation29]
              $region99: #{tpu_custom_call.1} parent=94 // pred_fallthru
                _
              %422 = shalt.err (0)
              %s424 = sshll.u32 %s412, 4
              %s425 = int_to_ptr.hbm [resolvable:$true] %s424
              %s426 = sshll.u32 %s416, 4
              %s427 = int_to_ptr.vmem [resolvable:$true] %s426
              %429 = dma.hbm_to_vmem [thread:$0]  %s425, 16, %s427, %s267
            $region95: #{tpu_custom_call.1} parent=44 // pred_fallthru
              _
            %p430 = scmp.gt.s32.totalorder %s281, 6
            // Predicated region
            $region100: #{tpu_custom_call.1} parent=44 // pred_check
              %p431 = pneg %p430
            $region101: #{tpu_custom_call.1} parent=44 // pred_check_branch
              %433 = sbr.rel (%p431) target = $region103
            $region102: #{tpu_custom_call.1} parent=44 // pred_region
              %s434 = smul.u32 %s261, 10
              %s435 = sadd.s32 %s434, 6
              %s436 = sld [smem:[#allocation7 + %s435]]
              %s437 = scalar_lea.hbm %s4, %s436
              %s438 = sadd.s32 %s256, 768
              %s439 = smul.u32 %s244, 1280
              %s440 = sadd.s32 %s438, %s439
              %s441 = scalar_lea.vmem [#allocation3], %s440
              // Predicated region
              $region104: #{tpu_custom_call.1} parent=102 // pred_check
                _
              $region105: #{tpu_custom_call.1} parent=102 // pred_check_branch
                %443 = sbr.rel target = $region107
              $region106: #{tpu_custom_call.1} parent=102 // pred_region
                %444 = sst [smem:[#allocation17]] [#allocation32]
                %445 = sst [smem:[#allocation18]] [#allocation31]
              $region107: #{tpu_custom_call.1} parent=102 // pred_fallthru
                _
              %447 = shalt.err (0)
              %s449 = sshll.u32 %s437, 4
              %s450 = int_to_ptr.hbm [resolvable:$true] %s449
              %s451 = sshll.u32 %s441, 4
              %s452 = int_to_ptr.vmem [resolvable:$true] %s451
              %454 = dma.hbm_to_vmem [thread:$0]  %s450, 16, %s452, %s267
            $region103: #{tpu_custom_call.1} parent=44 // pred_fallthru
              _
            %p455 = scmp.gt.s32.totalorder %s281, 7
            // Predicated region
            $region108: #{tpu_custom_call.1} parent=44 // pred_check
              %p456 = pneg %p455
            $region109: #{tpu_custom_call.1} parent=44 // pred_check_branch
              %458 = sbr.rel (%p456) target = $region111
            $region110: #{tpu_custom_call.1} parent=44 // pred_region
              %s459 = smul.u32 %s261, 10
              %s460 = sadd.s32 %s459, 7
              %s461 = sld [smem:[#allocation7 + %s460]]
              %s462 = scalar_lea.hbm %s4, %s461
              %s463 = sadd.s32 %s256, 896
              %s464 = smul.u32 %s244, 1280
              %s465 = sadd.s32 %s463, %s464
              %s466 = scalar_lea.vmem [#allocation3], %s465
              // Predicated region
              $region112: #{tpu_custom_call.1} parent=110 // pred_check
                _
              $region113: #{tpu_custom_call.1} parent=110 // pred_check_branch
                %468 = sbr.rel target = $region115
              $region114: #{tpu_custom_call.1} parent=110 // pred_region
                %469 = sst [smem:[#allocation17]] [#allocation34]
                %470 = sst [smem:[#allocation18]] [#allocation33]
              $region115: #{tpu_custom_call.1} parent=110 // pred_fallthru
                _
              %472 = shalt.err (0)
              %s474 = sshll.u32 %s462, 4
              %s475 = int_to_ptr.hbm [resolvable:$true] %s474
              %s476 = sshll.u32 %s466, 4
              %s477 = int_to_ptr.vmem [resolvable:$true] %s476
              %479 = dma.hbm_to_vmem [thread:$0]  %s475, 16, %s477, %s267
            $region111: #{tpu_custom_call.1} parent=44 // pred_fallthru
              _
            %p480 = scmp.gt.s32.totalorder %s281, 8
            // Predicated region
            $region116: #{tpu_custom_call.1} parent=44 // pred_check
              %p481 = pneg %p480
            $region117: #{tpu_custom_call.1} parent=44 // pred_check_branch
              %483 = sbr.rel (%p481) target = $region119
            $region118: #{tpu_custom_call.1} parent=44 // pred_region
              %s484 = smul.u32 %s261, 10
              %s485 = sadd.s32 %s484, 8
              %s486 = sld [smem:[#allocation7 + %s485]]
              %s487 = scalar_lea.hbm %s4, %s486
              %s488 = sadd.s32 %s256, 1024
              %s489 = smul.u32 %s244, 1280
              %s490 = sadd.s32 %s488, %s489
              %s491 = scalar_lea.vmem [#allocation3], %s490
              // Predicated region
              $region120: #{tpu_custom_call.1} parent=118 // pred_check
                _
              $region121: #{tpu_custom_call.1} parent=118 // pred_check_branch
                %493 = sbr.rel target = $region123
              $region122: #{tpu_custom_call.1} parent=118 // pred_region
                %494 = sst [smem:[#allocation17]] [#allocation36]
                %495 = sst [smem:[#allocation18]] [#allocation35]
              $region123: #{tpu_custom_call.1} parent=118 // pred_fallthru
                _
              %497 = shalt.err (0)
              %s499 = sshll.u32 %s487, 4
              %s500 = int_to_ptr.hbm [resolvable:$true] %s499
              %s501 = sshll.u32 %s491, 4
              %s502 = int_to_ptr.vmem [resolvable:$true] %s501
              %504 = dma.hbm_to_vmem [thread:$0]  %s500, 16, %s502, %s267
            $region119: #{tpu_custom_call.1} parent=44 // pred_fallthru
              _
            %p505 = scmp.gt.s32.totalorder %s281, 9
            // Predicated region
            $region124: #{tpu_custom_call.1} parent=44 // pred_check
              %p506 = pneg %p505
            $region125: #{tpu_custom_call.1} parent=44 // pred_check_branch
              %508 = sbr.rel (%p506) target = $region127
            $region126: #{tpu_custom_call.1} parent=44 // pred_region
              %s509 = smul.u32 %s261, 10
              %s510 = sadd.s32 %s509, 9
              %s511 = sld [smem:[#allocation7 + %s510]]
              %s512 = scalar_lea.hbm %s4, %s511
              %s513 = sadd.s32 %s256, 1152
              %s514 = smul.u32 %s244, 1280
              %s515 = sadd.s32 %s513, %s514
              %s516 = scalar_lea.vmem [#allocation3], %s515
              // Predicated region
              $region128: #{tpu_custom_call.1} parent=126 // pred_check
                _
              $region129: #{tpu_custom_call.1} parent=126 // pred_check_branch
                %518 = sbr.rel target = $region131
              $region130: #{tpu_custom_call.1} parent=126 // pred_region
                %519 = sst [smem:[#allocation17]] [#allocation38]
                %520 = sst [smem:[#allocation18]] [#allocation37]
              $region131: #{tpu_custom_call.1} parent=126 // pred_fallthru
                _
              %522 = shalt.err (0)
              %s524 = sshll.u32 %s512, 4
              %s525 = int_to_ptr.hbm [resolvable:$true] %s524
              %s526 = sshll.u32 %s516, 4
              %s527 = int_to_ptr.vmem [resolvable:$true] %s526
              %529 = dma.hbm_to_vmem [thread:$0]  %s525, 16, %s527, %s267
            $region127: #{tpu_custom_call.1} parent=44 // pred_fallthru
              _
          $region45: #{tpu_custom_call.1} parent=39 // loop_footer
            %s258 = sadd.s32 %s256, 1
          $region46: #{tpu_custom_call.1} parent=39 // loop_footer_branch
            %255 = sbr.rel target = $region42
          $region47: #{tpu_custom_call.1} parent=39 // loop_exit
            _
        $region40: #{tpu_custom_call.1} parent=27 // pred_fallthru
          _
        %s530 = smul.u32 %s232, 128
        %s531 = ssub.s32 300, %s530
        %p532 = scmp.gt.s32.totalorder %s531, 0
        %s533 = scalar_select %p532, %s531, 0
        %p534 = scmp.lt.s32.totalorder %s533, 128
        %s535 = scalar_select %p534, %s533, 128
        // While loop
        $region132: #{tpu_custom_call.1} parent=27 // loop_pre_header
          _
        $region133: #{tpu_custom_call.1} parent=27 // loop_header
          %s537 = sphi 0, %s539
          %p538 = scmp.ge.s32.totalorder %s537, %s535
        $region134: #{tpu_custom_call.1} parent=27 // loop_header_branch
          %541 = sbr.rel (%p538) target = $region138
        $region135: #{tpu_custom_call.1} parent=27 // loop_body
          %s542 = sadd.s32 %s530, %s537
          %s543 = sld [smem:[#allocation6 + %s542]]
          %s544 = scalar_lea.sflag [#allocation4], %s244
          %s545 = smul.u32 1, 1
          %s546 = sshll.u32 %s545, 4
          %547 = dma.done %s544, %s546
          %s548 = sld [smem:[#allocation8 + %s542]]
          %p549 = scmp.gt.s32.totalorder %s548, 0
          // Predicated region
          $region139: #{tpu_custom_call.1} parent=135 // pred_check
            %p550 = pneg %p549
          $region140: #{tpu_custom_call.1} parent=135 // pred_check_branch
            %552 = sbr.rel (%p550) target = $region142
          $region141: #{tpu_custom_call.1} parent=135 // pred_region
            %s553 = smul.u32 %s542, 10
            %s554 = sld [smem:[#allocation7 + %s553]]
            %s555 = sshll.u32 %s545, 4
            %556 = dma.done %s544, %s555
          $region142: #{tpu_custom_call.1} parent=135 // pred_fallthru
            _
          %p557 = scmp.gt.s32.totalorder %s548, 1
          // Predicated region
          $region143: #{tpu_custom_call.1} parent=135 // pred_check
            %p558 = pneg %p557
          $region144: #{tpu_custom_call.1} parent=135 // pred_check_branch
            %560 = sbr.rel (%p558) target = $region146
          $region145: #{tpu_custom_call.1} parent=135 // pred_region
            %s561 = smul.u32 %s542, 10
            %s562 = sadd.s32 %s561, 1
            %s563 = sld [smem:[#allocation7 + %s562]]
            %s564 = sshll.u32 %s545, 4
            %565 = dma.done %s544, %s564
          $region146: #{tpu_custom_call.1} parent=135 // pred_fallthru
            _
          %p566 = scmp.gt.s32.totalorder %s548, 2
          // Predicated region
          $region147: #{tpu_custom_call.1} parent=135 // pred_check
            %p567 = pneg %p566
          $region148: #{tpu_custom_call.1} parent=135 // pred_check_branch
            %569 = sbr.rel (%p567) target = $region150
          $region149: #{tpu_custom_call.1} parent=135 // pred_region
            %s570 = smul.u32 %s542, 10
            %s571 = sadd.s32 %s570, 2
            %s572 = sld [smem:[#allocation7 + %s571]]
            %s573 = sshll.u32 %s545, 4
            %574 = dma.done %s544, %s573
          $region150: #{tpu_custom_call.1} parent=135 // pred_fallthru
            _
          %p575 = scmp.gt.s32.totalorder %s548, 3
          // Predicated region
          $region151: #{tpu_custom_call.1} parent=135 // pred_check
            %p576 = pneg %p575
          $region152: #{tpu_custom_call.1} parent=135 // pred_check_branch
            %578 = sbr.rel (%p576) target = $region154
          $region153: #{tpu_custom_call.1} parent=135 // pred_region
            %s579 = smul.u32 %s542, 10
            %s580 = sadd.s32 %s579, 3
            %s581 = sld [smem:[#allocation7 + %s580]]
            %s582 = sshll.u32 %s545, 4
            %583 = dma.done %s544, %s582
          $region154: #{tpu_custom_call.1} parent=135 // pred_fallthru
            _
          %p584 = scmp.gt.s32.totalorder %s548, 4
          // Predicated region
          $region155: #{tpu_custom_call.1} parent=135 // pred_check
            %p585 = pneg %p584
          $region156: #{tpu_custom_call.1} parent=135 // pred_check_branch
            %587 = sbr.rel (%p585) target = $region158
          $region157: #{tpu_custom_call.1} parent=135 // pred_region
            %s588 = smul.u32 %s542, 10
            %s589 = sadd.s32 %s588, 4
            %s590 = sld [smem:[#allocation7 + %s589]]
            %s591 = sshll.u32 %s545, 4
            %592 = dma.done %s544, %s591
          $region158: #{tpu_custom_call.1} parent=135 // pred_fallthru
            _
          %p593 = scmp.gt.s32.totalorder %s548, 5
          // Predicated region
          $region159: #{tpu_custom_call.1} parent=135 // pred_check
            %p594 = pneg %p593
          $region160: #{tpu_custom_call.1} parent=135 // pred_check_branch
            %596 = sbr.rel (%p594) target = $region162
          $region161: #{tpu_custom_call.1} parent=135 // pred_region
            %s597 = smul.u32 %s542, 10
            %s598 = sadd.s32 %s597, 5
            %s599 = sld [smem:[#allocation7 + %s598]]
            %s600 = sshll.u32 %s545, 4
            %601 = dma.done %s544, %s600
          $region162: #{tpu_custom_call.1} parent=135 // pred_fallthru
            _
          %p602 = scmp.gt.s32.totalorder %s548, 6
          // Predicated region
          $region163: #{tpu_custom_call.1} parent=135 // pred_check
            %p603 = pneg %p602
          $region164: #{tpu_custom_call.1} parent=135 // pred_check_branch
            %605 = sbr.rel (%p603) target = $region166
          $region165: #{tpu_custom_call.1} parent=135 // pred_region
            %s606 = smul.u32 %s542, 10
            %s607 = sadd.s32 %s606, 6
            %s608 = sld [smem:[#allocation7 + %s607]]
            %s609 = sshll.u32 %s545, 4
            %610 = dma.done %s544, %s609
          $region166: #{tpu_custom_call.1} parent=135 // pred_fallthru
            _
          %p611 = scmp.gt.s32.totalorder %s548, 7
          // Predicated region
          $region167: #{tpu_custom_call.1} parent=135 // pred_check
            %p612 = pneg %p611
          $region168: #{tpu_custom_call.1} parent=135 // pred_check_branch
            %614 = sbr.rel (%p612) target = $region170
          $region169: #{tpu_custom_call.1} parent=135 // pred_region
            %s615 = smul.u32 %s542, 10
            %s616 = sadd.s32 %s615, 7
            %s617 = sld [smem:[#allocation7 + %s616]]
            %s618 = sshll.u32 %s545, 4
            %619 = dma.done %s544, %s618
          $region170: #{tpu_custom_call.1} parent=135 // pred_fallthru
            _
          %p620 = scmp.gt.s32.totalorder %s548, 8
          // Predicated region
          $region171: #{tpu_custom_call.1} parent=135 // pred_check
            %p621 = pneg %p620
          $region172: #{tpu_custom_call.1} parent=135 // pred_check_branch
            %623 = sbr.rel (%p621) target = $region174
          $region173: #{tpu_custom_call.1} parent=135 // pred_region
            %s624 = smul.u32 %s542, 10
            %s625 = sadd.s32 %s624, 8
            %s626 = sld [smem:[#allocation7 + %s625]]
            %s627 = sshll.u32 %s545, 4
            %628 = dma.done %s544, %s627
          $region174: #{tpu_custom_call.1} parent=135 // pred_fallthru
            _
          %p629 = scmp.gt.s32.totalorder %s548, 9
          // Predicated region
          $region175: #{tpu_custom_call.1} parent=135 // pred_check
            %p630 = pneg %p629
          $region176: #{tpu_custom_call.1} parent=135 // pred_check_branch
            %632 = sbr.rel (%p630) target = $region178
          $region177: #{tpu_custom_call.1} parent=135 // pred_region
            %s633 = smul.u32 %s542, 10
            %s634 = sadd.s32 %s633, 9
            %s635 = sld [smem:[#allocation7 + %s634]]
            %s636 = sshll.u32 %s545, 4
            %637 = dma.done %s544, %s636
          $region178: #{tpu_custom_call.1} parent=135 // pred_fallthru
            _
        $region136: #{tpu_custom_call.1} parent=27 // loop_footer
          %s539 = sadd.s32 %s537, 1
        $region137: #{tpu_custom_call.1} parent=27 // loop_footer_branch
          %536 = sbr.rel target = $region133
        $region138: #{tpu_custom_call.1} parent=27 // loop_exit
          _
        %s638 = sadd.s32 %s47, 1
        %p639 = scmp.lt.s32.totalorder %s638, 2
        // Predicated region
        $region179: #{tpu_custom_call.1} parent=27 // pred_check
          %p640 = pneg %p639
        $region180: #{tpu_custom_call.1} parent=27 // pred_check_branch
          %642 = sbr.rel (%p640) target = $region182
        $region181: #{tpu_custom_call.1} parent=27 // pred_region
          %s643 = sadd.s32 %s232, 1
          %s644 = ssub.s32 1, %s244
          %s645 = smul.u32 %s643, 128
          %s646 = ssub.s32 300, %s645
          %p647 = scmp.gt.s32.totalorder %s646, 0
          %s648 = scalar_select %p647, %s646, 0
          %p649 = scmp.lt.s32.totalorder %s648, 128
          %s650 = scalar_select %p649, %s648, 128
          // While loop
          $region183: #{tpu_custom_call.1} parent=181 // loop_pre_header
            _
          $region184: #{tpu_custom_call.1} parent=181 // loop_header
            %s652 = sphi 0, %s654
            %p653 = scmp.ge.s32.totalorder %s652, %s650
          $region185: #{tpu_custom_call.1} parent=181 // loop_header_branch
            %656 = sbr.rel (%p653) target = $region189
          $region186: #{tpu_custom_call.1} parent=181 // loop_body
            %s657 = sadd.s32 %s645, %s652
            %s658 = sld [smem:[#allocation6 + %s657]]
            %s659 = scalar_lea.hbm %s4, %s658
            %s660 = smul.u32 %s644, 128
            %s661 = sadd.s32 %s652, %s660
            %s662 = scalar_lea.vmem [#allocation2], %s661
            %s663 = scalar_lea.sflag [#allocation4], %s644
            // Predicated region
            $region190: #{tpu_custom_call.1} parent=186 // pred_check
              _
            $region191: #{tpu_custom_call.1} parent=186 // pred_check_branch
              %665 = sbr.rel target = $region193
            $region192: #{tpu_custom_call.1} parent=186 // pred_region
              %666 = sst [smem:[#allocation17]] [#allocation40]
              %667 = sst [smem:[#allocation18]] [#allocation39]
            $region193: #{tpu_custom_call.1} parent=186 // pred_fallthru
              _
            %669 = shalt.err (0)
            %s671 = sshll.u32 %s659, 4
            %s672 = int_to_ptr.hbm [resolvable:$true] %s671
            %s673 = sshll.u32 %s662, 4
            %s674 = int_to_ptr.vmem [resolvable:$true] %s673
            %676 = dma.hbm_to_vmem [thread:$0]  %s672, 16, %s674, %s663
            %s677 = sld [smem:[#allocation8 + %s657]]
            %p678 = scmp.gt.s32.totalorder %s677, 0
            // Predicated region
            $region194: #{tpu_custom_call.1} parent=186 // pred_check
              %p679 = pneg %p678
            $region195: #{tpu_custom_call.1} parent=186 // pred_check_branch
              %681 = sbr.rel (%p679) target = $region197
            $region196: #{tpu_custom_call.1} parent=186 // pred_region
              %s682 = smul.u32 %s657, 10
              %s683 = sld [smem:[#allocation7 + %s682]]
              %s684 = scalar_lea.hbm %s4, %s683
              %s685 = smul.u32 %s644, 1280
              %s686 = sadd.s32 %s652, %s685
              %s687 = scalar_lea.vmem [#allocation3], %s686
              // Predicated region
              $region198: #{tpu_custom_call.1} parent=196 // pred_check
                _
              $region199: #{tpu_custom_call.1} parent=196 // pred_check_branch
                %689 = sbr.rel target = $region201
              $region200: #{tpu_custom_call.1} parent=196 // pred_region
                %690 = sst [smem:[#allocation17]] [#allocation42]
                %691 = sst [smem:[#allocation18]] [#allocation41]
              $region201: #{tpu_custom_call.1} parent=196 // pred_fallthru
                _
              %693 = shalt.err (0)
              %s695 = sshll.u32 %s684, 4
              %s696 = int_to_ptr.hbm [resolvable:$true] %s695
              %s697 = sshll.u32 %s687, 4
              %s698 = int_to_ptr.vmem [resolvable:$true] %s697
              %700 = dma.hbm_to_vmem [thread:$0]  %s696, 16, %s698, %s663
            $region197: #{tpu_custom_call.1} parent=186 // pred_fallthru
              _
            %p701 = scmp.gt.s32.totalorder %s677, 1
            // Predicated region
            $region202: #{tpu_custom_call.1} parent=186 // pred_check
              %p702 = pneg %p701
            $region203: #{tpu_custom_call.1} parent=186 // pred_check_branch
              %704 = sbr.rel (%p702) target = $region205
            $region204: #{tpu_custom_call.1} parent=186 // pred_region
              %s705 = smul.u32 %s657, 10
              %s706 = sadd.s32 %s705, 1
              %s707 = sld [smem:[#allocation7 + %s706]]
              %s708 = scalar_lea.hbm %s4, %s707
              %s709 = sadd.s32 %s652, 128
              %s710 = smul.u32 %s644, 1280
              %s711 = sadd.s32 %s709, %s710
              %s712 = scalar_lea.vmem [#allocation3], %s711
              // Predicated region
              $region206: #{tpu_custom_call.1} parent=204 // pred_check
                _
              $region207: #{tpu_custom_call.1} parent=204 // pred_check_branch
                %714 = sbr.rel target = $region209
              $region208: #{tpu_custom_call.1} parent=204 // pred_region
                %715 = sst [smem:[#allocation17]] [#allocation44]
                %716 = sst [smem:[#allocation18]] [#allocation43]
              $region209: #{tpu_custom_call.1} parent=204 // pred_fallthru
                _
              %718 = shalt.err (0)
              %s720 = sshll.u32 %s708, 4
              %s721 = int_to_ptr.hbm [resolvable:$true] %s720
              %s722 = sshll.u32 %s712, 4
              %s723 = int_to_ptr.vmem [resolvable:$true] %s722
              %725 = dma.hbm_to_vmem [thread:$0]  %s721, 16, %s723, %s663
            $region205: #{tpu_custom_call.1} parent=186 // pred_fallthru
              _
            %p726 = scmp.gt.s32.totalorder %s677, 2
            // Predicated region
            $region210: #{tpu_custom_call.1} parent=186 // pred_check
              %p727 = pneg %p726
            $region211: #{tpu_custom_call.1} parent=186 // pred_check_branch
              %729 = sbr.rel (%p727) target = $region213
            $region212: #{tpu_custom_call.1} parent=186 // pred_region
              %s730 = smul.u32 %s657, 10
              %s731 = sadd.s32 %s730, 2
              %s732 = sld [smem:[#allocation7 + %s731]]
              %s733 = scalar_lea.hbm %s4, %s732
              %s734 = sadd.s32 %s652, 256
              %s735 = smul.u32 %s644, 1280
              %s736 = sadd.s32 %s734, %s735
              %s737 = scalar_lea.vmem [#allocation3], %s736
              // Predicated region
              $region214: #{tpu_custom_call.1} parent=212 // pred_check
                _
              $region215: #{tpu_custom_call.1} parent=212 // pred_check_branch
                %739 = sbr.rel target = $region217
              $region216: #{tpu_custom_call.1} parent=212 // pred_region
                %740 = sst [smem:[#allocation17]] [#allocation46]
                %741 = sst [smem:[#allocation18]] [#allocation45]
              $region217: #{tpu_custom_call.1} parent=212 // pred_fallthru
                _
              %743 = shalt.err (0)
              %s745 = sshll.u32 %s733, 4
              %s746 = int_to_ptr.hbm [resolvable:$true] %s745
              %s747 = sshll.u32 %s737, 4
              %s748 = int_to_ptr.vmem [resolvable:$true] %s747
              %750 = dma.hbm_to_vmem [thread:$0]  %s746, 16, %s748, %s663
            $region213: #{tpu_custom_call.1} parent=186 // pred_fallthru
              _
            %p751 = scmp.gt.s32.totalorder %s677, 3
            // Predicated region
            $region218: #{tpu_custom_call.1} parent=186 // pred_check
              %p752 = pneg %p751
            $region219: #{tpu_custom_call.1} parent=186 // pred_check_branch
              %754 = sbr.rel (%p752) target = $region221
            $region220: #{tpu_custom_call.1} parent=186 // pred_region
              %s755 = smul.u32 %s657, 10
              %s756 = sadd.s32 %s755, 3
              %s757 = sld [smem:[#allocation7 + %s756]]
              %s758 = scalar_lea.hbm %s4, %s757
              %s759 = sadd.s32 %s652, 384
              %s760 = smul.u32 %s644, 1280
              %s761 = sadd.s32 %s759, %s760
              %s762 = scalar_lea.vmem [#allocation3], %s761
              // Predicated region
              $region222: #{tpu_custom_call.1} parent=220 // pred_check
                _
              $region223: #{tpu_custom_call.1} parent=220 // pred_check_branch
                %764 = sbr.rel target = $region225
              $region224: #{tpu_custom_call.1} parent=220 // pred_region
                %765 = sst [smem:[#allocation17]] [#allocation48]
                %766 = sst [smem:[#allocation18]] [#allocation47]
              $region225: #{tpu_custom_call.1} parent=220 // pred_fallthru
                _
              %768 = shalt.err (0)
              %s770 = sshll.u32 %s758, 4
              %s771 = int_to_ptr.hbm [resolvable:$true] %s770
              %s772 = sshll.u32 %s762, 4
              %s773 = int_to_ptr.vmem [resolvable:$true] %s772
              %775 = dma.hbm_to_vmem [thread:$0]  %s771, 16, %s773, %s663
            $region221: #{tpu_custom_call.1} parent=186 // pred_fallthru
              _
            %p776 = scmp.gt.s32.totalorder %s677, 4
            // Predicated region
            $region226: #{tpu_custom_call.1} parent=186 // pred_check
              %p777 = pneg %p776
            $region227: #{tpu_custom_call.1} parent=186 // pred_check_branch
              %779 = sbr.rel (%p777) target = $region229
            $region228: #{tpu_custom_call.1} parent=186 // pred_region
              %s780 = smul.u32 %s657, 10
              %s781 = sadd.s32 %s780, 4
              %s782 = sld [smem:[#allocation7 + %s781]]
              %s783 = scalar_lea.hbm %s4, %s782
              %s784 = sadd.s32 %s652, 512
              %s785 = smul.u32 %s644, 1280
              %s786 = sadd.s32 %s784, %s785
              %s787 = scalar_lea.vmem [#allocation3], %s786
              // Predicated region
              $region230: #{tpu_custom_call.1} parent=228 // pred_check
                _
              $region231: #{tpu_custom_call.1} parent=228 // pred_check_branch
                %789 = sbr.rel target = $region233
              $region232: #{tpu_custom_call.1} parent=228 // pred_region
                %790 = sst [smem:[#allocation17]] [#allocation50]
                %791 = sst [smem:[#allocation18]] [#allocation49]
              $region233: #{tpu_custom_call.1} parent=228 // pred_fallthru
                _
              %793 = shalt.err (0)
              %s795 = sshll.u32 %s783, 4
              %s796 = int_to_ptr.hbm [resolvable:$true] %s795
              %s797 = sshll.u32 %s787, 4
              %s798 = int_to_ptr.vmem [resolvable:$true] %s797
              %800 = dma.hbm_to_vmem [thread:$0]  %s796, 16, %s798, %s663
            $region229: #{tpu_custom_call.1} parent=186 // pred_fallthru
              _
            %p801 = scmp.gt.s32.totalorder %s677, 5
            // Predicated region
            $region234: #{tpu_custom_call.1} parent=186 // pred_check
              %p802 = pneg %p801
            $region235: #{tpu_custom_call.1} parent=186 // pred_check_branch
              %804 = sbr.rel (%p802) target = $region237
            $region236: #{tpu_custom_call.1} parent=186 // pred_region
              %s805 = smul.u32 %s657, 10
              %s806 = sadd.s32 %s805, 5
              %s807 = sld [smem:[#allocation7 + %s806]]
              %s808 = scalar_lea.hbm %s4, %s807
              %s809 = sadd.s32 %s652, 640
              %s810 = smul.u32 %s644, 1280
              %s811 = sadd.s32 %s809, %s810
              %s812 = scalar_lea.vmem [#allocation3], %s811
              // Predicated region
              $region238: #{tpu_custom_call.1} parent=236 // pred_check
                _
              $region239: #{tpu_custom_call.1} parent=236 // pred_check_branch
                %814 = sbr.rel target = $region241
              $region240: #{tpu_custom_call.1} parent=236 // pred_region
                %815 = sst [smem:[#allocation17]] [#allocation52]
                %816 = sst [smem:[#allocation18]] [#allocation51]
              $region241: #{tpu_custom_call.1} parent=236 // pred_fallthru
                _
              %818 = shalt.err (0)
              %s820 = sshll.u32 %s808, 4
              %s821 = int_to_ptr.hbm [resolvable:$true] %s820
              %s822 = sshll.u32 %s812, 4
              %s823 = int_to_ptr.vmem [resolvable:$true] %s822
              %825 = dma.hbm_to_vmem [thread:$0]  %s821, 16, %s823, %s663
            $region237: #{tpu_custom_call.1} parent=186 // pred_fallthru
              _
            %p826 = scmp.gt.s32.totalorder %s677, 6
            // Predicated region
            $region242: #{tpu_custom_call.1} parent=186 // pred_check
              %p827 = pneg %p826
            $region243: #{tpu_custom_call.1} parent=186 // pred_check_branch
              %829 = sbr.rel (%p827) target = $region245
            $region244: #{tpu_custom_call.1} parent=186 // pred_region
              %s830 = smul.u32 %s657, 10
              %s831 = sadd.s32 %s830, 6
              %s832 = sld [smem:[#allocation7 + %s831]]
              %s833 = scalar_lea.hbm %s4, %s832
              %s834 = sadd.s32 %s652, 768
              %s835 = smul.u32 %s644, 1280
              %s836 = sadd.s32 %s834, %s835
              %s837 = scalar_lea.vmem [#allocation3], %s836
              // Predicated region
              $region246: #{tpu_custom_call.1} parent=244 // pred_check
                _
              $region247: #{tpu_custom_call.1} parent=244 // pred_check_branch
                %839 = sbr.rel target = $region249
              $region248: #{tpu_custom_call.1} parent=244 // pred_region
                %840 = sst [smem:[#allocation17]] [#allocation54]
                %841 = sst [smem:[#allocation18]] [#allocation53]
              $region249: #{tpu_custom_call.1} parent=244 // pred_fallthru
                _
              %843 = shalt.err (0)
              %s845 = sshll.u32 %s833, 4
              %s846 = int_to_ptr.hbm [resolvable:$true] %s845
              %s847 = sshll.u32 %s837, 4
              %s848 = int_to_ptr.vmem [resolvable:$true] %s847
              %850 = dma.hbm_to_vmem [thread:$0]  %s846, 16, %s848, %s663
            $region245: #{tpu_custom_call.1} parent=186 // pred_fallthru
              _
            %p851 = scmp.gt.s32.totalorder %s677, 7
            // Predicated region
            $region250: #{tpu_custom_call.1} parent=186 // pred_check
              %p852 = pneg %p851
            $region251: #{tpu_custom_call.1} parent=186 // pred_check_branch
              %854 = sbr.rel (%p852) target = $region253
            $region252: #{tpu_custom_call.1} parent=186 // pred_region
              %s855 = smul.u32 %s657, 10
              %s856 = sadd.s32 %s855, 7
              %s857 = sld [smem:[#allocation7 + %s856]]
              %s858 = scalar_lea.hbm %s4, %s857
              %s859 = sadd.s32 %s652, 896
              %s860 = smul.u32 %s644, 1280
              %s861 = sadd.s32 %s859, %s860
              %s862 = scalar_lea.vmem [#allocation3], %s861
              // Predicated region
              $region254: #{tpu_custom_call.1} parent=252 // pred_check
                _
              $region255: #{tpu_custom_call.1} parent=252 // pred_check_branch
                %864 = sbr.rel target = $region257
              $region256: #{tpu_custom_call.1} parent=252 // pred_region
                %865 = sst [smem:[#allocation17]] [#allocation56]
                %866 = sst [smem:[#allocation18]] [#allocation55]
              $region257: #{tpu_custom_call.1} parent=252 // pred_fallthru
                _
              %868 = shalt.err (0)
              %s870 = sshll.u32 %s858, 4
              %s871 = int_to_ptr.hbm [resolvable:$true] %s870
              %s872 = sshll.u32 %s862, 4
              %s873 = int_to_ptr.vmem [resolvable:$true] %s872
              %875 = dma.hbm_to_vmem [thread:$0]  %s871, 16, %s873, %s663
            $region253: #{tpu_custom_call.1} parent=186 // pred_fallthru
              _
            %p876 = scmp.gt.s32.totalorder %s677, 8
            // Predicated region
            $region258: #{tpu_custom_call.1} parent=186 // pred_check
              %p877 = pneg %p876
            $region259: #{tpu_custom_call.1} parent=186 // pred_check_branch
              %879 = sbr.rel (%p877) target = $region261
            $region260: #{tpu_custom_call.1} parent=186 // pred_region
              %s880 = smul.u32 %s657, 10
              %s881 = sadd.s32 %s880, 8
              %s882 = sld [smem:[#allocation7 + %s881]]
              %s883 = scalar_lea.hbm %s4, %s882
              %s884 = sadd.s32 %s652, 1024
              %s885 = smul.u32 %s644, 1280
              %s886 = sadd.s32 %s884, %s885
              %s887 = scalar_lea.vmem [#allocation3], %s886
              // Predicated region
              $region262: #{tpu_custom_call.1} parent=260 // pred_check
                _
              $region263: #{tpu_custom_call.1} parent=260 // pred_check_branch
                %889 = sbr.rel target = $region265
              $region264: #{tpu_custom_call.1} parent=260 // pred_region
                %890 = sst [smem:[#allocation17]] [#allocation58]
                %891 = sst [smem:[#allocation18]] [#allocation57]
              $region265: #{tpu_custom_call.1} parent=260 // pred_fallthru
                _
              %893 = shalt.err (0)
              %s895 = sshll.u32 %s883, 4
              %s896 = int_to_ptr.hbm [resolvable:$true] %s895
              %s897 = sshll.u32 %s887, 4
              %s898 = int_to_ptr.vmem [resolvable:$true] %s897
              %900 = dma.hbm_to_vmem [thread:$0]  %s896, 16, %s898, %s663
            $region261: #{tpu_custom_call.1} parent=186 // pred_fallthru
              _
            %p901 = scmp.gt.s32.totalorder %s677, 9
            // Predicated region
            $region266: #{tpu_custom_call.1} parent=186 // pred_check
              %p902 = pneg %p901
            $region267: #{tpu_custom_call.1} parent=186 // pred_check_branch
              %904 = sbr.rel (%p902) target = $region269
            $region268: #{tpu_custom_call.1} parent=186 // pred_region
              %s905 = smul.u32 %s657, 10
              %s906 = sadd.s32 %s905, 9
              %s907 = sld [smem:[#allocation7 + %s906]]
              %s908 = scalar_lea.hbm %s4, %s907
              %s909 = sadd.s32 %s652, 1152
              %s910 = smul.u32 %s644, 1280
              %s911 = sadd.s32 %s909, %s910
              %s912 = scalar_lea.vmem [#allocation3], %s911
              // Predicated region
              $region270: #{tpu_custom_call.1} parent=268 // pred_check
                _
              $region271: #{tpu_custom_call.1} parent=268 // pred_check_branch
                %914 = sbr.rel target = $region273
              $region272: #{tpu_custom_call.1} parent=268 // pred_region
                %915 = sst [smem:[#allocation17]] [#allocation60]
                %916 = sst [smem:[#allocation18]] [#allocation59]
              $region273: #{tpu_custom_call.1} parent=268 // pred_fallthru
                _
              %918 = shalt.err (0)
              %s920 = sshll.u32 %s908, 4
              %s921 = int_to_ptr.hbm [resolvable:$true] %s920
              %s922 = sshll.u32 %s912, 4
              %s923 = int_to_ptr.vmem [resolvable:$true] %s922
              %925 = dma.hbm_to_vmem [thread:$0]  %s921, 16, %s923, %s663
            $region269: #{tpu_custom_call.1} parent=186 // pred_fallthru
              _
          $region187: #{tpu_custom_call.1} parent=181 // loop_footer
            %s654 = sadd.s32 %s652, 1
          $region188: #{tpu_custom_call.1} parent=181 // loop_footer_branch
            %651 = sbr.rel target = $region184
          $region189: #{tpu_custom_call.1} parent=181 // loop_exit
            _
        $region182: #{tpu_custom_call.1} parent=27 // pred_fallthru
          _
        %p926 = scmp.gt.s32.totalorder %s535, 0
        // Predicated region
        $region274: #{tpu_custom_call.1} parent=27 // pred_check
          %p927 = pneg %p926
        $region275: #{tpu_custom_call.1} parent=27 // pred_check_branch
          %929 = sbr.rel (%p927) target = $region277
        $region276: #{tpu_custom_call.1} parent=27 // pred_region
          %v930 = vld [vmem:[%s198] sm:$0xff]
          %v931 = vld [vmem:[%s198 + $0x8] sm:$0xff]
          %v932 = vld [vmem:[%s198 + $0x10] sm:$0xff]
          %v933 = vld [vmem:[%s198 + $0x18] sm:$0xff]
          %v934 = vld [vmem:[%s198 + $0x20] sm:$0xff]
          %v935 = vld [vmem:[%s198 + $0x28] sm:$0xff]
          %v936 = vld [vmem:[%s198 + $0x30] sm:$0xff]
          %v937 = vld [vmem:[%s198 + $0x38] sm:$0xff]
          %v938 = vld [vmem:[%s198 + $0x40] sm:$0xff]
          %v939 = vld [vmem:[%s198 + $0x48] sm:$0xff]
          %v940 = vld [vmem:[%s198 + $0x50] sm:$0xff]
          %v941 = vld [vmem:[%s198 + $0x58] sm:$0xff]
          %v942 = vld [vmem:[%s198 + $0x60] sm:$0xff]
          %v943 = vld [vmem:[%s198 + $0x68] sm:$0xff]
          %v944 = vld [vmem:[%s198 + $0x70] sm:$0xff]
          %v945 = vld [vmem:[%s198 + $0x78] sm:$0xff]
          %vm946 = vcmp.gt.f32.partialorder %v930, 0.0
          %vm947 = vcmp.gt.f32.partialorder %v931, 0.0
          %vm948 = vcmp.gt.f32.partialorder %v932, 0.0
          %vm949 = vcmp.gt.f32.partialorder %v933, 0.0
          %vm950 = vcmp.gt.f32.partialorder %v934, 0.0
          %vm951 = vcmp.gt.f32.partialorder %v935, 0.0
          %vm952 = vcmp.gt.f32.partialorder %v936, 0.0
          %vm953 = vcmp.gt.f32.partialorder %v937, 0.0
          %vm954 = vcmp.gt.f32.partialorder %v938, 0.0
          %vm955 = vcmp.gt.f32.partialorder %v939, 0.0
          %vm956 = vcmp.gt.f32.partialorder %v940, 0.0
          %vm957 = vcmp.gt.f32.partialorder %v941, 0.0
          %vm958 = vcmp.gt.f32.partialorder %v942, 0.0
          %vm959 = vcmp.gt.f32.partialorder %v943, 0.0
          %vm960 = vcmp.gt.f32.partialorder %v944, 0.0
          %vm961 = vcmp.gt.f32.partialorder %v945, 0.0
          %s962 = smul.u32 %s244, 1280
          %s963 = scalar_lea.vmem [#allocation3], %s962
          %v964 = vld [vmem:[%s963] sm:$0xff]
          %v965 = vld [vmem:[%s963 + $0x8] sm:$0xff]
          %v966 = vld [vmem:[%s963 + $0x10] sm:$0xff]
          %v967 = vld [vmem:[%s963 + $0x18] sm:$0xff]
          %v968 = vld [vmem:[%s963 + $0x20] sm:$0xff]
          %v969 = vld [vmem:[%s963 + $0x28] sm:$0xff]
          %v970 = vld [vmem:[%s963 + $0x30] sm:$0xff]
          %v971 = vld [vmem:[%s963 + $0x38] sm:$0xff]
          %v972 = vld [vmem:[%s963 + $0x40] sm:$0xff]
          %v973 = vld [vmem:[%s963 + $0x48] sm:$0xff]
          %v974 = vld [vmem:[%s963 + $0x50] sm:$0xff]
          %v975 = vld [vmem:[%s963 + $0x58] sm:$0xff]
          %v976 = vld [vmem:[%s963 + $0x60] sm:$0xff]
          %v977 = vld [vmem:[%s963 + $0x68] sm:$0xff]
          %v978 = vld [vmem:[%s963 + $0x70] sm:$0xff]
          %v979 = vld [vmem:[%s963 + $0x78] sm:$0xff]
          %981 = vset.pattern.permute.xlu0 0
          %982 = vperm.xlu0 %981, %v930
          %v983 = vpop.permute.xlu0 %982
          %986 = vset.pattern.permute.xlu0 0
          %987 = vperm.xlu0 %986, %v931
          %v988 = vpop.permute.xlu0 %987
          %991 = vset.pattern.permute.xlu0 0
          %992 = vperm.xlu0 %991, %v932
          %v993 = vpop.permute.xlu0 %992
          %996 = vset.pattern.permute.xlu0 0
          %997 = vperm.xlu0 %996, %v933
          %v998 = vpop.permute.xlu0 %997
          %1001 = vset.pattern.permute.xlu0 0
          %1002 = vperm.xlu0 %1001, %v934
          %v1003 = vpop.permute.xlu0 %1002
          %1006 = vset.pattern.permute.xlu0 0
          %1007 = vperm.xlu0 %1006, %v935
          %v1008 = vpop.permute.xlu0 %1007
          %1011 = vset.pattern.permute.xlu0 0
          %1012 = vperm.xlu0 %1011, %v936
          %v1013 = vpop.permute.xlu0 %1012
          %1016 = vset.pattern.permute.xlu0 0
          %1017 = vperm.xlu0 %1016, %v937
          %v1018 = vpop.permute.xlu0 %1017
          %1021 = vset.pattern.permute.xlu0 0
          %1022 = vperm.xlu0 %1021, %v938
          %v1023 = vpop.permute.xlu0 %1022
          %1026 = vset.pattern.permute.xlu0 0
          %1027 = vperm.xlu0 %1026, %v939
          %v1028 = vpop.permute.xlu0 %1027
          %1031 = vset.pattern.permute.xlu0 0
          %1032 = vperm.xlu0 %1031, %v940
          %v1033 = vpop.permute.xlu0 %1032
          %1036 = vset.pattern.permute.xlu0 0
          %1037 = vperm.xlu0 %1036, %v941
          %v1038 = vpop.permute.xlu0 %1037
          %1041 = vset.pattern.permute.xlu0 0
          %1042 = vperm.xlu0 %1041, %v942
          %v1043 = vpop.permute.xlu0 %1042
          %1046 = vset.pattern.permute.xlu0 0
          %1047 = vperm.xlu0 %1046, %v943
          %v1048 = vpop.permute.xlu0 %1047
          %1051 = vset.pattern.permute.xlu0 0
          %1052 = vperm.xlu0 %1051, %v944
          %v1053 = vpop.permute.xlu0 %1052
          %1056 = vset.pattern.permute.xlu0 0
          %1057 = vperm.xlu0 %1056, %v945
          %v1058 = vpop.permute.xlu0 %1057
          %v1060 = vmul.f32 %v983, %v964
          %v1061 = vmul.f32 %v988, %v965
          %v1062 = vmul.f32 %v993, %v966
          %v1063 = vmul.f32 %v998, %v967
          %v1064 = vmul.f32 %v1003, %v968
          %v1065 = vmul.f32 %v1008, %v969
          %v1066 = vmul.f32 %v1013, %v970
          %v1067 = vmul.f32 %v1018, %v971
          %v1068 = vmul.f32 %v1023, %v972
          %v1069 = vmul.f32 %v1028, %v973
          %v1070 = vmul.f32 %v1033, %v974
          %v1071 = vmul.f32 %v1038, %v975
          %v1072 = vmul.f32 %v1043, %v976
          %v1073 = vmul.f32 %v1048, %v977
          %v1074 = vmul.f32 %v1053, %v978
          %v1075 = vmul.f32 %v1058, %v979
          %v1076 = vsel %vm946, 1, 0
          %v1077 = vsel %vm947, 1, 0
          %v1078 = vsel %vm948, 1, 0
          %v1079 = vsel %vm949, 1, 0
          %v1080 = vsel %vm950, 1, 0
          %v1081 = vsel %vm951, 1, 0
          %v1082 = vsel %vm952, 1, 0
          %v1083 = vsel %vm953, 1, 0
          %v1084 = vsel %vm954, 1, 0
          %v1085 = vsel %vm955, 1, 0
          %v1086 = vsel %vm956, 1, 0
          %v1087 = vsel %vm957, 1, 0
          %v1088 = vsel %vm958, 1, 0
          %v1089 = vsel %vm959, 1, 0
          %v1090 = vsel %vm960, 1, 0
          %v1091 = vsel %vm961, 1, 0
          %1092 = vset.pattern.permute.xlu0 0
          %1093 = vperm.xlu0 %1092, %v1076
          %v1094 = vpop.permute.xlu0 %1093
          %1095 = vset.pattern.permute.xlu0 0
          %1096 = vperm.xlu0 %1095, %v1077
          %v1097 = vpop.permute.xlu0 %1096
          %1098 = vset.pattern.permute.xlu0 0
          %1099 = vperm.xlu0 %1098, %v1078
          %v1100 = vpop.permute.xlu0 %1099
          %1101 = vset.pattern.permute.xlu0 0
          %1102 = vperm.xlu0 %1101, %v1079
          %v1103 = vpop.permute.xlu0 %1102
          %1104 = vset.pattern.permute.xlu0 0
          %1105 = vperm.xlu0 %1104, %v1080
          %v1106 = vpop.permute.xlu0 %1105
          %1107 = vset.pattern.permute.xlu0 0
          %1108 = vperm.xlu0 %1107, %v1081
          %v1109 = vpop.permute.xlu0 %1108
          %1110 = vset.pattern.permute.xlu0 0
          %1111 = vperm.xlu0 %1110, %v1082
          %v1112 = vpop.permute.xlu0 %1111
          %1113 = vset.pattern.permute.xlu0 0
          %1114 = vperm.xlu0 %1113, %v1083
          %v1115 = vpop.permute.xlu0 %1114
          %1116 = vset.pattern.permute.xlu0 0
          %1117 = vperm.xlu0 %1116, %v1084
          %v1118 = vpop.permute.xlu0 %1117
          %1119 = vset.pattern.permute.xlu0 0
          %1120 = vperm.xlu0 %1119, %v1085
          %v1121 = vpop.permute.xlu0 %1120
          %1122 = vset.pattern.permute.xlu0 0
          %1123 = vperm.xlu0 %1122, %v1086
          %v1124 = vpop.permute.xlu0 %1123
          %1125 = vset.pattern.permute.xlu0 0
          %1126 = vperm.xlu0 %1125, %v1087
          %v1127 = vpop.permute.xlu0 %1126
          %1128 = vset.pattern.permute.xlu0 0
          %1129 = vperm.xlu0 %1128, %v1088
          %v1130 = vpop.permute.xlu0 %1129
          %1131 = vset.pattern.permute.xlu0 0
          %1132 = vperm.xlu0 %1131, %v1089
          %v1133 = vpop.permute.xlu0 %1132
          %1134 = vset.pattern.permute.xlu0 0
          %1135 = vperm.xlu0 %1134, %v1090
          %v1136 = vpop.permute.xlu0 %1135
          %1137 = vset.pattern.permute.xlu0 0
          %1138 = vperm.xlu0 %1137, %v1091
          %v1139 = vpop.permute.xlu0 %1138
          %vm1140 = vcmp.eq.s32.totalorder %v1094, 1
          %vm1141 = vcmp.eq.s32.totalorder %v1097, 1
          %vm1142 = vcmp.eq.s32.totalorder %v1100, 1
          %vm1143 = vcmp.eq.s32.totalorder %v1103, 1
          %vm1144 = vcmp.eq.s32.totalorder %v1106, 1
          %vm1145 = vcmp.eq.s32.totalorder %v1109, 1
          %vm1146 = vcmp.eq.s32.totalorder %v1112, 1
          %vm1147 = vcmp.eq.s32.totalorder %v1115, 1
          %vm1148 = vcmp.eq.s32.totalorder %v1118, 1
          %vm1149 = vcmp.eq.s32.totalorder %v1121, 1
          %vm1150 = vcmp.eq.s32.totalorder %v1124, 1
          %vm1151 = vcmp.eq.s32.totalorder %v1127, 1
          %vm1152 = vcmp.eq.s32.totalorder %v1130, 1
          %vm1153 = vcmp.eq.s32.totalorder %v1133, 1
          %vm1154 = vcmp.eq.s32.totalorder %v1136, 1
          %vm1155 = vcmp.eq.s32.totalorder %v1139, 1
          %v1156 = vsel %vm1140, %v1060, 0.0
          %v1157 = vsel %vm1141, %v1061, 0.0
          %v1158 = vsel %vm1142, %v1062, 0.0
          %v1159 = vsel %vm1143, %v1063, 0.0
          %v1160 = vsel %vm1144, %v1064, 0.0
          %v1161 = vsel %vm1145, %v1065, 0.0
          %v1162 = vsel %vm1146, %v1066, 0.0
          %v1163 = vsel %vm1147, %v1067, 0.0
          %v1164 = vsel %vm1148, %v1068, 0.0
          %v1165 = vsel %vm1149, %v1069, 0.0
          %v1166 = vsel %vm1150, %v1070, 0.0
          %v1167 = vsel %vm1151, %v1071, 0.0
          %v1168 = vsel %vm1152, %v1072, 0.0
          %v1169 = vsel %vm1153, %v1073, 0.0
          %v1170 = vsel %vm1154, %v1074, 0.0
          %v1171 = vsel %vm1155, %v1075, 0.0
          %v1172 = vadd.f32 %v1156, 0.0
          %v1173 = vadd.f32 %v1157, 0.0
          %v1174 = vadd.f32 %v1158, 0.0
          %v1175 = vadd.f32 %v1159, 0.0
          %v1176 = vadd.f32 %v1160, 0.0
          %v1177 = vadd.f32 %v1161, 0.0
          %v1178 = vadd.f32 %v1162, 0.0
          %v1179 = vadd.f32 %v1163, 0.0
          %v1180 = vadd.f32 %v1164, 0.0
          %v1181 = vadd.f32 %v1165, 0.0
          %v1182 = vadd.f32 %v1166, 0.0
          %v1183 = vadd.f32 %v1167, 0.0
          %v1184 = vadd.f32 %v1168, 0.0
          %v1185 = vadd.f32 %v1169, 0.0
          %v1186 = vadd.f32 %v1170, 0.0
          %v1187 = vadd.f32 %v1171, 0.0
          %s1188 = sadd.s32 128, %s962
          %s1189 = scalar_lea.vmem [#allocation3], %s1188
          %v1190 = vld [vmem:[%s1189] sm:$0xff]
          %v1191 = vld [vmem:[%s1189 + $0x8] sm:$0xff]
          %v1192 = vld [vmem:[%s1189 + $0x10] sm:$0xff]
          %v1193 = vld [vmem:[%s1189 + $0x18] sm:$0xff]
          %v1194 = vld [vmem:[%s1189 + $0x20] sm:$0xff]
          %v1195 = vld [vmem:[%s1189 + $0x28] sm:$0xff]
          %v1196 = vld [vmem:[%s1189 + $0x30] sm:$0xff]
          %v1197 = vld [vmem:[%s1189 + $0x38] sm:$0xff]
          %v1198 = vld [vmem:[%s1189 + $0x40] sm:$0xff]
          %v1199 = vld [vmem:[%s1189 + $0x48] sm:$0xff]
          %v1200 = vld [vmem:[%s1189 + $0x50] sm:$0xff]
          %v1201 = vld [vmem:[%s1189 + $0x58] sm:$0xff]
          %v1202 = vld [vmem:[%s1189 + $0x60] sm:$0xff]
          %v1203 = vld [vmem:[%s1189 + $0x68] sm:$0xff]
          %v1204 = vld [vmem:[%s1189 + $0x70] sm:$0xff]
          %v1205 = vld [vmem:[%s1189 + $0x78] sm:$0xff]
          %1206 = vset.pattern.permute.xlu0 1
          %1207 = vperm.xlu0 %1206, %v930
          %v1208 = vpop.permute.xlu0 %1207
          %1210 = vset.pattern.permute.xlu0 1
          %1211 = vperm.xlu0 %1210, %v931
          %v1212 = vpop.permute.xlu0 %1211
          %1214 = vset.pattern.permute.xlu0 1
          %1215 = vperm.xlu0 %1214, %v932
          %v1216 = vpop.permute.xlu0 %1215
          %1218 = vset.pattern.permute.xlu0 1
          %1219 = vperm.xlu0 %1218, %v933
          %v1220 = vpop.permute.xlu0 %1219
          %1222 = vset.pattern.permute.xlu0 1
          %1223 = vperm.xlu0 %1222, %v934
          %v1224 = vpop.permute.xlu0 %1223
          %1226 = vset.pattern.permute.xlu0 1
          %1227 = vperm.xlu0 %1226, %v935
          %v1228 = vpop.permute.xlu0 %1227
          %1230 = vset.pattern.permute.xlu0 1
          %1231 = vperm.xlu0 %1230, %v936
          %v1232 = vpop.permute.xlu0 %1231
          %1234 = vset.pattern.permute.xlu0 1
          %1235 = vperm.xlu0 %1234, %v937
          %v1236 = vpop.permute.xlu0 %1235
          %1238 = vset.pattern.permute.xlu0 1
          %1239 = vperm.xlu0 %1238, %v938
          %v1240 = vpop.permute.xlu0 %1239
          %1242 = vset.pattern.permute.xlu0 1
          %1243 = vperm.xlu0 %1242, %v939
          %v1244 = vpop.permute.xlu0 %1243
          %1246 = vset.pattern.permute.xlu0 1
          %1247 = vperm.xlu0 %1246, %v940
          %v1248 = vpop.permute.xlu0 %1247
          %1250 = vset.pattern.permute.xlu0 1
          %1251 = vperm.xlu0 %1250, %v941
          %v1252 = vpop.permute.xlu0 %1251
          %1254 = vset.pattern.permute.xlu0 1
          %1255 = vperm.xlu0 %1254, %v942
          %v1256 = vpop.permute.xlu0 %1255
          %1258 = vset.pattern.permute.xlu0 1
          %1259 = vperm.xlu0 %1258, %v943
          %v1260 = vpop.permute.xlu0 %1259
          %1262 = vset.pattern.permute.xlu0 1
          %1263 = vperm.xlu0 %1262, %v944
          %v1264 = vpop.permute.xlu0 %1263
          %1266 = vset.pattern.permute.xlu0 1
          %1267 = vperm.xlu0 %1266, %v945
          %v1268 = vpop.permute.xlu0 %1267
          %v1270 = vmul.f32 %v1208, %v1190
          %v1271 = vmul.f32 %v1212, %v1191
          %v1272 = vmul.f32 %v1216, %v1192
          %v1273 = vmul.f32 %v1220, %v1193
          %v1274 = vmul.f32 %v1224, %v1194
          %v1275 = vmul.f32 %v1228, %v1195
          %v1276 = vmul.f32 %v1232, %v1196
          %v1277 = vmul.f32 %v1236, %v1197
          %v1278 = vmul.f32 %v1240, %v1198
          %v1279 = vmul.f32 %v1244, %v1199
          %v1280 = vmul.f32 %v1248, %v1200
          %v1281 = vmul.f32 %v1252, %v1201
          %v1282 = vmul.f32 %v1256, %v1202
          %v1283 = vmul.f32 %v1260, %v1203
          %v1284 = vmul.f32 %v1264, %v1204
          %v1285 = vmul.f32 %v1268, %v1205
          %1286 = vset.pattern.permute.xlu0 1
          %1287 = vperm.xlu0 %1286, %v1076
          %v1288 = vpop.permute.xlu0 %1287
          %1289 = vset.pattern.permute.xlu0 1
          %1290 = vperm.xlu0 %1289, %v1077
          %v1291 = vpop.permute.xlu0 %1290
          %1292 = vset.pattern.permute.xlu0 1
          %1293 = vperm.xlu0 %1292, %v1078
          %v1294 = vpop.permute.xlu0 %1293
          %1295 = vset.pattern.permute.xlu0 1
          %1296 = vperm.xlu0 %1295, %v1079
          %v1297 = vpop.permute.xlu0 %1296
          %1298 = vset.pattern.permute.xlu0 1
          %1299 = vperm.xlu0 %1298, %v1080
          %v1300 = vpop.permute.xlu0 %1299
          %1301 = vset.pattern.permute.xlu0 1
          %1302 = vperm.xlu0 %1301, %v1081
          %v1303 = vpop.permute.xlu0 %1302
          %1304 = vset.pattern.permute.xlu0 1
          %1305 = vperm.xlu0 %1304, %v1082
          %v1306 = vpop.permute.xlu0 %1305
          %1307 = vset.pattern.permute.xlu0 1
          %1308 = vperm.xlu0 %1307, %v1083
          %v1309 = vpop.permute.xlu0 %1308
          %1310 = vset.pattern.permute.xlu0 1
          %1311 = vperm.xlu0 %1310, %v1084
          %v1312 = vpop.permute.xlu0 %1311
          %1313 = vset.pattern.permute.xlu0 1
          %1314 = vperm.xlu0 %1313, %v1085
          %v1315 = vpop.permute.xlu0 %1314
          %1316 = vset.pattern.permute.xlu0 1
          %1317 = vperm.xlu0 %1316, %v1086
          %v1318 = vpop.permute.xlu0 %1317
          %1319 = vset.pattern.permute.xlu0 1
          %1320 = vperm.xlu0 %1319, %v1087
          %v1321 = vpop.permute.xlu0 %1320
          %1322 = vset.pattern.permute.xlu0 1
          %1323 = vperm.xlu0 %1322, %v1088
          %v1324 = vpop.permute.xlu0 %1323
          %1325 = vset.pattern.permute.xlu0 1
          %1326 = vperm.xlu0 %1325, %v1089
          %v1327 = vpop.permute.xlu0 %1326
          %1328 = vset.pattern.permute.xlu0 1
          %1329 = vperm.xlu0 %1328, %v1090
          %v1330 = vpop.permute.xlu0 %1329
          %1331 = vset.pattern.permute.xlu0 1
          %1332 = vperm.xlu0 %1331, %v1091
          %v1333 = vpop.permute.xlu0 %1332
          %vm1334 = vcmp.eq.s32.totalorder %v1288, 1
          %vm1335 = vcmp.eq.s32.totalorder %v1291, 1
          %vm1336 = vcmp.eq.s32.totalorder %v1294, 1
          %vm1337 = vcmp.eq.s32.totalorder %v1297, 1
          %vm1338 = vcmp.eq.s32.totalorder %v1300, 1
          %vm1339 = vcmp.eq.s32.totalorder %v1303, 1
          %vm1340 = vcmp.eq.s32.totalorder %v1306, 1
          %vm1341 = vcmp.eq.s32.totalorder %v1309, 1
          %vm1342 = vcmp.eq.s32.totalorder %v1312, 1
          %vm1343 = vcmp.eq.s32.totalorder %v1315, 1
          %vm1344 = vcmp.eq.s32.totalorder %v1318, 1
          %vm1345 = vcmp.eq.s32.totalorder %v1321, 1
          %vm1346 = vcmp.eq.s32.totalorder %v1324, 1
          %vm1347 = vcmp.eq.s32.totalorder %v1327, 1
          %vm1348 = vcmp.eq.s32.totalorder %v1330, 1
          %vm1349 = vcmp.eq.s32.totalorder %v1333, 1
          %v1350 = vsel %vm1334, %v1270, 0.0
          %v1351 = vsel %vm1335, %v1271, 0.0
          %v1352 = vsel %vm1336, %v1272, 0.0
          %v1353 = vsel %vm1337, %v1273, 0.0
          %v1354 = vsel %vm1338, %v1274, 0.0
          %v1355 = vsel %vm1339, %v1275, 0.0
          %v1356 = vsel %vm1340, %v1276, 0.0
          %v1357 = vsel %vm1341, %v1277, 0.0
          %v1358 = vsel %vm1342, %v1278, 0.0
          %v1359 = vsel %vm1343, %v1279, 0.0
          %v1360 = vsel %vm1344, %v1280, 0.0
          %v1361 = vsel %vm1345, %v1281, 0.0
          %v1362 = vsel %vm1346, %v1282, 0.0
          %v1363 = vsel %vm1347, %v1283, 0.0
          %v1364 = vsel %vm1348, %v1284, 0.0
          %v1365 = vsel %vm1349, %v1285, 0.0
          %v1366 = vadd.f32 %v1172, %v1350
          %v1367 = vadd.f32 %v1173, %v1351
          %v1368 = vadd.f32 %v1174, %v1352
          %v1369 = vadd.f32 %v1175, %v1353
          %v1370 = vadd.f32 %v1176, %v1354
          %v1371 = vadd.f32 %v1177, %v1355
          %v1372 = vadd.f32 %v1178, %v1356
          %v1373 = vadd.f32 %v1179, %v1357
          %v1374 = vadd.f32 %v1180, %v1358
          %v1375 = vadd.f32 %v1181, %v1359
          %v1376 = vadd.f32 %v1182, %v1360
          %v1377 = vadd.f32 %v1183, %v1361
          %v1378 = vadd.f32 %v1184, %v1362
          %v1379 = vadd.f32 %v1185, %v1363
          %v1380 = vadd.f32 %v1186, %v1364
          %v1381 = vadd.f32 %v1187, %v1365
          %s1382 = sadd.s32 256, %s962
          %s1383 = scalar_lea.vmem [#allocation3], %s1382
          %v1384 = vld [vmem:[%s1383] sm:$0xff]
          %v1385 = vld [vmem:[%s1383 + $0x8] sm:$0xff]
          %v1386 = vld [vmem:[%s1383 + $0x10] sm:$0xff]
          %v1387 = vld [vmem:[%s1383 + $0x18] sm:$0xff]
          %v1388 = vld [vmem:[%s1383 + $0x20] sm:$0xff]
          %v1389 = vld [vmem:[%s1383 + $0x28] sm:$0xff]
          %v1390 = vld [vmem:[%s1383 + $0x30] sm:$0xff]
          %v1391 = vld [vmem:[%s1383 + $0x38] sm:$0xff]
          %v1392 = vld [vmem:[%s1383 + $0x40] sm:$0xff]
          %v1393 = vld [vmem:[%s1383 + $0x48] sm:$0xff]
          %v1394 = vld [vmem:[%s1383 + $0x50] sm:$0xff]
          %v1395 = vld [vmem:[%s1383 + $0x58] sm:$0xff]
          %v1396 = vld [vmem:[%s1383 + $0x60] sm:$0xff]
          %v1397 = vld [vmem:[%s1383 + $0x68] sm:$0xff]
          %v1398 = vld [vmem:[%s1383 + $0x70] sm:$0xff]
          %v1399 = vld [vmem:[%s1383 + $0x78] sm:$0xff]
          %1400 = vset.pattern.permute.xlu0 2
          %1401 = vperm.xlu0 %1400, %v930
          %v1402 = vpop.permute.xlu0 %1401
          %1404 = vset.pattern.permute.xlu0 2
          %1405 = vperm.xlu0 %1404, %v931
          %v1406 = vpop.permute.xlu0 %1405
          %1408 = vset.pattern.permute.xlu0 2
          %1409 = vperm.xlu0 %1408, %v932
          %v1410 = vpop.permute.xlu0 %1409
          %1412 = vset.pattern.permute.xlu0 2
          %1413 = vperm.xlu0 %1412, %v933
          %v1414 = vpop.permute.xlu0 %1413
          %1416 = vset.pattern.permute.xlu0 2
          %1417 = vperm.xlu0 %1416, %v934
          %v1418 = vpop.permute.xlu0 %1417
          %1420 = vset.pattern.permute.xlu0 2
          %1421 = vperm.xlu0 %1420, %v935
          %v1422 = vpop.permute.xlu0 %1421
          %1424 = vset.pattern.permute.xlu0 2
          %1425 = vperm.xlu0 %1424, %v936
          %v1426 = vpop.permute.xlu0 %1425
          %1428 = vset.pattern.permute.xlu0 2
          %1429 = vperm.xlu0 %1428, %v937
          %v1430 = vpop.permute.xlu0 %1429
          %1432 = vset.pattern.permute.xlu0 2
          %1433 = vperm.xlu0 %1432, %v938
          %v1434 = vpop.permute.xlu0 %1433
          %1436 = vset.pattern.permute.xlu0 2
          %1437 = vperm.xlu0 %1436, %v939
          %v1438 = vpop.permute.xlu0 %1437
          %1440 = vset.pattern.permute.xlu0 2
          %1441 = vperm.xlu0 %1440, %v940
          %v1442 = vpop.permute.xlu0 %1441
          %1444 = vset.pattern.permute.xlu0 2
          %1445 = vperm.xlu0 %1444, %v941
          %v1446 = vpop.permute.xlu0 %1445
          %1448 = vset.pattern.permute.xlu0 2
          %1449 = vperm.xlu0 %1448, %v942
          %v1450 = vpop.permute.xlu0 %1449
          %1452 = vset.pattern.permute.xlu0 2
          %1453 = vperm.xlu0 %1452, %v943
          %v1454 = vpop.permute.xlu0 %1453
          %1456 = vset.pattern.permute.xlu0 2
          %1457 = vperm.xlu0 %1456, %v944
          %v1458 = vpop.permute.xlu0 %1457
          %1460 = vset.pattern.permute.xlu0 2
          %1461 = vperm.xlu0 %1460, %v945
          %v1462 = vpop.permute.xlu0 %1461
          %v1464 = vmul.f32 %v1402, %v1384
          %v1465 = vmul.f32 %v1406, %v1385
          %v1466 = vmul.f32 %v1410, %v1386
          %v1467 = vmul.f32 %v1414, %v1387
          %v1468 = vmul.f32 %v1418, %v1388
          %v1469 = vmul.f32 %v1422, %v1389
          %v1470 = vmul.f32 %v1426, %v1390
          %v1471 = vmul.f32 %v1430, %v1391
          %v1472 = vmul.f32 %v1434, %v1392
          %v1473 = vmul.f32 %v1438, %v1393
          %v1474 = vmul.f32 %v1442, %v1394
          %v1475 = vmul.f32 %v1446, %v1395
          %v1476 = vmul.f32 %v1450, %v1396
          %v1477 = vmul.f32 %v1454, %v1397
          %v1478 = vmul.f32 %v1458, %v1398
          %v1479 = vmul.f32 %v1462, %v1399
          %1480 = vset.pattern.permute.xlu0 2
          %1481 = vperm.xlu0 %1480, %v1076
          %v1482 = vpop.permute.xlu0 %1481
          %1483 = vset.pattern.permute.xlu0 2
          %1484 = vperm.xlu0 %1483, %v1077
          %v1485 = vpop.permute.xlu0 %1484
          %1486 = vset.pattern.permute.xlu0 2
          %1487 = vperm.xlu0 %1486, %v1078
          %v1488 = vpop.permute.xlu0 %1487
          %1489 = vset.pattern.permute.xlu0 2
          %1490 = vperm.xlu0 %1489, %v1079
          %v1491 = vpop.permute.xlu0 %1490
          %1492 = vset.pattern.permute.xlu0 2
          %1493 = vperm.xlu0 %1492, %v1080
          %v1494 = vpop.permute.xlu0 %1493
          %1495 = vset.pattern.permute.xlu0 2
          %1496 = vperm.xlu0 %1495, %v1081
          %v1497 = vpop.permute.xlu0 %1496
          %1498 = vset.pattern.permute.xlu0 2
          %1499 = vperm.xlu0 %1498, %v1082
          %v1500 = vpop.permute.xlu0 %1499
          %1501 = vset.pattern.permute.xlu0 2
          %1502 = vperm.xlu0 %1501, %v1083
          %v1503 = vpop.permute.xlu0 %1502
          %1504 = vset.pattern.permute.xlu0 2
          %1505 = vperm.xlu0 %1504, %v1084
          %v1506 = vpop.permute.xlu0 %1505
          %1507 = vset.pattern.permute.xlu0 2
          %1508 = vperm.xlu0 %1507, %v1085
          %v1509 = vpop.permute.xlu0 %1508
          %1510 = vset.pattern.permute.xlu0 2
          %1511 = vperm.xlu0 %1510, %v1086
          %v1512 = vpop.permute.xlu0 %1511
          %1513 = vset.pattern.permute.xlu0 2
          %1514 = vperm.xlu0 %1513, %v1087
          %v1515 = vpop.permute.xlu0 %1514
          %1516 = vset.pattern.permute.xlu0 2
          %1517 = vperm.xlu0 %1516, %v1088
          %v1518 = vpop.permute.xlu0 %1517
          %1519 = vset.pattern.permute.xlu0 2
          %1520 = vperm.xlu0 %1519, %v1089
          %v1521 = vpop.permute.xlu0 %1520
          %1522 = vset.pattern.permute.xlu0 2
          %1523 = vperm.xlu0 %1522, %v1090
          %v1524 = vpop.permute.xlu0 %1523
          %1525 = vset.pattern.permute.xlu0 2
          %1526 = vperm.xlu0 %1525, %v1091
          %v1527 = vpop.permute.xlu0 %1526
          %vm1528 = vcmp.eq.s32.totalorder %v1482, 1
          %vm1529 = vcmp.eq.s32.totalorder %v1485, 1
          %vm1530 = vcmp.eq.s32.totalorder %v1488, 1
          %vm1531 = vcmp.eq.s32.totalorder %v1491, 1
          %vm1532 = vcmp.eq.s32.totalorder %v1494, 1
          %vm1533 = vcmp.eq.s32.totalorder %v1497, 1
          %vm1534 = vcmp.eq.s32.totalorder %v1500, 1
          %vm1535 = vcmp.eq.s32.totalorder %v1503, 1
          %vm1536 = vcmp.eq.s32.totalorder %v1506, 1
          %vm1537 = vcmp.eq.s32.totalorder %v1509, 1
          %vm1538 = vcmp.eq.s32.totalorder %v1512, 1
          %vm1539 = vcmp.eq.s32.totalorder %v1515, 1
          %vm1540 = vcmp.eq.s32.totalorder %v1518, 1
          %vm1541 = vcmp.eq.s32.totalorder %v1521, 1
          %vm1542 = vcmp.eq.s32.totalorder %v1524, 1
          %vm1543 = vcmp.eq.s32.totalorder %v1527, 1
          %v1544 = vsel %vm1528, %v1464, 0.0
          %v1545 = vsel %vm1529, %v1465, 0.0
          %v1546 = vsel %vm1530, %v1466, 0.0
          %v1547 = vsel %vm1531, %v1467, 0.0
          %v1548 = vsel %vm1532, %v1468, 0.0
          %v1549 = vsel %vm1533, %v1469, 0.0
          %v1550 = vsel %vm1534, %v1470, 0.0
          %v1551 = vsel %vm1535, %v1471, 0.0
          %v1552 = vsel %vm1536, %v1472, 0.0
          %v1553 = vsel %vm1537, %v1473, 0.0
          %v1554 = vsel %vm1538, %v1474, 0.0
          %v1555 = vsel %vm1539, %v1475, 0.0
          %v1556 = vsel %vm1540, %v1476, 0.0
          %v1557 = vsel %vm1541, %v1477, 0.0
          %v1558 = vsel %vm1542, %v1478, 0.0
          %v1559 = vsel %vm1543, %v1479, 0.0
          %v1560 = vadd.f32 %v1366, %v1544
          %v1561 = vadd.f32 %v1367, %v1545
          %v1562 = vadd.f32 %v1368, %v1546
          %v1563 = vadd.f32 %v1369, %v1547
          %v1564 = vadd.f32 %v1370, %v1548
          %v1565 = vadd.f32 %v1371, %v1549
          %v1566 = vadd.f32 %v1372, %v1550
          %v1567 = vadd.f32 %v1373, %v1551
          %v1568 = vadd.f32 %v1374, %v1552
          %v1569 = vadd.f32 %v1375, %v1553
          %v1570 = vadd.f32 %v1376, %v1554
          %v1571 = vadd.f32 %v1377, %v1555
          %v1572 = vadd.f32 %v1378, %v1556
          %v1573 = vadd.f32 %v1379, %v1557
          %v1574 = vadd.f32 %v1380, %v1558
          %v1575 = vadd.f32 %v1381, %v1559
          %s1576 = sadd.s32 384, %s962
          %s1577 = scalar_lea.vmem [#allocation3], %s1576
          %v1578 = vld [vmem:[%s1577] sm:$0xff]
          %v1579 = vld [vmem:[%s1577 + $0x8] sm:$0xff]
          %v1580 = vld [vmem:[%s1577 + $0x10] sm:$0xff]
          %v1581 = vld [vmem:[%s1577 + $0x18] sm:$0xff]
          %v1582 = vld [vmem:[%s1577 + $0x20] sm:$0xff]
          %v1583 = vld [vmem:[%s1577 + $0x28] sm:$0xff]
          %v1584 = vld [vmem:[%s1577 + $0x30] sm:$0xff]
          %v1585 = vld [vmem:[%s1577 + $0x38] sm:$0xff]
          %v1586 = vld [vmem:[%s1577 + $0x40] sm:$0xff]
          %v1587 = vld [vmem:[%s1577 + $0x48] sm:$0xff]
          %v1588 = vld [vmem:[%s1577 + $0x50] sm:$0xff]
          %v1589 = vld [vmem:[%s1577 + $0x58] sm:$0xff]
          %v1590 = vld [vmem:[%s1577 + $0x60] sm:$0xff]
          %v1591 = vld [vmem:[%s1577 + $0x68] sm:$0xff]
          %v1592 = vld [vmem:[%s1577 + $0x70] sm:$0xff]
          %v1593 = vld [vmem:[%s1577 + $0x78] sm:$0xff]
          %1594 = vset.pattern.permute.xlu0 3
          %1595 = vperm.xlu0 %1594, %v930
          %v1596 = vpop.permute.xlu0 %1595
          %1598 = vset.pattern.permute.xlu0 3
          %1599 = vperm.xlu0 %1598, %v931
          %v1600 = vpop.permute.xlu0 %1599
          %1602 = vset.pattern.permute.xlu0 3
          %1603 = vperm.xlu0 %1602, %v932
          %v1604 = vpop.permute.xlu0 %1603
          %1606 = vset.pattern.permute.xlu0 3
          %1607 = vperm.xlu0 %1606, %v933
          %v1608 = vpop.permute.xlu0 %1607
          %1610 = vset.pattern.permute.xlu0 3
          %1611 = vperm.xlu0 %1610, %v934
          %v1612 = vpop.permute.xlu0 %1611
          %1614 = vset.pattern.permute.xlu0 3
          %1615 = vperm.xlu0 %1614, %v935
          %v1616 = vpop.permute.xlu0 %1615
          %1618 = vset.pattern.permute.xlu0 3
          %1619 = vperm.xlu0 %1618, %v936
          %v1620 = vpop.permute.xlu0 %1619
          %1622 = vset.pattern.permute.xlu0 3
          %1623 = vperm.xlu0 %1622, %v937
          %v1624 = vpop.permute.xlu0 %1623
          %1626 = vset.pattern.permute.xlu0 3
          %1627 = vperm.xlu0 %1626, %v938
          %v1628 = vpop.permute.xlu0 %1627
          %1630 = vset.pattern.permute.xlu0 3
          %1631 = vperm.xlu0 %1630, %v939
          %v1632 = vpop.permute.xlu0 %1631
          %1634 = vset.pattern.permute.xlu0 3
          %1635 = vperm.xlu0 %1634, %v940
          %v1636 = vpop.permute.xlu0 %1635
          %1638 = vset.pattern.permute.xlu0 3
          %1639 = vperm.xlu0 %1638, %v941
          %v1640 = vpop.permute.xlu0 %1639
          %1642 = vset.pattern.permute.xlu0 3
          %1643 = vperm.xlu0 %1642, %v942
          %v1644 = vpop.permute.xlu0 %1643
          %1646 = vset.pattern.permute.xlu0 3
          %1647 = vperm.xlu0 %1646, %v943
          %v1648 = vpop.permute.xlu0 %1647
          %1650 = vset.pattern.permute.xlu0 3
          %1651 = vperm.xlu0 %1650, %v944
          %v1652 = vpop.permute.xlu0 %1651
          %1654 = vset.pattern.permute.xlu0 3
          %1655 = vperm.xlu0 %1654, %v945
          %v1656 = vpop.permute.xlu0 %1655
          %v1658 = vmul.f32 %v1596, %v1578
          %v1659 = vmul.f32 %v1600, %v1579
          %v1660 = vmul.f32 %v1604, %v1580
          %v1661 = vmul.f32 %v1608, %v1581
          %v1662 = vmul.f32 %v1612, %v1582
          %v1663 = vmul.f32 %v1616, %v1583
          %v1664 = vmul.f32 %v1620, %v1584
          %v1665 = vmul.f32 %v1624, %v1585
          %v1666 = vmul.f32 %v1628, %v1586
          %v1667 = vmul.f32 %v1632, %v1587
          %v1668 = vmul.f32 %v1636, %v1588
          %v1669 = vmul.f32 %v1640, %v1589
          %v1670 = vmul.f32 %v1644, %v1590
          %v1671 = vmul.f32 %v1648, %v1591
          %v1672 = vmul.f32 %v1652, %v1592
          %v1673 = vmul.f32 %v1656, %v1593
          %1674 = vset.pattern.permute.xlu0 3
          %1675 = vperm.xlu0 %1674, %v1076
          %v1676 = vpop.permute.xlu0 %1675
          %1677 = vset.pattern.permute.xlu0 3
          %1678 = vperm.xlu0 %1677, %v1077
          %v1679 = vpop.permute.xlu0 %1678
          %1680 = vset.pattern.permute.xlu0 3
          %1681 = vperm.xlu0 %1680, %v1078
          %v1682 = vpop.permute.xlu0 %1681
          %1683 = vset.pattern.permute.xlu0 3
          %1684 = vperm.xlu0 %1683, %v1079
          %v1685 = vpop.permute.xlu0 %1684
          %1686 = vset.pattern.permute.xlu0 3
          %1687 = vperm.xlu0 %1686, %v1080
          %v1688 = vpop.permute.xlu0 %1687
          %1689 = vset.pattern.permute.xlu0 3
          %1690 = vperm.xlu0 %1689, %v1081
          %v1691 = vpop.permute.xlu0 %1690
          %1692 = vset.pattern.permute.xlu0 3
          %1693 = vperm.xlu0 %1692, %v1082
          %v1694 = vpop.permute.xlu0 %1693
          %1695 = vset.pattern.permute.xlu0 3
          %1696 = vperm.xlu0 %1695, %v1083
          %v1697 = vpop.permute.xlu0 %1696
          %1698 = vset.pattern.permute.xlu0 3
          %1699 = vperm.xlu0 %1698, %v1084
          %v1700 = vpop.permute.xlu0 %1699
          %1701 = vset.pattern.permute.xlu0 3
          %1702 = vperm.xlu0 %1701, %v1085
          %v1703 = vpop.permute.xlu0 %1702
          %1704 = vset.pattern.permute.xlu0 3
          %1705 = vperm.xlu0 %1704, %v1086
          %v1706 = vpop.permute.xlu0 %1705
          %1707 = vset.pattern.permute.xlu0 3
          %1708 = vperm.xlu0 %1707, %v1087
          %v1709 = vpop.permute.xlu0 %1708
          %1710 = vset.pattern.permute.xlu0 3
          %1711 = vperm.xlu0 %1710, %v1088
          %v1712 = vpop.permute.xlu0 %1711
          %1713 = vset.pattern.permute.xlu0 3
          %1714 = vperm.xlu0 %1713, %v1089
          %v1715 = vpop.permute.xlu0 %1714
          %1716 = vset.pattern.permute.xlu0 3
          %1717 = vperm.xlu0 %1716, %v1090
          %v1718 = vpop.permute.xlu0 %1717
          %1719 = vset.pattern.permute.xlu0 3
          %1720 = vperm.xlu0 %1719, %v1091
          %v1721 = vpop.permute.xlu0 %1720
          %vm1722 = vcmp.eq.s32.totalorder %v1676, 1
          %vm1723 = vcmp.eq.s32.totalorder %v1679, 1
          %vm1724 = vcmp.eq.s32.totalorder %v1682, 1
          %vm1725 = vcmp.eq.s32.totalorder %v1685, 1
          %vm1726 = vcmp.eq.s32.totalorder %v1688, 1
          %vm1727 = vcmp.eq.s32.totalorder %v1691, 1
          %vm1728 = vcmp.eq.s32.totalorder %v1694, 1
          %vm1729 = vcmp.eq.s32.totalorder %v1697, 1
          %vm1730 = vcmp.eq.s32.totalorder %v1700, 1
          %vm1731 = vcmp.eq.s32.totalorder %v1703, 1
          %vm1732 = vcmp.eq.s32.totalorder %v1706, 1
          %vm1733 = vcmp.eq.s32.totalorder %v1709, 1
          %vm1734 = vcmp.eq.s32.totalorder %v1712, 1
          %vm1735 = vcmp.eq.s32.totalorder %v1715, 1
          %vm1736 = vcmp.eq.s32.totalorder %v1718, 1
          %vm1737 = vcmp.eq.s32.totalorder %v1721, 1
          %v1738 = vsel %vm1722, %v1658, 0.0
          %v1739 = vsel %vm1723, %v1659, 0.0
          %v1740 = vsel %vm1724, %v1660, 0.0
          %v1741 = vsel %vm1725, %v1661, 0.0
          %v1742 = vsel %vm1726, %v1662, 0.0
          %v1743 = vsel %vm1727, %v1663, 0.0
          %v1744 = vsel %vm1728, %v1664, 0.0
          %v1745 = vsel %vm1729, %v1665, 0.0
          %v1746 = vsel %vm1730, %v1666, 0.0
          %v1747 = vsel %vm1731, %v1667, 0.0
          %v1748 = vsel %vm1732, %v1668, 0.0
          %v1749 = vsel %vm1733, %v1669, 0.0
          %v1750 = vsel %vm1734, %v1670, 0.0
          %v1751 = vsel %vm1735, %v1671, 0.0
          %v1752 = vsel %vm1736, %v1672, 0.0
          %v1753 = vsel %vm1737, %v1673, 0.0
          %v1754 = vadd.f32 %v1560, %v1738
          %v1755 = vadd.f32 %v1561, %v1739
          %v1756 = vadd.f32 %v1562, %v1740
          %v1757 = vadd.f32 %v1563, %v1741
          %v1758 = vadd.f32 %v1564, %v1742
          %v1759 = vadd.f32 %v1565, %v1743
          %v1760 = vadd.f32 %v1566, %v1744
          %v1761 = vadd.f32 %v1567, %v1745
          %v1762 = vadd.f32 %v1568, %v1746
          %v1763 = vadd.f32 %v1569, %v1747
          %v1764 = vadd.f32 %v1570, %v1748
          %v1765 = vadd.f32 %v1571, %v1749
          %v1766 = vadd.f32 %v1572, %v1750
          %v1767 = vadd.f32 %v1573, %v1751
          %v1768 = vadd.f32 %v1574, %v1752
          %v1769 = vadd.f32 %v1575, %v1753
          %s1770 = sadd.s32 512, %s962
          %s1771 = scalar_lea.vmem [#allocation3], %s1770
          %v1772 = vld [vmem:[%s1771] sm:$0xff]
          %v1773 = vld [vmem:[%s1771 + $0x8] sm:$0xff]
          %v1774 = vld [vmem:[%s1771 + $0x10] sm:$0xff]
          %v1775 = vld [vmem:[%s1771 + $0x18] sm:$0xff]
          %v1776 = vld [vmem:[%s1771 + $0x20] sm:$0xff]
          %v1777 = vld [vmem:[%s1771 + $0x28] sm:$0xff]
          %v1778 = vld [vmem:[%s1771 + $0x30] sm:$0xff]
          %v1779 = vld [vmem:[%s1771 + $0x38] sm:$0xff]
          %v1780 = vld [vmem:[%s1771 + $0x40] sm:$0xff]
          %v1781 = vld [vmem:[%s1771 + $0x48] sm:$0xff]
          %v1782 = vld [vmem:[%s1771 + $0x50] sm:$0xff]
          %v1783 = vld [vmem:[%s1771 + $0x58] sm:$0xff]
          %v1784 = vld [vmem:[%s1771 + $0x60] sm:$0xff]
          %v1785 = vld [vmem:[%s1771 + $0x68] sm:$0xff]
          %v1786 = vld [vmem:[%s1771 + $0x70] sm:$0xff]
          %v1787 = vld [vmem:[%s1771 + $0x78] sm:$0xff]
          %1788 = vset.pattern.permute.xlu0 4
          %1789 = vperm.xlu0 %1788, %v930
          %v1790 = vpop.permute.xlu0 %1789
          %1792 = vset.pattern.permute.xlu0 4
          %1793 = vperm.xlu0 %1792, %v931
          %v1794 = vpop.permute.xlu0 %1793
          %1796 = vset.pattern.permute.xlu0 4
          %1797 = vperm.xlu0 %1796, %v932
          %v1798 = vpop.permute.xlu0 %1797
          %1800 = vset.pattern.permute.xlu0 4
          %1801 = vperm.xlu0 %1800, %v933
          %v1802 = vpop.permute.xlu0 %1801
          %1804 = vset.pattern.permute.xlu0 4
          %1805 = vperm.xlu0 %1804, %v934
          %v1806 = vpop.permute.xlu0 %1805
          %1808 = vset.pattern.permute.xlu0 4
          %1809 = vperm.xlu0 %1808, %v935
          %v1810 = vpop.permute.xlu0 %1809
          %1812 = vset.pattern.permute.xlu0 4
          %1813 = vperm.xlu0 %1812, %v936
          %v1814 = vpop.permute.xlu0 %1813
          %1816 = vset.pattern.permute.xlu0 4
          %1817 = vperm.xlu0 %1816, %v937
          %v1818 = vpop.permute.xlu0 %1817
          %1820 = vset.pattern.permute.xlu0 4
          %1821 = vperm.xlu0 %1820, %v938
          %v1822 = vpop.permute.xlu0 %1821
          %1824 = vset.pattern.permute.xlu0 4
          %1825 = vperm.xlu0 %1824, %v939
          %v1826 = vpop.permute.xlu0 %1825
          %1828 = vset.pattern.permute.xlu0 4
          %1829 = vperm.xlu0 %1828, %v940
          %v1830 = vpop.permute.xlu0 %1829
          %1832 = vset.pattern.permute.xlu0 4
          %1833 = vperm.xlu0 %1832, %v941
          %v1834 = vpop.permute.xlu0 %1833
          %1836 = vset.pattern.permute.xlu0 4
          %1837 = vperm.xlu0 %1836, %v942
          %v1838 = vpop.permute.xlu0 %1837
          %1840 = vset.pattern.permute.xlu0 4
          %1841 = vperm.xlu0 %1840, %v943
          %v1842 = vpop.permute.xlu0 %1841
          %1844 = vset.pattern.permute.xlu0 4
          %1845 = vperm.xlu0 %1844, %v944
          %v1846 = vpop.permute.xlu0 %1845
          %1848 = vset.pattern.permute.xlu0 4
          %1849 = vperm.xlu0 %1848, %v945
          %v1850 = vpop.permute.xlu0 %1849
          %v1852 = vmul.f32 %v1790, %v1772
          %v1853 = vmul.f32 %v1794, %v1773
          %v1854 = vmul.f32 %v1798, %v1774
          %v1855 = vmul.f32 %v1802, %v1775
          %v1856 = vmul.f32 %v1806, %v1776
          %v1857 = vmul.f32 %v1810, %v1777
          %v1858 = vmul.f32 %v1814, %v1778
          %v1859 = vmul.f32 %v1818, %v1779
          %v1860 = vmul.f32 %v1822, %v1780
          %v1861 = vmul.f32 %v1826, %v1781
          %v1862 = vmul.f32 %v1830, %v1782
          %v1863 = vmul.f32 %v1834, %v1783
          %v1864 = vmul.f32 %v1838, %v1784
          %v1865 = vmul.f32 %v1842, %v1785
          %v1866 = vmul.f32 %v1846, %v1786
          %v1867 = vmul.f32 %v1850, %v1787
          %1868 = vset.pattern.permute.xlu0 4
          %1869 = vperm.xlu0 %1868, %v1076
          %v1870 = vpop.permute.xlu0 %1869
          %1871 = vset.pattern.permute.xlu0 4
          %1872 = vperm.xlu0 %1871, %v1077
          %v1873 = vpop.permute.xlu0 %1872
          %1874 = vset.pattern.permute.xlu0 4
          %1875 = vperm.xlu0 %1874, %v1078
          %v1876 = vpop.permute.xlu0 %1875
          %1877 = vset.pattern.permute.xlu0 4
          %1878 = vperm.xlu0 %1877, %v1079
          %v1879 = vpop.permute.xlu0 %1878
          %1880 = vset.pattern.permute.xlu0 4
          %1881 = vperm.xlu0 %1880, %v1080
          %v1882 = vpop.permute.xlu0 %1881
          %1883 = vset.pattern.permute.xlu0 4
          %1884 = vperm.xlu0 %1883, %v1081
          %v1885 = vpop.permute.xlu0 %1884
          %1886 = vset.pattern.permute.xlu0 4
          %1887 = vperm.xlu0 %1886, %v1082
          %v1888 = vpop.permute.xlu0 %1887
          %1889 = vset.pattern.permute.xlu0 4
          %1890 = vperm.xlu0 %1889, %v1083
          %v1891 = vpop.permute.xlu0 %1890
          %1892 = vset.pattern.permute.xlu0 4
          %1893 = vperm.xlu0 %1892, %v1084
          %v1894 = vpop.permute.xlu0 %1893
          %1895 = vset.pattern.permute.xlu0 4
          %1896 = vperm.xlu0 %1895, %v1085
          %v1897 = vpop.permute.xlu0 %1896
          %1898 = vset.pattern.permute.xlu0 4
          %1899 = vperm.xlu0 %1898, %v1086
          %v1900 = vpop.permute.xlu0 %1899
          %1901 = vset.pattern.permute.xlu0 4
          %1902 = vperm.xlu0 %1901, %v1087
          %v1903 = vpop.permute.xlu0 %1902
          %1904 = vset.pattern.permute.xlu0 4
          %1905 = vperm.xlu0 %1904, %v1088
          %v1906 = vpop.permute.xlu0 %1905
          %1907 = vset.pattern.permute.xlu0 4
          %1908 = vperm.xlu0 %1907, %v1089
          %v1909 = vpop.permute.xlu0 %1908
          %1910 = vset.pattern.permute.xlu0 4
          %1911 = vperm.xlu0 %1910, %v1090
          %v1912 = vpop.permute.xlu0 %1911
          %1913 = vset.pattern.permute.xlu0 4
          %1914 = vperm.xlu0 %1913, %v1091
          %v1915 = vpop.permute.xlu0 %1914
          %vm1916 = vcmp.eq.s32.totalorder %v1870, 1
          %vm1917 = vcmp.eq.s32.totalorder %v1873, 1
          %vm1918 = vcmp.eq.s32.totalorder %v1876, 1
          %vm1919 = vcmp.eq.s32.totalorder %v1879, 1
          %vm1920 = vcmp.eq.s32.totalorder %v1882, 1
          %vm1921 = vcmp.eq.s32.totalorder %v1885, 1
          %vm1922 = vcmp.eq.s32.totalorder %v1888, 1
          %vm1923 = vcmp.eq.s32.totalorder %v1891, 1
          %vm1924 = vcmp.eq.s32.totalorder %v1894, 1
          %vm1925 = vcmp.eq.s32.totalorder %v1897, 1
          %vm1926 = vcmp.eq.s32.totalorder %v1900, 1
          %vm1927 = vcmp.eq.s32.totalorder %v1903, 1
          %vm1928 = vcmp.eq.s32.totalorder %v1906, 1
          %vm1929 = vcmp.eq.s32.totalorder %v1909, 1
          %vm1930 = vcmp.eq.s32.totalorder %v1912, 1
          %vm1931 = vcmp.eq.s32.totalorder %v1915, 1
          %v1932 = vsel %vm1916, %v1852, 0.0
          %v1933 = vsel %vm1917, %v1853, 0.0
          %v1934 = vsel %vm1918, %v1854, 0.0
          %v1935 = vsel %vm1919, %v1855, 0.0
          %v1936 = vsel %vm1920, %v1856, 0.0
          %v1937 = vsel %vm1921, %v1857, 0.0
          %v1938 = vsel %vm1922, %v1858, 0.0
          %v1939 = vsel %vm1923, %v1859, 0.0
          %v1940 = vsel %vm1924, %v1860, 0.0
          %v1941 = vsel %vm1925, %v1861, 0.0
          %v1942 = vsel %vm1926, %v1862, 0.0
          %v1943 = vsel %vm1927, %v1863, 0.0
          %v1944 = vsel %vm1928, %v1864, 0.0
          %v1945 = vsel %vm1929, %v1865, 0.0
          %v1946 = vsel %vm1930, %v1866, 0.0
          %v1947 = vsel %vm1931, %v1867, 0.0
          %v1948 = vadd.f32 %v1754, %v1932
          %v1949 = vadd.f32 %v1755, %v1933
          %v1950 = vadd.f32 %v1756, %v1934
          %v1951 = vadd.f32 %v1757, %v1935
          %v1952 = vadd.f32 %v1758, %v1936
          %v1953 = vadd.f32 %v1759, %v1937
          %v1954 = vadd.f32 %v1760, %v1938
          %v1955 = vadd.f32 %v1761, %v1939
          %v1956 = vadd.f32 %v1762, %v1940
          %v1957 = vadd.f32 %v1763, %v1941
          %v1958 = vadd.f32 %v1764, %v1942
          %v1959 = vadd.f32 %v1765, %v1943
          %v1960 = vadd.f32 %v1766, %v1944
          %v1961 = vadd.f32 %v1767, %v1945
          %v1962 = vadd.f32 %v1768, %v1946
          %v1963 = vadd.f32 %v1769, %v1947
          %s1964 = sadd.s32 640, %s962
          %s1965 = scalar_lea.vmem [#allocation3], %s1964
          %v1966 = vld [vmem:[%s1965] sm:$0xff]
          %v1967 = vld [vmem:[%s1965 + $0x8] sm:$0xff]
          %v1968 = vld [vmem:[%s1965 + $0x10] sm:$0xff]
          %v1969 = vld [vmem:[%s1965 + $0x18] sm:$0xff]
          %v1970 = vld [vmem:[%s1965 + $0x20] sm:$0xff]
          %v1971 = vld [vmem:[%s1965 + $0x28] sm:$0xff]
          %v1972 = vld [vmem:[%s1965 + $0x30] sm:$0xff]
          %v1973 = vld [vmem:[%s1965 + $0x38] sm:$0xff]
          %v1974 = vld [vmem:[%s1965 + $0x40] sm:$0xff]
          %v1975 = vld [vmem:[%s1965 + $0x48] sm:$0xff]
          %v1976 = vld [vmem:[%s1965 + $0x50] sm:$0xff]
          %v1977 = vld [vmem:[%s1965 + $0x58] sm:$0xff]
          %v1978 = vld [vmem:[%s1965 + $0x60] sm:$0xff]
          %v1979 = vld [vmem:[%s1965 + $0x68] sm:$0xff]
          %v1980 = vld [vmem:[%s1965 + $0x70] sm:$0xff]
          %v1981 = vld [vmem:[%s1965 + $0x78] sm:$0xff]
          %1982 = vset.pattern.permute.xlu0 5
          %1983 = vperm.xlu0 %1982, %v930
          %v1984 = vpop.permute.xlu0 %1983
          %1986 = vset.pattern.permute.xlu0 5
          %1987 = vperm.xlu0 %1986, %v931
          %v1988 = vpop.permute.xlu0 %1987
          %1990 = vset.pattern.permute.xlu0 5
          %1991 = vperm.xlu0 %1990, %v932
          %v1992 = vpop.permute.xlu0 %1991
          %1994 = vset.pattern.permute.xlu0 5
          %1995 = vperm.xlu0 %1994, %v933
          %v1996 = vpop.permute.xlu0 %1995
          %1998 = vset.pattern.permute.xlu0 5
          %1999 = vperm.xlu0 %1998, %v934
          %v2000 = vpop.permute.xlu0 %1999
          %2002 = vset.pattern.permute.xlu0 5
          %2003 = vperm.xlu0 %2002, %v935
          %v2004 = vpop.permute.xlu0 %2003
          %2006 = vset.pattern.permute.xlu0 5
          %2007 = vperm.xlu0 %2006, %v936
          %v2008 = vpop.permute.xlu0 %2007
          %2010 = vset.pattern.permute.xlu0 5
          %2011 = vperm.xlu0 %2010, %v937
          %v2012 = vpop.permute.xlu0 %2011
          %2014 = vset.pattern.permute.xlu0 5
          %2015 = vperm.xlu0 %2014, %v938
          %v2016 = vpop.permute.xlu0 %2015
          %2018 = vset.pattern.permute.xlu0 5
          %2019 = vperm.xlu0 %2018, %v939
          %v2020 = vpop.permute.xlu0 %2019
          %2022 = vset.pattern.permute.xlu0 5
          %2023 = vperm.xlu0 %2022, %v940
          %v2024 = vpop.permute.xlu0 %2023
          %2026 = vset.pattern.permute.xlu0 5
          %2027 = vperm.xlu0 %2026, %v941
          %v2028 = vpop.permute.xlu0 %2027
          %2030 = vset.pattern.permute.xlu0 5
          %2031 = vperm.xlu0 %2030, %v942
          %v2032 = vpop.permute.xlu0 %2031
          %2034 = vset.pattern.permute.xlu0 5
          %2035 = vperm.xlu0 %2034, %v943
          %v2036 = vpop.permute.xlu0 %2035
          %2038 = vset.pattern.permute.xlu0 5
          %2039 = vperm.xlu0 %2038, %v944
          %v2040 = vpop.permute.xlu0 %2039
          %2042 = vset.pattern.permute.xlu0 5
          %2043 = vperm.xlu0 %2042, %v945
          %v2044 = vpop.permute.xlu0 %2043
          %v2046 = vmul.f32 %v1984, %v1966
          %v2047 = vmul.f32 %v1988, %v1967
          %v2048 = vmul.f32 %v1992, %v1968
          %v2049 = vmul.f32 %v1996, %v1969
          %v2050 = vmul.f32 %v2000, %v1970
          %v2051 = vmul.f32 %v2004, %v1971
          %v2052 = vmul.f32 %v2008, %v1972
          %v2053 = vmul.f32 %v2012, %v1973
          %v2054 = vmul.f32 %v2016, %v1974
          %v2055 = vmul.f32 %v2020, %v1975
          %v2056 = vmul.f32 %v2024, %v1976
          %v2057 = vmul.f32 %v2028, %v1977
          %v2058 = vmul.f32 %v2032, %v1978
          %v2059 = vmul.f32 %v2036, %v1979
          %v2060 = vmul.f32 %v2040, %v1980
          %v2061 = vmul.f32 %v2044, %v1981
          %2062 = vset.pattern.permute.xlu0 5
          %2063 = vperm.xlu0 %2062, %v1076
          %v2064 = vpop.permute.xlu0 %2063
          %2065 = vset.pattern.permute.xlu0 5
          %2066 = vperm.xlu0 %2065, %v1077
          %v2067 = vpop.permute.xlu0 %2066
          %2068 = vset.pattern.permute.xlu0 5
          %2069 = vperm.xlu0 %2068, %v1078
          %v2070 = vpop.permute.xlu0 %2069
          %2071 = vset.pattern.permute.xlu0 5
          %2072 = vperm.xlu0 %2071, %v1079
          %v2073 = vpop.permute.xlu0 %2072
          %2074 = vset.pattern.permute.xlu0 5
          %2075 = vperm.xlu0 %2074, %v1080
          %v2076 = vpop.permute.xlu0 %2075
          %2077 = vset.pattern.permute.xlu0 5
          %2078 = vperm.xlu0 %2077, %v1081
          %v2079 = vpop.permute.xlu0 %2078
          %2080 = vset.pattern.permute.xlu0 5
          %2081 = vperm.xlu0 %2080, %v1082
          %v2082 = vpop.permute.xlu0 %2081
          %2083 = vset.pattern.permute.xlu0 5
          %2084 = vperm.xlu0 %2083, %v1083
          %v2085 = vpop.permute.xlu0 %2084
          %2086 = vset.pattern.permute.xlu0 5
          %2087 = vperm.xlu0 %2086, %v1084
          %v2088 = vpop.permute.xlu0 %2087
          %2089 = vset.pattern.permute.xlu0 5
          %2090 = vperm.xlu0 %2089, %v1085
          %v2091 = vpop.permute.xlu0 %2090
          %2092 = vset.pattern.permute.xlu0 5
          %2093 = vperm.xlu0 %2092, %v1086
          %v2094 = vpop.permute.xlu0 %2093
          %2095 = vset.pattern.permute.xlu0 5
          %2096 = vperm.xlu0 %2095, %v1087
          %v2097 = vpop.permute.xlu0 %2096
          %2098 = vset.pattern.permute.xlu0 5
          %2099 = vperm.xlu0 %2098, %v1088
          %v2100 = vpop.permute.xlu0 %2099
          %2101 = vset.pattern.permute.xlu0 5
          %2102 = vperm.xlu0 %2101, %v1089
          %v2103 = vpop.permute.xlu0 %2102
          %2104 = vset.pattern.permute.xlu0 5
          %2105 = vperm.xlu0 %2104, %v1090
          %v2106 = vpop.permute.xlu0 %2105
          %2107 = vset.pattern.permute.xlu0 5
          %2108 = vperm.xlu0 %2107, %v1091
          %v2109 = vpop.permute.xlu0 %2108
          %vm2110 = vcmp.eq.s32.totalorder %v2064, 1
          %vm2111 = vcmp.eq.s32.totalorder %v2067, 1
          %vm2112 = vcmp.eq.s32.totalorder %v2070, 1
          %vm2113 = vcmp.eq.s32.totalorder %v2073, 1
          %vm2114 = vcmp.eq.s32.totalorder %v2076, 1
          %vm2115 = vcmp.eq.s32.totalorder %v2079, 1
          %vm2116 = vcmp.eq.s32.totalorder %v2082, 1
          %vm2117 = vcmp.eq.s32.totalorder %v2085, 1
          %vm2118 = vcmp.eq.s32.totalorder %v2088, 1
          %vm2119 = vcmp.eq.s32.totalorder %v2091, 1
          %vm2120 = vcmp.eq.s32.totalorder %v2094, 1
          %vm2121 = vcmp.eq.s32.totalorder %v2097, 1
          %vm2122 = vcmp.eq.s32.totalorder %v2100, 1
          %vm2123 = vcmp.eq.s32.totalorder %v2103, 1
          %vm2124 = vcmp.eq.s32.totalorder %v2106, 1
          %vm2125 = vcmp.eq.s32.totalorder %v2109, 1
          %v2126 = vsel %vm2110, %v2046, 0.0
          %v2127 = vsel %vm2111, %v2047, 0.0
          %v2128 = vsel %vm2112, %v2048, 0.0
          %v2129 = vsel %vm2113, %v2049, 0.0
          %v2130 = vsel %vm2114, %v2050, 0.0
          %v2131 = vsel %vm2115, %v2051, 0.0
          %v2132 = vsel %vm2116, %v2052, 0.0
          %v2133 = vsel %vm2117, %v2053, 0.0
          %v2134 = vsel %vm2118, %v2054, 0.0
          %v2135 = vsel %vm2119, %v2055, 0.0
          %v2136 = vsel %vm2120, %v2056, 0.0
          %v2137 = vsel %vm2121, %v2057, 0.0
          %v2138 = vsel %vm2122, %v2058, 0.0
          %v2139 = vsel %vm2123, %v2059, 0.0
          %v2140 = vsel %vm2124, %v2060, 0.0
          %v2141 = vsel %vm2125, %v2061, 0.0
          %v2142 = vadd.f32 %v1948, %v2126
          %v2143 = vadd.f32 %v1949, %v2127
          %v2144 = vadd.f32 %v1950, %v2128
          %v2145 = vadd.f32 %v1951, %v2129
          %v2146 = vadd.f32 %v1952, %v2130
          %v2147 = vadd.f32 %v1953, %v2131
          %v2148 = vadd.f32 %v1954, %v2132
          %v2149 = vadd.f32 %v1955, %v2133
          %v2150 = vadd.f32 %v1956, %v2134
          %v2151 = vadd.f32 %v1957, %v2135
          %v2152 = vadd.f32 %v1958, %v2136
          %v2153 = vadd.f32 %v1959, %v2137
          %v2154 = vadd.f32 %v1960, %v2138
          %v2155 = vadd.f32 %v1961, %v2139
          %v2156 = vadd.f32 %v1962, %v2140
          %v2157 = vadd.f32 %v1963, %v2141
          %s2158 = sadd.s32 768, %s962
          %s2159 = scalar_lea.vmem [#allocation3], %s2158
          %v2160 = vld [vmem:[%s2159] sm:$0xff]
          %v2161 = vld [vmem:[%s2159 + $0x8] sm:$0xff]
          %v2162 = vld [vmem:[%s2159 + $0x10] sm:$0xff]
          %v2163 = vld [vmem:[%s2159 + $0x18] sm:$0xff]
          %v2164 = vld [vmem:[%s2159 + $0x20] sm:$0xff]
          %v2165 = vld [vmem:[%s2159 + $0x28] sm:$0xff]
          %v2166 = vld [vmem:[%s2159 + $0x30] sm:$0xff]
          %v2167 = vld [vmem:[%s2159 + $0x38] sm:$0xff]
          %v2168 = vld [vmem:[%s2159 + $0x40] sm:$0xff]
          %v2169 = vld [vmem:[%s2159 + $0x48] sm:$0xff]
          %v2170 = vld [vmem:[%s2159 + $0x50] sm:$0xff]
          %v2171 = vld [vmem:[%s2159 + $0x58] sm:$0xff]
          %v2172 = vld [vmem:[%s2159 + $0x60] sm:$0xff]
          %v2173 = vld [vmem:[%s2159 + $0x68] sm:$0xff]
          %v2174 = vld [vmem:[%s2159 + $0x70] sm:$0xff]
          %v2175 = vld [vmem:[%s2159 + $0x78] sm:$0xff]
          %2176 = vset.pattern.permute.xlu0 6
          %2177 = vperm.xlu0 %2176, %v930
          %v2178 = vpop.permute.xlu0 %2177
          %2180 = vset.pattern.permute.xlu0 6
          %2181 = vperm.xlu0 %2180, %v931
          %v2182 = vpop.permute.xlu0 %2181
          %2184 = vset.pattern.permute.xlu0 6
          %2185 = vperm.xlu0 %2184, %v932
          %v2186 = vpop.permute.xlu0 %2185
          %2188 = vset.pattern.permute.xlu0 6
          %2189 = vperm.xlu0 %2188, %v933
          %v2190 = vpop.permute.xlu0 %2189
          %2192 = vset.pattern.permute.xlu0 6
          %2193 = vperm.xlu0 %2192, %v934
          %v2194 = vpop.permute.xlu0 %2193
          %2196 = vset.pattern.permute.xlu0 6
          %2197 = vperm.xlu0 %2196, %v935
          %v2198 = vpop.permute.xlu0 %2197
          %2200 = vset.pattern.permute.xlu0 6
          %2201 = vperm.xlu0 %2200, %v936
          %v2202 = vpop.permute.xlu0 %2201
          %2204 = vset.pattern.permute.xlu0 6
          %2205 = vperm.xlu0 %2204, %v937
          %v2206 = vpop.permute.xlu0 %2205
          %2208 = vset.pattern.permute.xlu0 6
          %2209 = vperm.xlu0 %2208, %v938
          %v2210 = vpop.permute.xlu0 %2209
          %2212 = vset.pattern.permute.xlu0 6
          %2213 = vperm.xlu0 %2212, %v939
          %v2214 = vpop.permute.xlu0 %2213
          %2216 = vset.pattern.permute.xlu0 6
          %2217 = vperm.xlu0 %2216, %v940
          %v2218 = vpop.permute.xlu0 %2217
          %2220 = vset.pattern.permute.xlu0 6
          %2221 = vperm.xlu0 %2220, %v941
          %v2222 = vpop.permute.xlu0 %2221
          %2224 = vset.pattern.permute.xlu0 6
          %2225 = vperm.xlu0 %2224, %v942
          %v2226 = vpop.permute.xlu0 %2225
          %2228 = vset.pattern.permute.xlu0 6
          %2229 = vperm.xlu0 %2228, %v943
          %v2230 = vpop.permute.xlu0 %2229
          %2232 = vset.pattern.permute.xlu0 6
          %2233 = vperm.xlu0 %2232, %v944
          %v2234 = vpop.permute.xlu0 %2233
          %2236 = vset.pattern.permute.xlu0 6
          %2237 = vperm.xlu0 %2236, %v945
          %v2238 = vpop.permute.xlu0 %2237
          %v2240 = vmul.f32 %v2178, %v2160
          %v2241 = vmul.f32 %v2182, %v2161
          %v2242 = vmul.f32 %v2186, %v2162
          %v2243 = vmul.f32 %v2190, %v2163
          %v2244 = vmul.f32 %v2194, %v2164
          %v2245 = vmul.f32 %v2198, %v2165
          %v2246 = vmul.f32 %v2202, %v2166
          %v2247 = vmul.f32 %v2206, %v2167
          %v2248 = vmul.f32 %v2210, %v2168
          %v2249 = vmul.f32 %v2214, %v2169
          %v2250 = vmul.f32 %v2218, %v2170
          %v2251 = vmul.f32 %v2222, %v2171
          %v2252 = vmul.f32 %v2226, %v2172
          %v2253 = vmul.f32 %v2230, %v2173
          %v2254 = vmul.f32 %v2234, %v2174
          %v2255 = vmul.f32 %v2238, %v2175
          %2256 = vset.pattern.permute.xlu0 6
          %2257 = vperm.xlu0 %2256, %v1076
          %v2258 = vpop.permute.xlu0 %2257
          %2259 = vset.pattern.permute.xlu0 6
          %2260 = vperm.xlu0 %2259, %v1077
          %v2261 = vpop.permute.xlu0 %2260
          %2262 = vset.pattern.permute.xlu0 6
          %2263 = vperm.xlu0 %2262, %v1078
          %v2264 = vpop.permute.xlu0 %2263
          %2265 = vset.pattern.permute.xlu0 6
          %2266 = vperm.xlu0 %2265, %v1079
          %v2267 = vpop.permute.xlu0 %2266
          %2268 = vset.pattern.permute.xlu0 6
          %2269 = vperm.xlu0 %2268, %v1080
          %v2270 = vpop.permute.xlu0 %2269
          %2271 = vset.pattern.permute.xlu0 6
          %2272 = vperm.xlu0 %2271, %v1081
          %v2273 = vpop.permute.xlu0 %2272
          %2274 = vset.pattern.permute.xlu0 6
          %2275 = vperm.xlu0 %2274, %v1082
          %v2276 = vpop.permute.xlu0 %2275
          %2277 = vset.pattern.permute.xlu0 6
          %2278 = vperm.xlu0 %2277, %v1083
          %v2279 = vpop.permute.xlu0 %2278
          %2280 = vset.pattern.permute.xlu0 6
          %2281 = vperm.xlu0 %2280, %v1084
          %v2282 = vpop.permute.xlu0 %2281
          %2283 = vset.pattern.permute.xlu0 6
          %2284 = vperm.xlu0 %2283, %v1085
          %v2285 = vpop.permute.xlu0 %2284
          %2286 = vset.pattern.permute.xlu0 6
          %2287 = vperm.xlu0 %2286, %v1086
          %v2288 = vpop.permute.xlu0 %2287
          %2289 = vset.pattern.permute.xlu0 6
          %2290 = vperm.xlu0 %2289, %v1087
          %v2291 = vpop.permute.xlu0 %2290
          %2292 = vset.pattern.permute.xlu0 6
          %2293 = vperm.xlu0 %2292, %v1088
          %v2294 = vpop.permute.xlu0 %2293
          %2295 = vset.pattern.permute.xlu0 6
          %2296 = vperm.xlu0 %2295, %v1089
          %v2297 = vpop.permute.xlu0 %2296
          %2298 = vset.pattern.permute.xlu0 6
          %2299 = vperm.xlu0 %2298, %v1090
          %v2300 = vpop.permute.xlu0 %2299
          %2301 = vset.pattern.permute.xlu0 6
          %2302 = vperm.xlu0 %2301, %v1091
          %v2303 = vpop.permute.xlu0 %2302
          %vm2304 = vcmp.eq.s32.totalorder %v2258, 1
          %vm2305 = vcmp.eq.s32.totalorder %v2261, 1
          %vm2306 = vcmp.eq.s32.totalorder %v2264, 1
          %vm2307 = vcmp.eq.s32.totalorder %v2267, 1
          %vm2308 = vcmp.eq.s32.totalorder %v2270, 1
          %vm2309 = vcmp.eq.s32.totalorder %v2273, 1
          %vm2310 = vcmp.eq.s32.totalorder %v2276, 1
          %vm2311 = vcmp.eq.s32.totalorder %v2279, 1
          %vm2312 = vcmp.eq.s32.totalorder %v2282, 1
          %vm2313 = vcmp.eq.s32.totalorder %v2285, 1
          %vm2314 = vcmp.eq.s32.totalorder %v2288, 1
          %vm2315 = vcmp.eq.s32.totalorder %v2291, 1
          %vm2316 = vcmp.eq.s32.totalorder %v2294, 1
          %vm2317 = vcmp.eq.s32.totalorder %v2297, 1
          %vm2318 = vcmp.eq.s32.totalorder %v2300, 1
          %vm2319 = vcmp.eq.s32.totalorder %v2303, 1
          %v2320 = vsel %vm2304, %v2240, 0.0
          %v2321 = vsel %vm2305, %v2241, 0.0
          %v2322 = vsel %vm2306, %v2242, 0.0
          %v2323 = vsel %vm2307, %v2243, 0.0
          %v2324 = vsel %vm2308, %v2244, 0.0
          %v2325 = vsel %vm2309, %v2245, 0.0
          %v2326 = vsel %vm2310, %v2246, 0.0
          %v2327 = vsel %vm2311, %v2247, 0.0
          %v2328 = vsel %vm2312, %v2248, 0.0
          %v2329 = vsel %vm2313, %v2249, 0.0
          %v2330 = vsel %vm2314, %v2250, 0.0
          %v2331 = vsel %vm2315, %v2251, 0.0
          %v2332 = vsel %vm2316, %v2252, 0.0
          %v2333 = vsel %vm2317, %v2253, 0.0
          %v2334 = vsel %vm2318, %v2254, 0.0
          %v2335 = vsel %vm2319, %v2255, 0.0
          %v2336 = vadd.f32 %v2142, %v2320
          %v2337 = vadd.f32 %v2143, %v2321
          %v2338 = vadd.f32 %v2144, %v2322
          %v2339 = vadd.f32 %v2145, %v2323
          %v2340 = vadd.f32 %v2146, %v2324
          %v2341 = vadd.f32 %v2147, %v2325
          %v2342 = vadd.f32 %v2148, %v2326
          %v2343 = vadd.f32 %v2149, %v2327
          %v2344 = vadd.f32 %v2150, %v2328
          %v2345 = vadd.f32 %v2151, %v2329
          %v2346 = vadd.f32 %v2152, %v2330
          %v2347 = vadd.f32 %v2153, %v2331
          %v2348 = vadd.f32 %v2154, %v2332
          %v2349 = vadd.f32 %v2155, %v2333
          %v2350 = vadd.f32 %v2156, %v2334
          %v2351 = vadd.f32 %v2157, %v2335
          %s2352 = sadd.s32 896, %s962
          %s2353 = scalar_lea.vmem [#allocation3], %s2352
          %v2354 = vld [vmem:[%s2353] sm:$0xff]
          %v2355 = vld [vmem:[%s2353 + $0x8] sm:$0xff]
          %v2356 = vld [vmem:[%s2353 + $0x10] sm:$0xff]
          %v2357 = vld [vmem:[%s2353 + $0x18] sm:$0xff]
          %v2358 = vld [vmem:[%s2353 + $0x20] sm:$0xff]
          %v2359 = vld [vmem:[%s2353 + $0x28] sm:$0xff]
          %v2360 = vld [vmem:[%s2353 + $0x30] sm:$0xff]
          %v2361 = vld [vmem:[%s2353 + $0x38] sm:$0xff]
          %v2362 = vld [vmem:[%s2353 + $0x40] sm:$0xff]
          %v2363 = vld [vmem:[%s2353 + $0x48] sm:$0xff]
          %v2364 = vld [vmem:[%s2353 + $0x50] sm:$0xff]
          %v2365 = vld [vmem:[%s2353 + $0x58] sm:$0xff]
          %v2366 = vld [vmem:[%s2353 + $0x60] sm:$0xff]
          %v2367 = vld [vmem:[%s2353 + $0x68] sm:$0xff]
          %v2368 = vld [vmem:[%s2353 + $0x70] sm:$0xff]
          %v2369 = vld [vmem:[%s2353 + $0x78] sm:$0xff]
          %2370 = vset.pattern.permute.xlu0 7
          %2371 = vperm.xlu0 %2370, %v930
          %v2372 = vpop.permute.xlu0 %2371
          %2374 = vset.pattern.permute.xlu0 7
          %2375 = vperm.xlu0 %2374, %v931
          %v2376 = vpop.permute.xlu0 %2375
          %2378 = vset.pattern.permute.xlu0 7
          %2379 = vperm.xlu0 %2378, %v932
          %v2380 = vpop.permute.xlu0 %2379
          %2382 = vset.pattern.permute.xlu0 7
          %2383 = vperm.xlu0 %2382, %v933
          %v2384 = vpop.permute.xlu0 %2383
          %2386 = vset.pattern.permute.xlu0 7
          %2387 = vperm.xlu0 %2386, %v934
          %v2388 = vpop.permute.xlu0 %2387
          %2390 = vset.pattern.permute.xlu0 7
          %2391 = vperm.xlu0 %2390, %v935
          %v2392 = vpop.permute.xlu0 %2391
          %2394 = vset.pattern.permute.xlu0 7
          %2395 = vperm.xlu0 %2394, %v936
          %v2396 = vpop.permute.xlu0 %2395
          %2398 = vset.pattern.permute.xlu0 7
          %2399 = vperm.xlu0 %2398, %v937
          %v2400 = vpop.permute.xlu0 %2399
          %2402 = vset.pattern.permute.xlu0 7
          %2403 = vperm.xlu0 %2402, %v938
          %v2404 = vpop.permute.xlu0 %2403
          %2406 = vset.pattern.permute.xlu0 7
          %2407 = vperm.xlu0 %2406, %v939
          %v2408 = vpop.permute.xlu0 %2407
          %2410 = vset.pattern.permute.xlu0 7
          %2411 = vperm.xlu0 %2410, %v940
          %v2412 = vpop.permute.xlu0 %2411
          %2414 = vset.pattern.permute.xlu0 7
          %2415 = vperm.xlu0 %2414, %v941
          %v2416 = vpop.permute.xlu0 %2415
          %2418 = vset.pattern.permute.xlu0 7
          %2419 = vperm.xlu0 %2418, %v942
          %v2420 = vpop.permute.xlu0 %2419
          %2422 = vset.pattern.permute.xlu0 7
          %2423 = vperm.xlu0 %2422, %v943
          %v2424 = vpop.permute.xlu0 %2423
          %2426 = vset.pattern.permute.xlu0 7
          %2427 = vperm.xlu0 %2426, %v944
          %v2428 = vpop.permute.xlu0 %2427
          %2430 = vset.pattern.permute.xlu0 7
          %2431 = vperm.xlu0 %2430, %v945
          %v2432 = vpop.permute.xlu0 %2431
          %v2434 = vmul.f32 %v2372, %v2354
          %v2435 = vmul.f32 %v2376, %v2355
          %v2436 = vmul.f32 %v2380, %v2356
          %v2437 = vmul.f32 %v2384, %v2357
          %v2438 = vmul.f32 %v2388, %v2358
          %v2439 = vmul.f32 %v2392, %v2359
          %v2440 = vmul.f32 %v2396, %v2360
          %v2441 = vmul.f32 %v2400, %v2361
          %v2442 = vmul.f32 %v2404, %v2362
          %v2443 = vmul.f32 %v2408, %v2363
          %v2444 = vmul.f32 %v2412, %v2364
          %v2445 = vmul.f32 %v2416, %v2365
          %v2446 = vmul.f32 %v2420, %v2366
          %v2447 = vmul.f32 %v2424, %v2367
          %v2448 = vmul.f32 %v2428, %v2368
          %v2449 = vmul.f32 %v2432, %v2369
          %2450 = vset.pattern.permute.xlu0 7
          %2451 = vperm.xlu0 %2450, %v1076
          %v2452 = vpop.permute.xlu0 %2451
          %2453 = vset.pattern.permute.xlu0 7
          %2454 = vperm.xlu0 %2453, %v1077
          %v2455 = vpop.permute.xlu0 %2454
          %2456 = vset.pattern.permute.xlu0 7
          %2457 = vperm.xlu0 %2456, %v1078
          %v2458 = vpop.permute.xlu0 %2457
          %2459 = vset.pattern.permute.xlu0 7
          %2460 = vperm.xlu0 %2459, %v1079
          %v2461 = vpop.permute.xlu0 %2460
          %2462 = vset.pattern.permute.xlu0 7
          %2463 = vperm.xlu0 %2462, %v1080
          %v2464 = vpop.permute.xlu0 %2463
          %2465 = vset.pattern.permute.xlu0 7
          %2466 = vperm.xlu0 %2465, %v1081
          %v2467 = vpop.permute.xlu0 %2466
          %2468 = vset.pattern.permute.xlu0 7
          %2469 = vperm.xlu0 %2468, %v1082
          %v2470 = vpop.permute.xlu0 %2469
          %2471 = vset.pattern.permute.xlu0 7
          %2472 = vperm.xlu0 %2471, %v1083
          %v2473 = vpop.permute.xlu0 %2472
          %2474 = vset.pattern.permute.xlu0 7
          %2475 = vperm.xlu0 %2474, %v1084
          %v2476 = vpop.permute.xlu0 %2475
          %2477 = vset.pattern.permute.xlu0 7
          %2478 = vperm.xlu0 %2477, %v1085
          %v2479 = vpop.permute.xlu0 %2478
          %2480 = vset.pattern.permute.xlu0 7
          %2481 = vperm.xlu0 %2480, %v1086
          %v2482 = vpop.permute.xlu0 %2481
          %2483 = vset.pattern.permute.xlu0 7
          %2484 = vperm.xlu0 %2483, %v1087
          %v2485 = vpop.permute.xlu0 %2484
          %2486 = vset.pattern.permute.xlu0 7
          %2487 = vperm.xlu0 %2486, %v1088
          %v2488 = vpop.permute.xlu0 %2487
          %2489 = vset.pattern.permute.xlu0 7
          %2490 = vperm.xlu0 %2489, %v1089
          %v2491 = vpop.permute.xlu0 %2490
          %2492 = vset.pattern.permute.xlu0 7
          %2493 = vperm.xlu0 %2492, %v1090
          %v2494 = vpop.permute.xlu0 %2493
          %2495 = vset.pattern.permute.xlu0 7
          %2496 = vperm.xlu0 %2495, %v1091
          %v2497 = vpop.permute.xlu0 %2496
          %vm2498 = vcmp.eq.s32.totalorder %v2452, 1
          %vm2499 = vcmp.eq.s32.totalorder %v2455, 1
          %vm2500 = vcmp.eq.s32.totalorder %v2458, 1
          %vm2501 = vcmp.eq.s32.totalorder %v2461, 1
          %vm2502 = vcmp.eq.s32.totalorder %v2464, 1
          %vm2503 = vcmp.eq.s32.totalorder %v2467, 1
          %vm2504 = vcmp.eq.s32.totalorder %v2470, 1
          %vm2505 = vcmp.eq.s32.totalorder %v2473, 1
          %vm2506 = vcmp.eq.s32.totalorder %v2476, 1
          %vm2507 = vcmp.eq.s32.totalorder %v2479, 1
          %vm2508 = vcmp.eq.s32.totalorder %v2482, 1
          %vm2509 = vcmp.eq.s32.totalorder %v2485, 1
          %vm2510 = vcmp.eq.s32.totalorder %v2488, 1
          %vm2511 = vcmp.eq.s32.totalorder %v2491, 1
          %vm2512 = vcmp.eq.s32.totalorder %v2494, 1
          %vm2513 = vcmp.eq.s32.totalorder %v2497, 1
          %v2514 = vsel %vm2498, %v2434, 0.0
          %v2515 = vsel %vm2499, %v2435, 0.0
          %v2516 = vsel %vm2500, %v2436, 0.0
          %v2517 = vsel %vm2501, %v2437, 0.0
          %v2518 = vsel %vm2502, %v2438, 0.0
          %v2519 = vsel %vm2503, %v2439, 0.0
          %v2520 = vsel %vm2504, %v2440, 0.0
          %v2521 = vsel %vm2505, %v2441, 0.0
          %v2522 = vsel %vm2506, %v2442, 0.0
          %v2523 = vsel %vm2507, %v2443, 0.0
          %v2524 = vsel %vm2508, %v2444, 0.0
          %v2525 = vsel %vm2509, %v2445, 0.0
          %v2526 = vsel %vm2510, %v2446, 0.0
          %v2527 = vsel %vm2511, %v2447, 0.0
          %v2528 = vsel %vm2512, %v2448, 0.0
          %v2529 = vsel %vm2513, %v2449, 0.0
          %v2530 = vadd.f32 %v2336, %v2514
          %v2531 = vadd.f32 %v2337, %v2515
          %v2532 = vadd.f32 %v2338, %v2516
          %v2533 = vadd.f32 %v2339, %v2517
          %v2534 = vadd.f32 %v2340, %v2518
          %v2535 = vadd.f32 %v2341, %v2519
          %v2536 = vadd.f32 %v2342, %v2520
          %v2537 = vadd.f32 %v2343, %v2521
          %v2538 = vadd.f32 %v2344, %v2522
          %v2539 = vadd.f32 %v2345, %v2523
          %v2540 = vadd.f32 %v2346, %v2524
          %v2541 = vadd.f32 %v2347, %v2525
          %v2542 = vadd.f32 %v2348, %v2526
          %v2543 = vadd.f32 %v2349, %v2527
          %v2544 = vadd.f32 %v2350, %v2528
          %v2545 = vadd.f32 %v2351, %v2529
          %s2546 = sadd.s32 1024, %s962
          %s2547 = scalar_lea.vmem [#allocation3], %s2546
          %v2548 = vld [vmem:[%s2547] sm:$0xff]
          %v2549 = vld [vmem:[%s2547 + $0x8] sm:$0xff]
          %v2550 = vld [vmem:[%s2547 + $0x10] sm:$0xff]
          %v2551 = vld [vmem:[%s2547 + $0x18] sm:$0xff]
          %v2552 = vld [vmem:[%s2547 + $0x20] sm:$0xff]
          %v2553 = vld [vmem:[%s2547 + $0x28] sm:$0xff]
          %v2554 = vld [vmem:[%s2547 + $0x30] sm:$0xff]
          %v2555 = vld [vmem:[%s2547 + $0x38] sm:$0xff]
          %v2556 = vld [vmem:[%s2547 + $0x40] sm:$0xff]
          %v2557 = vld [vmem:[%s2547 + $0x48] sm:$0xff]
          %v2558 = vld [vmem:[%s2547 + $0x50] sm:$0xff]
          %v2559 = vld [vmem:[%s2547 + $0x58] sm:$0xff]
          %v2560 = vld [vmem:[%s2547 + $0x60] sm:$0xff]
          %v2561 = vld [vmem:[%s2547 + $0x68] sm:$0xff]
          %v2562 = vld [vmem:[%s2547 + $0x70] sm:$0xff]
          %v2563 = vld [vmem:[%s2547 + $0x78] sm:$0xff]
          %2564 = vset.pattern.permute.xlu0 8
          %2565 = vperm.xlu0 %2564, %v930
          %v2566 = vpop.permute.xlu0 %2565
          %2568 = vset.pattern.permute.xlu0 8
          %2569 = vperm.xlu0 %2568, %v931
          %v2570 = vpop.permute.xlu0 %2569
          %2572 = vset.pattern.permute.xlu0 8
          %2573 = vperm.xlu0 %2572, %v932
          %v2574 = vpop.permute.xlu0 %2573
          %2576 = vset.pattern.permute.xlu0 8
          %2577 = vperm.xlu0 %2576, %v933
          %v2578 = vpop.permute.xlu0 %2577
          %2580 = vset.pattern.permute.xlu0 8
          %2581 = vperm.xlu0 %2580, %v934
          %v2582 = vpop.permute.xlu0 %2581
          %2584 = vset.pattern.permute.xlu0 8
          %2585 = vperm.xlu0 %2584, %v935
          %v2586 = vpop.permute.xlu0 %2585
          %2588 = vset.pattern.permute.xlu0 8
          %2589 = vperm.xlu0 %2588, %v936
          %v2590 = vpop.permute.xlu0 %2589
          %2592 = vset.pattern.permute.xlu0 8
          %2593 = vperm.xlu0 %2592, %v937
          %v2594 = vpop.permute.xlu0 %2593
          %2596 = vset.pattern.permute.xlu0 8
          %2597 = vperm.xlu0 %2596, %v938
          %v2598 = vpop.permute.xlu0 %2597
          %2600 = vset.pattern.permute.xlu0 8
          %2601 = vperm.xlu0 %2600, %v939
          %v2602 = vpop.permute.xlu0 %2601
          %2604 = vset.pattern.permute.xlu0 8
          %2605 = vperm.xlu0 %2604, %v940
          %v2606 = vpop.permute.xlu0 %2605
          %2608 = vset.pattern.permute.xlu0 8
          %2609 = vperm.xlu0 %2608, %v941
          %v2610 = vpop.permute.xlu0 %2609
          %2612 = vset.pattern.permute.xlu0 8
          %2613 = vperm.xlu0 %2612, %v942
          %v2614 = vpop.permute.xlu0 %2613
          %2616 = vset.pattern.permute.xlu0 8
          %2617 = vperm.xlu0 %2616, %v943
          %v2618 = vpop.permute.xlu0 %2617
          %2620 = vset.pattern.permute.xlu0 8
          %2621 = vperm.xlu0 %2620, %v944
          %v2622 = vpop.permute.xlu0 %2621
          %2624 = vset.pattern.permute.xlu0 8
          %2625 = vperm.xlu0 %2624, %v945
          %v2626 = vpop.permute.xlu0 %2625
          %v2628 = vmul.f32 %v2566, %v2548
          %v2629 = vmul.f32 %v2570, %v2549
          %v2630 = vmul.f32 %v2574, %v2550
          %v2631 = vmul.f32 %v2578, %v2551
          %v2632 = vmul.f32 %v2582, %v2552
          %v2633 = vmul.f32 %v2586, %v2553
          %v2634 = vmul.f32 %v2590, %v2554
          %v2635 = vmul.f32 %v2594, %v2555
          %v2636 = vmul.f32 %v2598, %v2556
          %v2637 = vmul.f32 %v2602, %v2557
          %v2638 = vmul.f32 %v2606, %v2558
          %v2639 = vmul.f32 %v2610, %v2559
          %v2640 = vmul.f32 %v2614, %v2560
          %v2641 = vmul.f32 %v2618, %v2561
          %v2642 = vmul.f32 %v2622, %v2562
          %v2643 = vmul.f32 %v2626, %v2563
          %2644 = vset.pattern.permute.xlu0 8
          %2645 = vperm.xlu0 %2644, %v1076
          %v2646 = vpop.permute.xlu0 %2645
          %2647 = vset.pattern.permute.xlu0 8
          %2648 = vperm.xlu0 %2647, %v1077
          %v2649 = vpop.permute.xlu0 %2648
          %2650 = vset.pattern.permute.xlu0 8
          %2651 = vperm.xlu0 %2650, %v1078
          %v2652 = vpop.permute.xlu0 %2651
          %2653 = vset.pattern.permute.xlu0 8
          %2654 = vperm.xlu0 %2653, %v1079
          %v2655 = vpop.permute.xlu0 %2654
          %2656 = vset.pattern.permute.xlu0 8
          %2657 = vperm.xlu0 %2656, %v1080
          %v2658 = vpop.permute.xlu0 %2657
          %2659 = vset.pattern.permute.xlu0 8
          %2660 = vperm.xlu0 %2659, %v1081
          %v2661 = vpop.permute.xlu0 %2660
          %2662 = vset.pattern.permute.xlu0 8
          %2663 = vperm.xlu0 %2662, %v1082
          %v2664 = vpop.permute.xlu0 %2663
          %2665 = vset.pattern.permute.xlu0 8
          %2666 = vperm.xlu0 %2665, %v1083
          %v2667 = vpop.permute.xlu0 %2666
          %2668 = vset.pattern.permute.xlu0 8
          %2669 = vperm.xlu0 %2668, %v1084
          %v2670 = vpop.permute.xlu0 %2669
          %2671 = vset.pattern.permute.xlu0 8
          %2672 = vperm.xlu0 %2671, %v1085
          %v2673 = vpop.permute.xlu0 %2672
          %2674 = vset.pattern.permute.xlu0 8
          %2675 = vperm.xlu0 %2674, %v1086
          %v2676 = vpop.permute.xlu0 %2675
          %2677 = vset.pattern.permute.xlu0 8
          %2678 = vperm.xlu0 %2677, %v1087
          %v2679 = vpop.permute.xlu0 %2678
          %2680 = vset.pattern.permute.xlu0 8
          %2681 = vperm.xlu0 %2680, %v1088
          %v2682 = vpop.permute.xlu0 %2681
          %2683 = vset.pattern.permute.xlu0 8
          %2684 = vperm.xlu0 %2683, %v1089
          %v2685 = vpop.permute.xlu0 %2684
          %2686 = vset.pattern.permute.xlu0 8
          %2687 = vperm.xlu0 %2686, %v1090
          %v2688 = vpop.permute.xlu0 %2687
          %2689 = vset.pattern.permute.xlu0 8
          %2690 = vperm.xlu0 %2689, %v1091
          %v2691 = vpop.permute.xlu0 %2690
          %vm2692 = vcmp.eq.s32.totalorder %v2646, 1
          %vm2693 = vcmp.eq.s32.totalorder %v2649, 1
          %vm2694 = vcmp.eq.s32.totalorder %v2652, 1
          %vm2695 = vcmp.eq.s32.totalorder %v2655, 1
          %vm2696 = vcmp.eq.s32.totalorder %v2658, 1
          %vm2697 = vcmp.eq.s32.totalorder %v2661, 1
          %vm2698 = vcmp.eq.s32.totalorder %v2664, 1
          %vm2699 = vcmp.eq.s32.totalorder %v2667, 1
          %vm2700 = vcmp.eq.s32.totalorder %v2670, 1
          %vm2701 = vcmp.eq.s32.totalorder %v2673, 1
          %vm2702 = vcmp.eq.s32.totalorder %v2676, 1
          %vm2703 = vcmp.eq.s32.totalorder %v2679, 1
          %vm2704 = vcmp.eq.s32.totalorder %v2682, 1
          %vm2705 = vcmp.eq.s32.totalorder %v2685, 1
          %vm2706 = vcmp.eq.s32.totalorder %v2688, 1
          %vm2707 = vcmp.eq.s32.totalorder %v2691, 1
          %v2708 = vsel %vm2692, %v2628, 0.0
          %v2709 = vsel %vm2693, %v2629, 0.0
          %v2710 = vsel %vm2694, %v2630, 0.0
          %v2711 = vsel %vm2695, %v2631, 0.0
          %v2712 = vsel %vm2696, %v2632, 0.0
          %v2713 = vsel %vm2697, %v2633, 0.0
          %v2714 = vsel %vm2698, %v2634, 0.0
          %v2715 = vsel %vm2699, %v2635, 0.0
          %v2716 = vsel %vm2700, %v2636, 0.0
          %v2717 = vsel %vm2701, %v2637, 0.0
          %v2718 = vsel %vm2702, %v2638, 0.0
          %v2719 = vsel %vm2703, %v2639, 0.0
          %v2720 = vsel %vm2704, %v2640, 0.0
          %v2721 = vsel %vm2705, %v2641, 0.0
          %v2722 = vsel %vm2706, %v2642, 0.0
          %v2723 = vsel %vm2707, %v2643, 0.0
          %v2724 = vadd.f32 %v2530, %v2708
          %v2725 = vadd.f32 %v2531, %v2709
          %v2726 = vadd.f32 %v2532, %v2710
          %v2727 = vadd.f32 %v2533, %v2711
          %v2728 = vadd.f32 %v2534, %v2712
          %v2729 = vadd.f32 %v2535, %v2713
          %v2730 = vadd.f32 %v2536, %v2714
          %v2731 = vadd.f32 %v2537, %v2715
          %v2732 = vadd.f32 %v2538, %v2716
          %v2733 = vadd.f32 %v2539, %v2717
          %v2734 = vadd.f32 %v2540, %v2718
          %v2735 = vadd.f32 %v2541, %v2719
          %v2736 = vadd.f32 %v2542, %v2720
          %v2737 = vadd.f32 %v2543, %v2721
          %v2738 = vadd.f32 %v2544, %v2722
          %v2739 = vadd.f32 %v2545, %v2723
          %s2740 = sadd.s32 1152, %s962
          %s2741 = scalar_lea.vmem [#allocation3], %s2740
          %v2742 = vld [vmem:[%s2741] sm:$0xff]
          %v2743 = vld [vmem:[%s2741 + $0x8] sm:$0xff]
          %v2744 = vld [vmem:[%s2741 + $0x10] sm:$0xff]
          %v2745 = vld [vmem:[%s2741 + $0x18] sm:$0xff]
          %v2746 = vld [vmem:[%s2741 + $0x20] sm:$0xff]
          %v2747 = vld [vmem:[%s2741 + $0x28] sm:$0xff]
          %v2748 = vld [vmem:[%s2741 + $0x30] sm:$0xff]
          %v2749 = vld [vmem:[%s2741 + $0x38] sm:$0xff]
          %v2750 = vld [vmem:[%s2741 + $0x40] sm:$0xff]
          %v2751 = vld [vmem:[%s2741 + $0x48] sm:$0xff]
          %v2752 = vld [vmem:[%s2741 + $0x50] sm:$0xff]
          %v2753 = vld [vmem:[%s2741 + $0x58] sm:$0xff]
          %v2754 = vld [vmem:[%s2741 + $0x60] sm:$0xff]
          %v2755 = vld [vmem:[%s2741 + $0x68] sm:$0xff]
          %v2756 = vld [vmem:[%s2741 + $0x70] sm:$0xff]
          %v2757 = vld [vmem:[%s2741 + $0x78] sm:$0xff]
          %2758 = vset.pattern.permute.xlu0 9
          %2759 = vperm.xlu0 %2758, %v930
          %v2760 = vpop.permute.xlu0 %2759
          %2762 = vset.pattern.permute.xlu0 9
          %2763 = vperm.xlu0 %2762, %v931
          %v2764 = vpop.permute.xlu0 %2763
          %2766 = vset.pattern.permute.xlu0 9
          %2767 = vperm.xlu0 %2766, %v932
          %v2768 = vpop.permute.xlu0 %2767
          %2770 = vset.pattern.permute.xlu0 9
          %2771 = vperm.xlu0 %2770, %v933
          %v2772 = vpop.permute.xlu0 %2771
          %2774 = vset.pattern.permute.xlu0 9
          %2775 = vperm.xlu0 %2774, %v934
          %v2776 = vpop.permute.xlu0 %2775
          %2778 = vset.pattern.permute.xlu0 9
          %2779 = vperm.xlu0 %2778, %v935
          %v2780 = vpop.permute.xlu0 %2779
          %2782 = vset.pattern.permute.xlu0 9
          %2783 = vperm.xlu0 %2782, %v936
          %v2784 = vpop.permute.xlu0 %2783
          %2786 = vset.pattern.permute.xlu0 9
          %2787 = vperm.xlu0 %2786, %v937
          %v2788 = vpop.permute.xlu0 %2787
          %2790 = vset.pattern.permute.xlu0 9
          %2791 = vperm.xlu0 %2790, %v938
          %v2792 = vpop.permute.xlu0 %2791
          %2794 = vset.pattern.permute.xlu0 9
          %2795 = vperm.xlu0 %2794, %v939
          %v2796 = vpop.permute.xlu0 %2795
          %2798 = vset.pattern.permute.xlu0 9
          %2799 = vperm.xlu0 %2798, %v940
          %v2800 = vpop.permute.xlu0 %2799
          %2802 = vset.pattern.permute.xlu0 9
          %2803 = vperm.xlu0 %2802, %v941
          %v2804 = vpop.permute.xlu0 %2803
          %2806 = vset.pattern.permute.xlu0 9
          %2807 = vperm.xlu0 %2806, %v942
          %v2808 = vpop.permute.xlu0 %2807
          %2810 = vset.pattern.permute.xlu0 9
          %2811 = vperm.xlu0 %2810, %v943
          %v2812 = vpop.permute.xlu0 %2811
          %2814 = vset.pattern.permute.xlu0 9
          %2815 = vperm.xlu0 %2814, %v944
          %v2816 = vpop.permute.xlu0 %2815
          %2818 = vset.pattern.permute.xlu0 9
          %2819 = vperm.xlu0 %2818, %v945
          %v2820 = vpop.permute.xlu0 %2819
          %v2822 = vmul.f32 %v2760, %v2742
          %v2823 = vmul.f32 %v2764, %v2743
          %v2824 = vmul.f32 %v2768, %v2744
          %v2825 = vmul.f32 %v2772, %v2745
          %v2826 = vmul.f32 %v2776, %v2746
          %v2827 = vmul.f32 %v2780, %v2747
          %v2828 = vmul.f32 %v2784, %v2748
          %v2829 = vmul.f32 %v2788, %v2749
          %v2830 = vmul.f32 %v2792, %v2750
          %v2831 = vmul.f32 %v2796, %v2751
          %v2832 = vmul.f32 %v2800, %v2752
          %v2833 = vmul.f32 %v2804, %v2753
          %v2834 = vmul.f32 %v2808, %v2754
          %v2835 = vmul.f32 %v2812, %v2755
          %v2836 = vmul.f32 %v2816, %v2756
          %v2837 = vmul.f32 %v2820, %v2757
          %2838 = vset.pattern.permute.xlu0 9
          %2839 = vperm.xlu0 %2838, %v1076
          %v2840 = vpop.permute.xlu0 %2839
          %2841 = vset.pattern.permute.xlu0 9
          %2842 = vperm.xlu0 %2841, %v1077
          %v2843 = vpop.permute.xlu0 %2842
          %2844 = vset.pattern.permute.xlu0 9
          %2845 = vperm.xlu0 %2844, %v1078
          %v2846 = vpop.permute.xlu0 %2845
          %2847 = vset.pattern.permute.xlu0 9
          %2848 = vperm.xlu0 %2847, %v1079
          %v2849 = vpop.permute.xlu0 %2848
          %2850 = vset.pattern.permute.xlu0 9
          %2851 = vperm.xlu0 %2850, %v1080
          %v2852 = vpop.permute.xlu0 %2851
          %2853 = vset.pattern.permute.xlu0 9
          %2854 = vperm.xlu0 %2853, %v1081
          %v2855 = vpop.permute.xlu0 %2854
          %2856 = vset.pattern.permute.xlu0 9
          %2857 = vperm.xlu0 %2856, %v1082
          %v2858 = vpop.permute.xlu0 %2857
          %2859 = vset.pattern.permute.xlu0 9
          %2860 = vperm.xlu0 %2859, %v1083
          %v2861 = vpop.permute.xlu0 %2860
          %2862 = vset.pattern.permute.xlu0 9
          %2863 = vperm.xlu0 %2862, %v1084
          %v2864 = vpop.permute.xlu0 %2863
          %2865 = vset.pattern.permute.xlu0 9
          %2866 = vperm.xlu0 %2865, %v1085
          %v2867 = vpop.permute.xlu0 %2866
          %2868 = vset.pattern.permute.xlu0 9
          %2869 = vperm.xlu0 %2868, %v1086
          %v2870 = vpop.permute.xlu0 %2869
          %2871 = vset.pattern.permute.xlu0 9
          %2872 = vperm.xlu0 %2871, %v1087
          %v2873 = vpop.permute.xlu0 %2872
          %2874 = vset.pattern.permute.xlu0 9
          %2875 = vperm.xlu0 %2874, %v1088
          %v2876 = vpop.permute.xlu0 %2875
          %2877 = vset.pattern.permute.xlu0 9
          %2878 = vperm.xlu0 %2877, %v1089
          %v2879 = vpop.permute.xlu0 %2878
          %2880 = vset.pattern.permute.xlu0 9
          %2881 = vperm.xlu0 %2880, %v1090
          %v2882 = vpop.permute.xlu0 %2881
          %2883 = vset.pattern.permute.xlu0 9
          %2884 = vperm.xlu0 %2883, %v1091
          %v2885 = vpop.permute.xlu0 %2884
          %vm2886 = vcmp.eq.s32.totalorder %v2840, 1
          %vm2887 = vcmp.eq.s32.totalorder %v2843, 1
          %vm2888 = vcmp.eq.s32.totalorder %v2846, 1
          %vm2889 = vcmp.eq.s32.totalorder %v2849, 1
          %vm2890 = vcmp.eq.s32.totalorder %v2852, 1
          %vm2891 = vcmp.eq.s32.totalorder %v2855, 1
          %vm2892 = vcmp.eq.s32.totalorder %v2858, 1
          %vm2893 = vcmp.eq.s32.totalorder %v2861, 1
          %vm2894 = vcmp.eq.s32.totalorder %v2864, 1
          %vm2895 = vcmp.eq.s32.totalorder %v2867, 1
          %vm2896 = vcmp.eq.s32.totalorder %v2870, 1
          %vm2897 = vcmp.eq.s32.totalorder %v2873, 1
          %vm2898 = vcmp.eq.s32.totalorder %v2876, 1
          %vm2899 = vcmp.eq.s32.totalorder %v2879, 1
          %vm2900 = vcmp.eq.s32.totalorder %v2882, 1
          %vm2901 = vcmp.eq.s32.totalorder %v2885, 1
          %v2902 = vsel %vm2886, %v2822, 0.0
          %v2903 = vsel %vm2887, %v2823, 0.0
          %v2904 = vsel %vm2888, %v2824, 0.0
          %v2905 = vsel %vm2889, %v2825, 0.0
          %v2906 = vsel %vm2890, %v2826, 0.0
          %v2907 = vsel %vm2891, %v2827, 0.0
          %v2908 = vsel %vm2892, %v2828, 0.0
          %v2909 = vsel %vm2893, %v2829, 0.0
          %v2910 = vsel %vm2894, %v2830, 0.0
          %v2911 = vsel %vm2895, %v2831, 0.0
          %v2912 = vsel %vm2896, %v2832, 0.0
          %v2913 = vsel %vm2897, %v2833, 0.0
          %v2914 = vsel %vm2898, %v2834, 0.0
          %v2915 = vsel %vm2899, %v2835, 0.0
          %v2916 = vsel %vm2900, %v2836, 0.0
          %v2917 = vsel %vm2901, %v2837, 0.0
          %v2918 = vadd.f32 %v2724, %v2902
          %v2919 = vadd.f32 %v2725, %v2903
          %v2920 = vadd.f32 %v2726, %v2904
          %v2921 = vadd.f32 %v2727, %v2905
          %v2922 = vadd.f32 %v2728, %v2906
          %v2923 = vadd.f32 %v2729, %v2907
          %v2924 = vadd.f32 %v2730, %v2908
          %v2925 = vadd.f32 %v2731, %v2909
          %v2926 = vadd.f32 %v2732, %v2910
          %v2927 = vadd.f32 %v2733, %v2911
          %v2928 = vadd.f32 %v2734, %v2912
          %v2929 = vadd.f32 %v2735, %v2913
          %v2930 = vadd.f32 %v2736, %v2914
          %v2931 = vadd.f32 %v2737, %v2915
          %v2932 = vadd.f32 %v2738, %v2916
          %v2933 = vadd.f32 %v2739, %v2917
          %s2934 = smul.u32 %s244, 128
          %s2935 = scalar_lea.vmem [#allocation2], %s2934
          %v2936 = vld [vmem:[%s2935] sm:$0xff]
          %v2937 = vld [vmem:[%s2935 + $0x8] sm:$0xff]
          %v2938 = vld [vmem:[%s2935 + $0x10] sm:$0xff]
          %v2939 = vld [vmem:[%s2935 + $0x18] sm:$0xff]
          %v2940 = vld [vmem:[%s2935 + $0x20] sm:$0xff]
          %v2941 = vld [vmem:[%s2935 + $0x28] sm:$0xff]
          %v2942 = vld [vmem:[%s2935 + $0x30] sm:$0xff]
          %v2943 = vld [vmem:[%s2935 + $0x38] sm:$0xff]
          %v2944 = vld [vmem:[%s2935 + $0x40] sm:$0xff]
          %v2945 = vld [vmem:[%s2935 + $0x48] sm:$0xff]
          %v2946 = vld [vmem:[%s2935 + $0x50] sm:$0xff]
          %v2947 = vld [vmem:[%s2935 + $0x58] sm:$0xff]
          %v2948 = vld [vmem:[%s2935 + $0x60] sm:$0xff]
          %v2949 = vld [vmem:[%s2935 + $0x68] sm:$0xff]
          %v2950 = vld [vmem:[%s2935 + $0x70] sm:$0xff]
          %v2951 = vld [vmem:[%s2935 + $0x78] sm:$0xff]
          %v2952 = vpack.c.bf16 %v2937, %v2936
          %v2953 = vpack.c.bf16 %v2919, %v2918
          %v2954 = vpack.c.bf16 %v2939, %v2938
          %v2955 = vpack.c.bf16 %v2921, %v2920
          %v2956 = vpack.c.bf16 %v2941, %v2940
          %v2957 = vpack.c.bf16 %v2923, %v2922
          %v2958 = vpack.c.bf16 %v2943, %v2942
          %v2959 = vpack.c.bf16 %v2925, %v2924
          %v2960 = vpack.c.bf16 %v2945, %v2944
          %v2961 = vpack.c.bf16 %v2927, %v2926
          %v2962 = vpack.c.bf16 %v2947, %v2946
          %v2963 = vpack.c.bf16 %v2929, %v2928
          %v2964 = vpack.c.bf16 %v2949, %v2948
          %v2965 = vpack.c.bf16 %v2931, %v2930
          %v2966 = vpack.c.bf16 %v2951, %v2950
          %v2967 = vpack.c.bf16 %v2933, %v2932
          %v2968 = vld [vmem:[#allocation12] sm:$0xf]
          %v2969 = vld [vmem:[#allocation12 + $0x4] sm:$0xf]
          %v2970 = vld [vmem:[#allocation12 + $0x8] sm:$0xf]
          %v2971 = vld [vmem:[#allocation12 + $0xc] sm:$0xf]
          %v2972 = vld [vmem:[#allocation12 + $0x10] sm:$0xf]
          %v2973 = vld [vmem:[#allocation12 + $0x14] sm:$0xf]
          %v2974 = vld [vmem:[#allocation12 + $0x18] sm:$0xf]
          %v2975 = vld [vmem:[#allocation12 + $0x1c] sm:$0xf]
          %v2976 = vld [vmem:[#allocation12 + $0x20] sm:$0xf]
          %v2977 = vld [vmem:[#allocation12 + $0x24] sm:$0xf]
          %v2978 = vld [vmem:[#allocation12 + $0x28] sm:$0xf]
          %v2979 = vld [vmem:[#allocation12 + $0x2c] sm:$0xf]
          %v2980 = vld [vmem:[#allocation12 + $0x30] sm:$0xf]
          %v2981 = vld [vmem:[#allocation12 + $0x34] sm:$0xf]
          %v2982 = vld [vmem:[#allocation12 + $0x38] sm:$0xf]
          %v2983 = vld [vmem:[#allocation12 + $0x3c] sm:$0xf]
          %v2984 = vld [vmem:[#allocation12 + $0x40] sm:$0xf]
          %v2985 = vld [vmem:[#allocation12 + $0x44] sm:$0xf]
          %v2986 = vld [vmem:[#allocation12 + $0x48] sm:$0xf]
          %v2987 = vld [vmem:[#allocation12 + $0x4c] sm:$0xf]
          %v2988 = vld [vmem:[#allocation12 + $0x50] sm:$0xf]
          %v2989 = vld [vmem:[#allocation12 + $0x54] sm:$0xf]
          %v2990 = vld [vmem:[#allocation12 + $0x58] sm:$0xf]
          %v2991 = vld [vmem:[#allocation12 + $0x5c] sm:$0xf]
          %v2992 = vld [vmem:[#allocation12 + $0x60] sm:$0xf]
          %v2993 = vld [vmem:[#allocation12 + $0x64] sm:$0xf]
          %v2994 = vld [vmem:[#allocation12 + $0x68] sm:$0xf]
          %v2995 = vld [vmem:[#allocation12 + $0x6c] sm:$0xf]
          %v2996 = vld [vmem:[#allocation12 + $0x70] sm:$0xf]
          %v2997 = vld [vmem:[#allocation12 + $0x74] sm:$0xf]
          %v2998 = vld [vmem:[#allocation12 + $0x78] sm:$0xf]
          %v2999 = vld [vmem:[#allocation12 + $0x7c] sm:$0xf]
          %v3032 = vunpack.c.l.b16 %v2968
          %v3033 = vunpack.c.l.b16 %v2969
          %v3034 = vunpack.c.l.b16 %v2970
          %v3035 = vunpack.c.l.b16 %v2971
          %v3036 = vunpack.c.l.b16 %v2972
          %v3037 = vunpack.c.l.b16 %v2973
          %v3038 = vunpack.c.l.b16 %v2974
          %v3039 = vunpack.c.l.b16 %v2975
          %v3040 = vunpack.c.l.b16 %v2976
          %v3041 = vunpack.c.l.b16 %v2977
          %v3042 = vunpack.c.l.b16 %v2978
          %v3043 = vunpack.c.l.b16 %v2979
          %v3044 = vunpack.c.l.b16 %v2980
          %v3045 = vunpack.c.l.b16 %v2981
          %v3046 = vunpack.c.l.b16 %v2982
          %v3047 = vunpack.c.l.b16 %v2983
          %v3048 = vunpack.c.l.b16 %v2984
          %v3049 = vunpack.c.l.b16 %v2985
          %v3050 = vunpack.c.l.b16 %v2986
          %v3051 = vunpack.c.l.b16 %v2987
          %v3052 = vunpack.c.l.b16 %v2988
          %v3053 = vunpack.c.l.b16 %v2989
          %v3054 = vunpack.c.l.b16 %v2990
          %v3055 = vunpack.c.l.b16 %v2991
          %v3056 = vunpack.c.l.b16 %v2992
          %v3057 = vunpack.c.l.b16 %v2993
          %v3058 = vunpack.c.l.b16 %v2994
          %v3059 = vunpack.c.l.b16 %v2995
          %v3060 = vunpack.c.l.b16 %v2996
          %v3061 = vunpack.c.l.b16 %v2997
          %v3062 = vunpack.c.l.b16 %v2998
          %v3063 = vunpack.c.l.b16 %v2999
          %v3064 = vpack.c.b16 %v3033, %v3032
          %v3065 = vpack.c.b16 %v3035, %v3034
          %v3066 = vpack.c.b16 %v3037, %v3036
          %v3067 = vpack.c.b16 %v3039, %v3038
          %v3068 = vpack.c.b16 %v3041, %v3040
          %v3069 = vpack.c.b16 %v3043, %v3042
          %v3070 = vpack.c.b16 %v3045, %v3044
          %v3071 = vpack.c.b16 %v3047, %v3046
          %v3072 = vpack.c.b16 %v3049, %v3048
          %v3073 = vpack.c.b16 %v3051, %v3050
          %v3074 = vpack.c.b16 %v3053, %v3052
          %v3075 = vpack.c.b16 %v3055, %v3054
          %v3076 = vpack.c.b16 %v3057, %v3056
          %v3077 = vpack.c.b16 %v3059, %v3058
          %v3078 = vpack.c.b16 %v3061, %v3060
          %v3079 = vpack.c.b16 %v3063, %v3062
          %3096 = vmatpush.bf16.msra.mxu0 %v3071
          %3097 = vmatpush.bf16.msra.mxu0 %v3070
          %3098 = vmatpush.bf16.msra.mxu0 %v3069
          %3099 = vmatpush.bf16.msra.mxu0 %v3068
          %3100 = vmatpush.bf16.msra.mxu0 %v3067
          %3101 = vmatpush.bf16.msra.mxu0 %v3066
          %3102 = vmatpush.bf16.msra.mxu0 %v3065
          %3103 = vmatpush.bf16.msra.mxu0 %v3064
          %3104 = vmatmul.bf16.gmra.mxu0 %v2952
          %v3105 = vpop.f32.mrf.mxu0
          %v3106 = vadd.f32 0.0, %v3105
          %v3107 = vpop.f32.mrf.mxu0
          %v3108 = vadd.f32 0.0, %v3107
          %3109 = vmatmul.bf16.gmra.mxu0 %v2954
          %v3110 = vpop.f32.mrf.mxu0
          %v3111 = vadd.f32 0.0, %v3110
          %v3112 = vpop.f32.mrf.mxu0
          %v3113 = vadd.f32 0.0, %v3112
          %3114 = vmatmul.bf16.gmra.mxu0 %v2956
          %v3115 = vpop.f32.mrf.mxu0
          %v3116 = vadd.f32 0.0, %v3115
          %v3117 = vpop.f32.mrf.mxu0
          %v3118 = vadd.f32 0.0, %v3117
          %3119 = vmatmul.bf16.gmra.mxu0 %v2958
          %v3120 = vpop.f32.mrf.mxu0
          %v3121 = vadd.f32 0.0, %v3120
          %v3122 = vpop.f32.mrf.mxu0
          %v3123 = vadd.f32 0.0, %v3122
          %3124 = vmatmul.bf16.gmra.mxu0 %v2960
          %v3125 = vpop.f32.mrf.mxu0
          %v3126 = vadd.f32 0.0, %v3125
          %v3127 = vpop.f32.mrf.mxu0
          %v3128 = vadd.f32 0.0, %v3127
          %3129 = vmatmul.bf16.gmra.mxu0 %v2962
          %v3130 = vpop.f32.mrf.mxu0
          %v3131 = vadd.f32 0.0, %v3130
          %v3132 = vpop.f32.mrf.mxu0
          %v3133 = vadd.f32 0.0, %v3132
          %3134 = vmatmul.bf16.gmra.mxu0 %v2964
          %v3135 = vpop.f32.mrf.mxu0
          %v3136 = vadd.f32 0.0, %v3135
          %v3137 = vpop.f32.mrf.mxu0
          %v3138 = vadd.f32 0.0, %v3137
          %3139 = vmatmul.bf16.gmra.mxu0 %v2966
          %v3140 = vpop.f32.mrf.mxu0
          %v3141 = vadd.f32 0.0, %v3140
          %v3142 = vpop.f32.mrf.mxu0
          %v3143 = vadd.f32 0.0, %v3142
          %3144 = vdwg.mxu0
          %3145 = vmatpush.bf16.msra.mxu0 %v3079
          %3146 = vmatpush.bf16.msra.mxu0 %v3078
          %3147 = vmatpush.bf16.msra.mxu0 %v3077
          %3148 = vmatpush.bf16.msra.mxu0 %v3076
          %3149 = vmatpush.bf16.msra.mxu0 %v3075
          %3150 = vmatpush.bf16.msra.mxu0 %v3074
          %3151 = vmatpush.bf16.msra.mxu0 %v3073
          %3152 = vmatpush.bf16.msra.mxu0 %v3072
          %3153 = vmatmul.bf16.gmra.mxu0 %v2953
          %v3154 = vpop.f32.mrf.mxu0
          %v3155 = vadd.f32 %v3106, %v3154
          %v3156 = vpop.f32.mrf.mxu0
          %v3157 = vadd.f32 %v3108, %v3156
          %3158 = vmatmul.bf16.gmra.mxu0 %v2955
          %v3159 = vpop.f32.mrf.mxu0
          %v3160 = vadd.f32 %v3111, %v3159
          %v3161 = vpop.f32.mrf.mxu0
          %v3162 = vadd.f32 %v3113, %v3161
          %3163 = vmatmul.bf16.gmra.mxu0 %v2957
          %v3164 = vpop.f32.mrf.mxu0
          %v3165 = vadd.f32 %v3116, %v3164
          %v3166 = vpop.f32.mrf.mxu0
          %v3167 = vadd.f32 %v3118, %v3166
          %3168 = vmatmul.bf16.gmra.mxu0 %v2959
          %v3169 = vpop.f32.mrf.mxu0
          %v3170 = vadd.f32 %v3121, %v3169
          %v3171 = vpop.f32.mrf.mxu0
          %v3172 = vadd.f32 %v3123, %v3171
          %3173 = vmatmul.bf16.gmra.mxu0 %v2961
          %v3174 = vpop.f32.mrf.mxu0
          %v3175 = vadd.f32 %v3126, %v3174
          %v3176 = vpop.f32.mrf.mxu0
          %v3177 = vadd.f32 %v3128, %v3176
          %3178 = vmatmul.bf16.gmra.mxu0 %v2963
          %v3179 = vpop.f32.mrf.mxu0
          %v3180 = vadd.f32 %v3131, %v3179
          %v3181 = vpop.f32.mrf.mxu0
          %v3182 = vadd.f32 %v3133, %v3181
          %3183 = vmatmul.bf16.gmra.mxu0 %v2965
          %v3184 = vpop.f32.mrf.mxu0
          %v3185 = vadd.f32 %v3136, %v3184
          %v3186 = vpop.f32.mrf.mxu0
          %v3187 = vadd.f32 %v3138, %v3186
          %3188 = vmatmul.bf16.gmra.mxu0 %v2967
          %v3189 = vpop.f32.mrf.mxu0
          %v3190 = vadd.f32 %v3141, %v3189
          %v3191 = vpop.f32.mrf.mxu0
          %v3192 = vadd.f32 %v3143, %v3191
          %3193 = vdwg.mxu0
          %v3194 = vlaneseq
          %v3195 = vshrl.u32 %v3194, 7
          %v3196 = vadd.s32 %v3195, 8
          %v3197 = vadd.s32 %v3195, 16
          %v3198 = vadd.s32 %v3195, 24
          %v3199 = vadd.s32 %v3195, 32
          %v3200 = vadd.s32 %v3195, 40
          %v3201 = vadd.s32 %v3195, 48
          %v3202 = vadd.s32 %v3195, 56
          %v3203 = vadd.s32 %v3195, 64
          %v3204 = vadd.s32 %v3195, 72
          %v3205 = vadd.s32 %v3195, 80
          %v3206 = vadd.s32 %v3195, 88
          %v3207 = vadd.s32 %v3195, 96
          %v3208 = vadd.s32 %v3195, 104
          %v3209 = vadd.s32 %v3195, 112
          %v3210 = vadd.s32 %v3195, 120
          %v3211 = vstv %s535
          %vm3212 = vcmp.lt.s32.totalorder %v3195, %v3211
          %vm3213 = vcmp.lt.s32.totalorder %v3196, %v3211
          %vm3214 = vcmp.lt.s32.totalorder %v3197, %v3211
          %vm3215 = vcmp.lt.s32.totalorder %v3198, %v3211
          %vm3216 = vcmp.lt.s32.totalorder %v3199, %v3211
          %vm3217 = vcmp.lt.s32.totalorder %v3200, %v3211
          %vm3218 = vcmp.lt.s32.totalorder %v3201, %v3211
          %vm3219 = vcmp.lt.s32.totalorder %v3202, %v3211
          %vm3220 = vcmp.lt.s32.totalorder %v3203, %v3211
          %vm3221 = vcmp.lt.s32.totalorder %v3204, %v3211
          %vm3222 = vcmp.lt.s32.totalorder %v3205, %v3211
          %vm3223 = vcmp.lt.s32.totalorder %v3206, %v3211
          %vm3224 = vcmp.lt.s32.totalorder %v3207, %v3211
          %vm3225 = vcmp.lt.s32.totalorder %v3208, %v3211
          %vm3226 = vcmp.lt.s32.totalorder %v3209, %v3211
          %vm3227 = vcmp.lt.s32.totalorder %v3210, %v3211
          %v3228 = vmax.f32 %v3155, 0.0
          %v3229 = vmax.f32 %v3157, 0.0
          %v3230 = vmax.f32 %v3160, 0.0
          %v3231 = vmax.f32 %v3162, 0.0
          %v3232 = vmax.f32 %v3165, 0.0
          %v3233 = vmax.f32 %v3167, 0.0
          %v3234 = vmax.f32 %v3170, 0.0
          %v3235 = vmax.f32 %v3172, 0.0
          %v3236 = vmax.f32 %v3175, 0.0
          %v3237 = vmax.f32 %v3177, 0.0
          %v3238 = vmax.f32 %v3180, 0.0
          %v3239 = vmax.f32 %v3182, 0.0
          %v3240 = vmax.f32 %v3185, 0.0
          %v3241 = vmax.f32 %v3187, 0.0
          %v3242 = vmax.f32 %v3190, 0.0
          %v3243 = vmax.f32 %v3192, 0.0
          %v3244 = vsel %vm3212, 1, 0
          %v3245 = vsel %vm3213, 1, 0
          %v3246 = vsel %vm3214, 1, 0
          %v3247 = vsel %vm3215, 1, 0
          %v3248 = vsel %vm3216, 1, 0
          %v3249 = vsel %vm3217, 1, 0
          %v3250 = vsel %vm3218, 1, 0
          %v3251 = vsel %vm3219, 1, 0
          %v3252 = vsel %vm3220, 1, 0
          %v3253 = vsel %vm3221, 1, 0
          %v3254 = vsel %vm3222, 1, 0
          %v3255 = vsel %vm3223, 1, 0
          %v3256 = vsel %vm3224, 1, 0
          %v3257 = vsel %vm3225, 1, 0
          %v3258 = vsel %vm3226, 1, 0
          %v3259 = vsel %vm3227, 1, 0
          %vm3260 = vcmp.eq.s32.totalorder %v3244, 1
          %vm3261 = vcmp.eq.s32.totalorder %v3245, 1
          %vm3262 = vcmp.eq.s32.totalorder %v3246, 1
          %vm3263 = vcmp.eq.s32.totalorder %v3247, 1
          %vm3264 = vcmp.eq.s32.totalorder %v3248, 1
          %vm3265 = vcmp.eq.s32.totalorder %v3249, 1
          %vm3266 = vcmp.eq.s32.totalorder %v3250, 1
          %vm3267 = vcmp.eq.s32.totalorder %v3251, 1
          %vm3268 = vcmp.eq.s32.totalorder %v3252, 1
          %vm3269 = vcmp.eq.s32.totalorder %v3253, 1
          %vm3270 = vcmp.eq.s32.totalorder %v3254, 1
          %vm3271 = vcmp.eq.s32.totalorder %v3255, 1
          %vm3272 = vcmp.eq.s32.totalorder %v3256, 1
          %vm3273 = vcmp.eq.s32.totalorder %v3257, 1
          %vm3274 = vcmp.eq.s32.totalorder %v3258, 1
          %vm3275 = vcmp.eq.s32.totalorder %v3259, 1
          %v3276 = vsel %vm3260, %v3228, 0.0
          %v3277 = vsel %vm3261, %v3229, 0.0
          %v3278 = vsel %vm3262, %v3230, 0.0
          %v3279 = vsel %vm3263, %v3231, 0.0
          %v3280 = vsel %vm3264, %v3232, 0.0
          %v3281 = vsel %vm3265, %v3233, 0.0
          %v3282 = vsel %vm3266, %v3234, 0.0
          %v3283 = vsel %vm3267, %v3235, 0.0
          %v3284 = vsel %vm3268, %v3236, 0.0
          %v3285 = vsel %vm3269, %v3237, 0.0
          %v3286 = vsel %vm3270, %v3238, 0.0
          %v3287 = vsel %vm3271, %v3239, 0.0
          %v3288 = vsel %vm3272, %v3240, 0.0
          %v3289 = vsel %vm3273, %v3241, 0.0
          %v3290 = vsel %vm3274, %v3242, 0.0
          %v3291 = vsel %vm3275, %v3243, 0.0
          %3292 = vst [vmem:[%s224] sm:$0xff] %v3276
          %3293 = vst [vmem:[%s224 + $0x8] sm:$0xff] %v3277
          %3294 = vst [vmem:[%s224 + $0x10] sm:$0xff] %v3278
          %3295 = vst [vmem:[%s224 + $0x18] sm:$0xff] %v3279
          %3296 = vst [vmem:[%s224 + $0x20] sm:$0xff] %v3280
          %3297 = vst [vmem:[%s224 + $0x28] sm:$0xff] %v3281
          %3298 = vst [vmem:[%s224 + $0x30] sm:$0xff] %v3282
          %3299 = vst [vmem:[%s224 + $0x38] sm:$0xff] %v3283
          %3300 = vst [vmem:[%s224 + $0x40] sm:$0xff] %v3284
          %3301 = vst [vmem:[%s224 + $0x48] sm:$0xff] %v3285
          %3302 = vst [vmem:[%s224 + $0x50] sm:$0xff] %v3286
          %3303 = vst [vmem:[%s224 + $0x58] sm:$0xff] %v3287
          %3304 = vst [vmem:[%s224 + $0x60] sm:$0xff] %v3288
          %3305 = vst [vmem:[%s224 + $0x68] sm:$0xff] %v3289
          %3306 = vst [vmem:[%s224 + $0x70] sm:$0xff] %v3290
          %3307 = vst [vmem:[%s224 + $0x78] sm:$0xff] %v3291
        $region277: #{tpu_custom_call.1} parent=27 // pred_fallthru
          _
        %p3308 = scmp.eq.s32.totalorder %s535, 0
        // Predicated region
        $region278: #{tpu_custom_call.1} parent=27 // pred_check
          %p3309 = pneg %p3308
        $region279: #{tpu_custom_call.1} parent=27 // pred_check_branch
          %3311 = sbr.rel (%p3309) target = $region281
        $region280: #{tpu_custom_call.1} parent=27 // pred_region
          %3312 = vst [vmem:[%s224] sm:$0xff] 0.0
          %3313 = vst [vmem:[%s224 + $0x8] sm:$0xff] 0.0
          %3314 = vst [vmem:[%s224 + $0x10] sm:$0xff] 0.0
          %3315 = vst [vmem:[%s224 + $0x18] sm:$0xff] 0.0
          %3316 = vst [vmem:[%s224 + $0x20] sm:$0xff] 0.0
          %3317 = vst [vmem:[%s224 + $0x28] sm:$0xff] 0.0
          %3318 = vst [vmem:[%s224 + $0x30] sm:$0xff] 0.0
          %3319 = vst [vmem:[%s224 + $0x38] sm:$0xff] 0.0
          %3320 = vst [vmem:[%s224 + $0x40] sm:$0xff] 0.0
          %3321 = vst [vmem:[%s224 + $0x48] sm:$0xff] 0.0
          %3322 = vst [vmem:[%s224 + $0x50] sm:$0xff] 0.0
          %3323 = vst [vmem:[%s224 + $0x58] sm:$0xff] 0.0
          %3324 = vst [vmem:[%s224 + $0x60] sm:$0xff] 0.0
          %3325 = vst [vmem:[%s224 + $0x68] sm:$0xff] 0.0
          %3326 = vst [vmem:[%s224 + $0x70] sm:$0xff] 0.0
          %3327 = vst [vmem:[%s224 + $0x78] sm:$0xff] 0.0
        $region281: #{tpu_custom_call.1} parent=27 // pred_fallthru
          _
        %s3328 = sand.u32 %s117, 1
        %s3329 = scalar_lea.sflag [#allocation11], %s3328
        %s3330 = sand.u32 %s117, 1
        %s3331 = smul.addr %s3330, 128
        %s3332 = scalar_lea.vmem [#allocation14], %s3331
        // Predicated region
        $region282: #{tpu_custom_call.1} parent=27 // pred_check
          %p3333 = pneg %p127
        $region283: #{tpu_custom_call.1} parent=27 // pred_check_branch
          %3335 = sbr.rel (%p3333) target = $region285
        $region284: #{tpu_custom_call.1} parent=27 // pred_region
          %s3336 = smul.u32 %s46, 2
          %s3337 = sadd.s32 %s3336, %s47
          %s3338 = smul.u32 16, %s3337
          %3340 = vsyncadd %s3329, 0
          %s3341 = smul.addr %s3338, 8
          %s3342 = scalar_lea.hbm %s6, %s3341
          %s3343 = sshll.u32 %s3332, 4
          %s3344 = int_to_ptr.vmem [resolvable:$true] %s3343
          %s3345 = sshll.u32 %s3342, 4
          %s3346 = int_to_ptr.hbm [resolvable:$true] %s3345
          %3351 = dma.vmem_to_hbm [thread:$0]  %s3344, 2048, %s3346, %s3329, 128, 128, 8
        $region285: #{tpu_custom_call.1} parent=27 // pred_fallthru
          _
      $region28: #{tpu_custom_call.1} parent=5 // pred_fallthru
        _
      %p3352 = scmp.le.s32.totalorder 2, %s37
      // Predicated region
      $region286: #{tpu_custom_call.1} parent=5 // pred_check
        %p3353 = pneg %p3352
      $region287: #{tpu_custom_call.1} parent=5 // pred_check_branch
        %3355 = sbr.rel (%p3353) target = $region289
      $region288: #{tpu_custom_call.1} parent=5 // pred_region
        %s3356 = ssub.s32 %s37, 2
        // Predicated region
        $region290: #{tpu_custom_call.1} parent=288 // pred_check
          %p3357 = pneg %p133
        $region291: #{tpu_custom_call.1} parent=288 // pred_check_branch
          %3359 = sbr.rel (%p3357) target = $region293
        $region292: #{tpu_custom_call.1} parent=288 // pred_region
          %s3360 = sand.u32 %s118, 1
          %s3361 = scalar_lea.sflag [#allocation11], %s3360
          %s3362 = sand.u32 %s118, 1
          %s3363 = smul.addr %s3362, 128
          %s3364 = scalar_lea.vmem [#allocation14], %s3363
          %3366 = dma.done %s3361, 2048
        $region293: #{tpu_custom_call.1} parent=288 // pred_fallthru
          _
      $region289: #{tpu_custom_call.1} parent=5 // pred_fallthru
        _
    $region6: #{tpu_custom_call.1} parent=1 // loop_footer
      %s41 = sadd.s32 1, %s37
    $region7: #{tpu_custom_call.1} parent=1 // loop_footer_branch
      %36 = sbr.rel target = $region3
    $region8: #{tpu_custom_call.1} parent=1 // loop_exit
      _
    %3367 = vsyncpa [#allocation10], 1
    %s3368 = scalar_lea.sflag [#allocation10], 1
    %3369 = vsyncpa %s3368, 1
    %3370 = vsyncpa [#allocation13], 1
    %3371 = vsyncpa [#allocation11], 1
    %s3372 = scalar_lea.sflag [#allocation11], 1
    %3373 = vsyncpa %s3372, 1
  %3374 = vsyncmov [#allocation4]
  %s3375 = vpop.sfrf %3374
  %p3376 = scmp.eq.s32.totalorder %s3375, 0
  %p3377 = pneg %p3376
  %3379 = shalt.err (%p3377)
  %s3380 = scalar_lea.sflag [#allocation4], 1
  %3381 = vsyncmov %s3380
  %s3382 = vpop.sfrf %3381
  %p3383 = scmp.eq.s32.totalorder %s3382, 0
  %p3384 = pneg %p3383
  %3386 = shalt.err (%p3384)

</llo_original>
